<compile_context>
chip_gen: v5e
topology: v5e:2x2
jax: 0.10.0
libtpu: 0.0.40
codegen_flags: <defaults>
</compile_context>

<pallas_src>
import jax
import jax.numpy as jnp
from jax import lax
from jax.experimental import pallas as pl
from jax.experimental.pallas import tpu as pltpu


def lstm_classifier_kernel(x_ref,      # (T, Bb, I)    f32, time-major
                           wih0_ref,   # (I,  4Hp)     f32
                           whh0_ref,   # (Hp, 4Hp)     bf16
                           b0_ref,     # (1,  4Hp)     f32 = b_ih_l0 + b_hh_l0
                           w1_ref,     # (2Hp, 4Hp)    bf16 = vstack(wih1, whh1)
                           b1_ref,     # (1,  4Hp)     f32 = b_ih_l1 + b_hh_l1
                           wfc_ref,    # (Hp, Cp)      bf16
                           bfc_ref,    # (1,  Cp)      f32
                           out_ref,    # (Bb, Cp)      f32
                           gx0_ref):   # scratch (T, Bb, 4Hp) f32
    T, Bb, I = x_ref.shape
    Hp = whh0_ref.shape[0]
    G = 4 * Hp
    f32 = jnp.float32
    cdt = whh0_ref.dtype          # MXU operand dtype (bf16)

    def sigmoid(v):
        # Exact identity sigmoid(x) = 0.5*tanh(0.5x) + 0.5:
        # one EUP op + a VPU fma, avoids exp + full-precision divide on the
        # serial gate chain.
        return 0.5 * jnp.tanh(0.5 * v) + 0.5

    def gates_to_hc(gates, c):
        # 128-lane-aligned static gate slices (packed order i, f, g, o).
        i_g = sigmoid(gates[:, 0 * Hp:1 * Hp])
        f_g = sigmoid(gates[:, 1 * Hp:2 * Hp])
        g_g = jnp.tanh(gates[:, 2 * Hp:3 * Hp])
        o_g = sigmoid(gates[:, 3 * Hp:4 * Hp])
        c_new = f_g * c + i_g * g_g
        h_new = o_g * jnp.tanh(c_new)
        return h_new, c_new

    # ---- Layer-0 input projection (+ folded biases), hoisted over all T ----
    b0 = b0_ref[...]
    if I == 1:
        # input_size == 1: pure VPU broadcast-multiply, no degenerate-K matmul.
        gx0_ref[...] = (x_ref[...] * wih0_ref[...].reshape(1, 1, G)
                        + b0.reshape(1, 1, G))
    else:
        gx0_ref[...] = (jnp.dot(x_ref[...].reshape(T * Bb, I), wih0_ref[...],
                                preferred_element_type=f32)
                        + b0).reshape(T, Bb, G)

    whh0 = whh0_ref[...]
    w1 = w1_ref[...]
    b1 = b1_ref[...]
    zeros = jnp.zeros((Bb, Hp), f32)

    # ---- Prologue: layer-0 timestep 0 (h0 = c0 = 0 => recurrent term = 0) ---
    h0, c0 = gates_to_hc(gx0_ref[0], zeros)
    h1, c1 = zeros, zeros

    # ---- Wavefront loop: step s runs layer-0 cell(s) and layer-1 cell(s-1).
    # The two matmuls are independent (both consume step s-1 state), so the
    # MXU gets two pushes per step and the serial chain is ~T+1 long.
    def step(s, carry):
        h0, c0, h1, c1 = carry
        g0 = gx0_ref[s] + jnp.dot(h0.astype(cdt), whh0,
                                  preferred_element_type=f32)
        h01 = jnp.concatenate([h0, h1], axis=1).astype(cdt)       # (Bb, 2Hp)
        g1 = jnp.dot(h01, w1, preferred_element_type=f32) + b1
        h0n, c0n = gates_to_hc(g0, c0)
        h1n, c1n = gates_to_hc(g1, c1)
        return h0n, c0n, h1n, c1n

    h0, c0, h1, c1 = lax.fori_loop(1, T, step, (h0, c0, h1, c1), unroll=True)

    # ---- Epilogue: layer-1 timestep T-1 --------------------------------------
    h01 = jnp.concatenate([h0, h1], axis=1).astype(cdt)
    g1 = jnp.dot(h01, w1, preferred_element_type=f32) + b1
    h1, _ = gates_to_hc(g1, c1)

    # TODO(synk): inter-layer dropout(p=0.3) only applies in training mode;
    # eval-mode forward (no dropout) is implemented here.

    # ---- FC head on the final top-layer hidden state (lane-dense output) ----
    out_ref[...] = (jnp.dot(h1.astype(cdt), wfc_ref[...],
                            preferred_element_type=f32) + bfc_ref[...])


# ----------------------------------------------------------------------------
# Host-side helpers: padding + wrapper
# ----------------------------------------------------------------------------
def _round_up(n, m):
    return ((n + m - 1) // m) * m


def _pad_gates(w, h, hp):
    """Pad the packed (i,f,g,o) last axis from 4h to 4hp (per-gate zero pad)."""
    if hp == h:
        return w
    lead = w.shape[:-1]
    w4 = w.reshape(lead + (4, h))
    pad = [(0, 0)] * (len(lead) + 1) + [(0, hp - h)]
    return jnp.pad(w4, pad).reshape(lead + (4 * hp,))


def _pad_rows(w, h, hp):
    if hp == h:
        return w
    return jnp.pad(w, ((0, hp - h), (0, 0)))


def lstm_classifier_forward(x, params, *, interpret=False):
    """x: (B, T, I) float32, batch_first like the PyTorch module."""
    B, T, I = x.shape
    H = params["whh0_t"].shape[0]
    C = params["wfc_t"].shape[1]

    Hp = _round_up(H, 128)                  # 128-lane-aligned gate blocks
    Cp = _round_up(C, 128)                  # lane-dense output tile
    G = 4 * Hp

    # Batch block: fill MXU rows (cap 256); if that would leave a single grid
    # step for a larger batch, split into two so v7x's second TC has work.
    Bp0 = _round_up(B, 8)
    Bb = min(256, Bp0)
    if Bp0 > 8 and Bp0 // Bb < 2:
        Bb = _round_up((Bp0 + 1) // 2, 8)
    Bp = _round_up(Bp0, Bb)

    # Pad batch and go time-major for the kernel.
    x_p = jnp.pad(x.astype(jnp.float32), ((0, Bp - B), (0, 0), (0, 0)))
    x_tbi = jnp.transpose(x_p, (1, 0, 2))   # (T, Bp, I)

    # Zero-pad weights so padded h/c lanes stay exactly zero; MXU operands bf16.
    f32, bf16 = jnp.float32, jnp.bfloat16
    wih0 = _pad_gates(params["wih0_t"].astype(f32), H, Hp)              # (I, G)
    whh0 = _pad_rows(_pad_gates(params["whh0_t"].astype(f32), H, Hp),
                     H, Hp).astype(bf16)                                # (Hp, G)
    b0 = _pad_gates(params["b0"].astype(f32), H, Hp)                    # (1, G)
    wih1 = _pad_rows(_pad_gates(params["wih1_t"].astype(f32), H, Hp), H, Hp)
    whh1 = _pad_rows(_pad_gates(params["whh1_t"].astype(f32), H, Hp), H, Hp)
    w1 = jnp.concatenate([wih1, whh1], axis=0).astype(bf16)             # (2Hp, G)
    b1 = _pad_gates(params["b1"].astype(f32), H, Hp)                    # (1, G)
    wfc = jnp.pad(_pad_rows(params["wfc_t"].astype(f32), H, Hp),
                  ((0, 0), (0, Cp - C))).astype(bf16)                   # (Hp, Cp)
    bfc = jnp.pad(params["bfc"].astype(f32), ((0, 0), (0, Cp - C)))     # (1, Cp)

    out = pl.pallas_call(
        lstm_classifier_kernel,
        out_shape=jax.ShapeDtypeStruct((Bp, Cp), jnp.float32),
        grid_spec=pltpu.PrefetchScalarGridSpec(
            num_scalar_prefetch=0,
            grid=(Bp // Bb,),
            in_specs=[
                pl.BlockSpec((T, Bb, I), lambda b: (0, b, 0)),
                pl.BlockSpec((I, G), lambda b: (0, 0)),
                pl.BlockSpec((Hp, G), lambda b: (0, 0)),
                pl.BlockSpec((1, G), lambda b: (0, 0)),
                pl.BlockSpec((2 * Hp, G), lambda b: (0, 0)),
                pl.BlockSpec((1, G), lambda b: (0, 0)),
                pl.BlockSpec((Hp, Cp), lambda b: (0, 0)),
                pl.BlockSpec((1, Cp), lambda b: (0, 0)),
            ],
            out_specs=pl.BlockSpec((Bb, Cp), lambda b: (b, 0)),
            scratch_shapes=[
                pltpu.VMEM((T, Bb, G), jnp.float32),   # gx0: layer-0 input proj
            ],
        ),
        compiler_params=pltpu.CompilerParams(
            # Batch blocks are independent -> shard across TensorCores (v7x).
            dimension_semantics=("parallel",)),
        interpret=interpret,
    )(x_tbi, wih0, whh0, b0, w1, b1, wfc, bfc)

    return out[:B, :C]


# ----------------------------------------------------------------------------
# Parameter init (PyTorch-style U(-1/sqrt(H), 1/sqrt(H))) and pure-JAX reference
# ----------------------------------------------------------------------------
def init_params(key, input_size=1, hidden_size=64, num_classes=2):
    H = hidden_size
    k = 1.0 / jnp.sqrt(jnp.float32(H))
    keys = jax.random.split(key, 10)

    def u(kk, shape):
        return jax.random.uniform(kk, shape, jnp.float32, -k, k)

    return dict(
        # layer 0 (weights pre-transposed to (in, out), gates packed (i,f,g,o))
        wih0_t=u(keys[0], (input_size, 4 * H)),
        whh0_t=u(keys[1], (H, 4 * H)),
        b0=(u(keys[2], (1, 4 * H)) + u(keys[3], (1, 4 * H))),   # b_ih + b_hh
        # layer 1
        wih1_t=u(keys[4], (H, 4 * H)),
        whh1_t=u(keys[5], (H, 4 * H)),
        b1=(u(keys[6], (1, 4 * H)) + u(keys[7], (1, 4 * H))),
        # fc head
        wfc_t=u(keys[8], (H, num_classes)),
        bfc=u(keys[9], (1, num_classes)),
    )


def lstm_classifier_reference(x, params):
    """Plain-JAX f32 reference matching the PyTorch eval-mode forward."""
    B, T, _ = x.shape
    H = params["whh0_t"].shape[0]

    def cell(x_t, h, c, wih, whh, b):
        gates = x_t @ wih + h @ whh + b
        i_g = jax.nn.sigmoid(gates[:, 0 * H:1 * H])
        f_g = jax.nn.sigmoid(gates[:, 1 * H:2 * H])
        g_g = jnp.tanh(gates[:, 2 * H:3 * H])
        o_g = jax.nn.sigmoid(gates[:, 3 * H:4 * H])
        c_new = f_g * c + i_g * g_g
        return o_g * jnp.tanh(c_new), c_new

    h0 = c0 = h1 = c1 = jnp.zeros((B, H), jnp.float32)
    for t in range(T):
        h0, c0 = cell(x[:, t, :], h0, c0,
                      params["wih0_t"], params["whh0_t"], params["b0"])
        h1, c1 = cell(h0, h1, c1,
                      params["wih1_t"], params["whh1_t"], params["b1"])
    return h1 @ params["wfc_t"] + params["bfc"]


if __name__ == "__main__":
    key = jax.random.PRNGKey(0)
    k_param, k_x = jax.random.split(key)

    B, T, I, H, C = 2, 8, 1, 64, 2
    params = init_params(k_param, input_size=I, hidden_size=H, num_classes=C)
    x = jax.random.normal(k_x, (B, T, I), jnp.float32)

    logits = lstm_classifier_forward(x, params)
    jax.block_until_ready(logits)
    assert logits.shape == (B, C)
    assert bool(jnp.all(jnp.isfinite(logits)))

    ref = lstm_classifier_reference(x, params)
    err = float(jnp.max(jnp.abs(logits - ref)))
    assert err < 2e-2, "max abs diff vs reference: %f" % err

    print("KERNEL_OK")
</pallas_src>

<mosaic_0001>
module attributes {stable_mosaic.version = 11 : i64} {
  func.func @lstm_classifier_kernel(%arg0: i32, %arg1: memref<8x8x1xf32, #tpu.memory_space<vmem>>, %arg2: memref<1x512xf32, #tpu.memory_space<vmem>>, %arg3: memref<128x512xbf16, #tpu.memory_space<vmem>>, %arg4: memref<1x512xf32, #tpu.memory_space<vmem>>, %arg5: memref<256x512xbf16, #tpu.memory_space<vmem>>, %arg6: memref<1x512xf32, #tpu.memory_space<vmem>>, %arg7: memref<128x128xbf16, #tpu.memory_space<vmem>>, %arg8: memref<1x128xf32, #tpu.memory_space<vmem>>, %arg9: memref<8x128xf32, #tpu.memory_space<vmem>>, %arg10: memref<8x8x512xf32, #tpu.memory_space<vmem>>) attributes {dimension_semantics = [#tpu.dimension_semantics<parallel>], iteration_bounds = array<i64: 1>, scalar_prefetch = 0 : i64, scratch_operands = 1 : i64, tpu.core_type = #tpu.core_type<tc>, window_params = [{transform_indices = @transform_0, window_bounds = array<i64: 8, 8, 1>}, {pipeline_mode = #tpu.pipeline_mode<synchronous>, transform_indices = @transform_1, window_bounds = array<i64: 1, 512>}, {pipeline_mode = #tpu.pipeline_mode<synchronous>, transform_indices = @transform_2, window_bounds = array<i64: 128, 512>}, {pipeline_mode = #tpu.pipeline_mode<synchronous>, transform_indices = @transform_3, window_bounds = array<i64: 1, 512>}, {pipeline_mode = #tpu.pipeline_mode<synchronous>, transform_indices = @transform_4, window_bounds = array<i64: 256, 512>}, {pipeline_mode = #tpu.pipeline_mode<synchronous>, transform_indices = @transform_5, window_bounds = array<i64: 1, 512>}, {pipeline_mode = #tpu.pipeline_mode<synchronous>, transform_indices = @transform_6, window_bounds = array<i64: 128, 128>}, {pipeline_mode = #tpu.pipeline_mode<synchronous>, transform_indices = @transform_7, window_bounds = array<i64: 1, 128>}, {transform_indices = @transform_8, window_bounds = array<i64: 8, 128>}]} {
    %c0 = arith.constant 0 : index
    %c0_0 = arith.constant 0 : index
    %0 = vector.load %arg4[%c0, %c0_0] : memref<1x512xf32, #tpu.memory_space<vmem>>, vector<1x512xf32>
    %c0_1 = arith.constant 0 : index
    %c0_2 = arith.constant 0 : index
    %c0_3 = arith.constant 0 : index
    %1 = vector.load %arg1[%c0_1, %c0_2, %c0_3] : memref<8x8x1xf32, #tpu.memory_space<vmem>>, vector<8x8x1xf32>
    %c0_4 = arith.constant 0 : index
    %c0_5 = arith.constant 0 : index
    %2 = vector.load %arg2[%c0_4, %c0_5] : memref<1x512xf32, #tpu.memory_space<vmem>>, vector<1x512xf32>
    %3 = vector.shape_cast %2 : vector<1x512xf32> to vector<1x1x512xf32>
    %4 = vector.broadcast %1 : vector<8x8x1xf32> to vector<8x8x512xf32>
    %5 = vector.broadcast %3 : vector<1x1x512xf32> to vector<8x8x512xf32>
    %6 = arith.mulf %4, %5 : vector<8x8x512xf32>
    %7 = vector.shape_cast %0 : vector<1x512xf32> to vector<1x1x512xf32>
    %8 = vector.broadcast %7 : vector<1x1x512xf32> to vector<8x8x512xf32>
    %9 = arith.addf %6, %8 : vector<8x8x512xf32>
    %c0_6 = arith.constant 0 : index
    %c0_7 = arith.constant 0 : index
    %c0_8 = arith.constant 0 : index
    %10 = vector.load %arg10[%c0_6, %c0_7, %c0_8] : memref<8x8x512xf32, #tpu.memory_space<vmem>>, vector<8x8x512xf32>
    tpu.vector_store %arg10[%c0_6, %c0_7, %c0_8], %9 {strides = array<i32>} : memref<8x8x512xf32, #tpu.memory_space<vmem>>, vector<8x8x512xf32>,
    %c0_9 = arith.constant 0 : index
    %c0_10 = arith.constant 0 : index
    %11 = vector.load %arg3[%c0_9, %c0_10] : memref<128x512xbf16, #tpu.memory_space<vmem>>, vector<128x512xbf16>
    %c0_11 = arith.constant 0 : index
    %c0_12 = arith.constant 0 : index
    %12 = vector.load %arg5[%c0_11, %c0_12] : memref<256x512xbf16, #tpu.memory_space<vmem>>, vector<256x512xbf16>
    %c0_13 = arith.constant 0 : index
    %c0_14 = arith.constant 0 : index
    %13 = vector.load %arg6[%c0_13, %c0_14] : memref<1x512xf32, #tpu.memory_space<vmem>>, vector<1x512xf32>
    %cst = arith.constant 0.000000e+00 : f32
    %14 = vector.broadcast %cst : f32 to vector<8x128xf32>
    %c0_15 = arith.constant 0 : index
    %c0_16 = arith.constant 0 : index
    %c0_17 = arith.constant 0 : index
    %15 = vector.load %arg10[%c0_15, %c0_16, %c0_17] : memref<8x8x512xf32, #tpu.memory_space<vmem>>, vector<1x8x512xf32>
    %16 = vector.shape_cast %15 : vector<1x8x512xf32> to vector<8x512xf32>
    %17 = vector.extract_strided_slice %16 {offsets = [0, 0], sizes = [8, 128], strides = [1, 1]} : vector<8x512xf32> to vector<8x128xf32>
    %cst_18 = arith.constant 5.000000e-01 : f32
    %18 = vector.broadcast %cst_18 : f32 to vector<8x128xf32>
    %19 = arith.mulf %18, %17 : vector<8x128xf32>
    %20 = math.tanh %19 : vector<8x128xf32>
    %cst_19 = arith.constant 5.000000e-01 : f32
    %21 = vector.broadcast %cst_19 : f32 to vector<8x128xf32>
    %22 = arith.mulf %21, %20 : vector<8x128xf32>
    %cst_20 = arith.constant 5.000000e-01 : f32
    %23 = vector.broadcast %cst_20 : f32 to vector<8x128xf32>
    %24 = arith.addf %22, %23 : vector<8x128xf32>
    %25 = vector.extract_strided_slice %16 {offsets = [0, 128], sizes = [8, 128], strides = [1, 1]} : vector<8x512xf32> to vector<8x128xf32>
    %cst_21 = arith.constant 5.000000e-01 : f32
    %26 = vector.broadcast %cst_21 : f32 to vector<8x128xf32>
    %27 = arith.mulf %26, %25 : vector<8x128xf32>
    %28 = math.tanh %27 : vector<8x128xf32>
    %cst_22 = arith.constant 5.000000e-01 : f32
    %29 = vector.broadcast %cst_22 : f32 to vector<8x128xf32>
    %30 = arith.mulf %29, %28 : vector<8x128xf32>
    %cst_23 = arith.constant 5.000000e-01 : f32
    %31 = vector.broadcast %cst_23 : f32 to vector<8x128xf32>
    %32 = arith.addf %30, %31 : vector<8x128xf32>
    %33 = vector.extract_strided_slice %16 {offsets = [0, 256], sizes = [8, 128], strides = [1, 1]} : vector<8x512xf32> to vector<8x128xf32>
    %34 = math.tanh %33 : vector<8x128xf32>
    %35 = vector.extract_strided_slice %16 {offsets = [0, 384], sizes = [8, 128], strides = [1, 1]} : vector<8x512xf32> to vector<8x128xf32>
    %cst_24 = arith.constant 5.000000e-01 : f32
    %36 = vector.broadcast %cst_24 : f32 to vector<8x128xf32>
    %37 = arith.mulf %36, %35 : vector<8x128xf32>
    %38 = math.tanh %37 : vector<8x128xf32>
    %cst_25 = arith.constant 5.000000e-01 : f32
    %39 = vector.broadcast %cst_25 : f32 to vector<8x128xf32>
    %40 = arith.mulf %39, %38 : vector<8x128xf32>
    %cst_26 = arith.constant 5.000000e-01 : f32
    %41 = vector.broadcast %cst_26 : f32 to vector<8x128xf32>
    %42 = arith.addf %40, %41 : vector<8x128xf32>
    %43 = arith.mulf %32, %14 : vector<8x128xf32>
    %44 = arith.mulf %24, %34 : vector<8x128xf32>
    %45 = arith.addf %43, %44 : vector<8x128xf32>
    %46 = math.tanh %45 : vector<8x128xf32>
    %47 = arith.mulf %42, %46 : vector<8x128xf32>
    %c1_i32 = arith.constant 1 : i32
    %48 = arith.index_cast %c1_i32 : i32 to index
    %c0_27 = arith.constant 0 : index
    %c0_28 = arith.constant 0 : index
    %49 = vector.load %arg10[%48, %c0_27, %c0_28] : memref<8x8x512xf32, #tpu.memory_space<vmem>>, vector<1x8x512xf32>
    %50 = vector.shape_cast %49 : vector<1x8x512xf32> to vector<8x512xf32>
    %51 = arith.truncf %47 : vector<8x128xf32> to vector<8x128xbf16>
    %cst_29 = arith.constant dense<0.000000e+00> : vector<8x512xf32>
    %52 = tpu.matmul %51, %11, %cst_29 {dimension_numbers = #tpu.dot_dimension_numbers<[1], [0], [0], [1], [0, 0, 1, 1], [], []>} : vector<8x128xbf16>, vector<128x512xbf16>, vector<8x512xf32> -> vector<8x512xf32>
    %53 = arith.addf %50, %52 : vector<8x512xf32>
    %54 = tpu.concatenate %47, %14 in 1 : vector<8x128xf32>, vector<8x128xf32> -> vector<8x256xf32>
    %55 = arith.truncf %54 : vector<8x256xf32> to vector<8x256xbf16>
    %cst_30 = arith.constant dense<0.000000e+00> : vector<8x512xf32>
    %56 = tpu.matmul %55, %12, %cst_30 {dimension_numbers = #tpu.dot_dimension_numbers<[1], [0], [0], [1], [0, 0, 1, 1], [], []>} : vector<8x256xbf16>, vector<256x512xbf16>, vector<8x512xf32> -> vector<8x512xf32>
    %57 = vector.broadcast %13 : vector<1x512xf32> to vector<8x512xf32>
    %58 = arith.addf %56, %57 : vector<8x512xf32>
    %59 = vector.extract_strided_slice %53 {offsets = [0, 0], sizes = [8, 128], strides = [1, 1]} : vector<8x512xf32> to vector<8x128xf32>
    %cst_31 = arith.constant 5.000000e-01 : f32
    %60 = vector.broadcast %cst_31 : f32 to vector<8x128xf32>
    %61 = arith.mulf %60, %59 : vector<8x128xf32>
    %62 = math.tanh %61 : vector<8x128xf32>
    %cst_32 = arith.constant 5.000000e-01 : f32
    %63 = vector.broadcast %cst_32 : f32 to vector<8x128xf32>
    %64 = arith.mulf %63, %62 : vector<8x128xf32>
    %cst_33 = arith.constant 5.000000e-01 : f32
    %65 = vector.broadcast %cst_33 : f32 to vector<8x128xf32>
    %66 = arith.addf %64, %65 : vector<8x128xf32>
    %67 = vector.extract_strided_slice %53 {offsets = [0, 128], sizes = [8, 128], strides = [1, 1]} : vector<8x512xf32> to vector<8x128xf32>
    %cst_34 = arith.constant 5.000000e-01 : f32
    %68 = vector.broadcast %cst_34 : f32 to vector<8x128xf32>
    %69 = arith.mulf %68, %67 : vector<8x128xf32>
    %70 = math.tanh %69 : vector<8x128xf32>
    %cst_35 = arith.constant 5.000000e-01 : f32
    %71 = vector.broadcast %cst_35 : f32 to vector<8x128xf32>
    %72 = arith.mulf %71, %70 : vector<8x128xf32>
    %cst_36 = arith.constant 5.000000e-01 : f32
    %73 = vector.broadcast %cst_36 : f32 to vector<8x128xf32>
    %74 = arith.addf %72, %73 : vector<8x128xf32>
    %75 = vector.extract_strided_slice %53 {offsets = [0, 256], sizes = [8, 128], strides = [1, 1]} : vector<8x512xf32> to vector<8x128xf32>
    %76 = math.tanh %75 : vector<8x128xf32>
    %77 = vector.extract_strided_slice %53 {offsets = [0, 384], sizes = [8, 128], strides = [1, 1]} : vector<8x512xf32> to vector<8x128xf32>
    %cst_37 = arith.constant 5.000000e-01 : f32
    %78 = vector.broadcast %cst_37 : f32 to vector<8x128xf32>
    %79 = arith.mulf %78, %77 : vector<8x128xf32>
    %80 = math.tanh %79 : vector<8x128xf32>
    %cst_38 = arith.constant 5.000000e-01 : f32
    %81 = vector.broadcast %cst_38 : f32 to vector<8x128xf32>
    %82 = arith.mulf %81, %80 : vector<8x128xf32>
    %cst_39 = arith.constant 5.000000e-01 : f32
    %83 = vector.broadcast %cst_39 : f32 to vector<8x128xf32>
    %84 = arith.addf %82, %83 : vector<8x128xf32>
    %85 = arith.mulf %74, %45 : vector<8x128xf32>
    %86 = arith.mulf %66, %76 : vector<8x128xf32>
    %87 = arith.addf %85, %86 : vector<8x128xf32>
    %88 = math.tanh %87 : vector<8x128xf32>
    %89 = arith.mulf %84, %88 : vector<8x128xf32>
    %90 = vector.extract_strided_slice %58 {offsets = [0, 0], sizes = [8, 128], strides = [1, 1]} : vector<8x512xf32> to vector<8x128xf32>
    %cst_40 = arith.constant 5.000000e-01 : f32
    %91 = vector.broadcast %cst_40 : f32 to vector<8x128xf32>
    %92 = arith.mulf %91, %90 : vector<8x128xf32>
    %93 = math.tanh %92 : vector<8x128xf32>
    %cst_41 = arith.constant 5.000000e-01 : f32
    %94 = vector.broadcast %cst_41 : f32 to vector<8x128xf32>
    %95 = arith.mulf %94, %93 : vector<8x128xf32>
    %cst_42 = arith.constant 5.000000e-01 : f32
    %96 = vector.broadcast %cst_42 : f32 to vector<8x128xf32>
    %97 = arith.addf %95, %96 : vector<8x128xf32>
    %98 = vector.extract_strided_slice %58 {offsets = [0, 128], sizes = [8, 128], strides = [1, 1]} : vector<8x512xf32> to vector<8x128xf32>
    %cst_43 = arith.constant 5.000000e-01 : f32
    %99 = vector.broadcast %cst_43 : f32 to vector<8x128xf32>
    %100 = arith.mulf %99, %98 : vector<8x128xf32>
    %101 = math.tanh %100 : vector<8x128xf32>
    %cst_44 = arith.constant 5.000000e-01 : f32
    %102 = vector.broadcast %cst_44 : f32 to vector<8x128xf32>
    %103 = arith.mulf %102, %101 : vector<8x128xf32>
    %cst_45 = arith.constant 5.000000e-01 : f32
    %104 = vector.broadcast %cst_45 : f32 to vector<8x128xf32>
    %105 = arith.addf %103, %104 : vector<8x128xf32>
    %106 = vector.extract_strided_slice %58 {offsets = [0, 256], sizes = [8, 128], strides = [1, 1]} : vector<8x512xf32> to vector<8x128xf32>
    %107 = math.tanh %106 : vector<8x128xf32>
    %108 = vector.extract_strided_slice %58 {offsets = [0, 384], sizes = [8, 128], strides = [1, 1]} : vector<8x512xf32> to vector<8x128xf32>
    %cst_46 = arith.constant 5.000000e-01 : f32
    %109 = vector.broadcast %cst_46 : f32 to vector<8x128xf32>
    %110 = arith.mulf %109, %108 : vector<8x128xf32>
    %111 = math.tanh %110 : vector<8x128xf32>
    %cst_47 = arith.constant 5.000000e-01 : f32
    %112 = vector.broadcast %cst_47 : f32 to vector<8x128xf32>
    %113 = arith.mulf %112, %111 : vector<8x128xf32>
    %cst_48 = arith.constant 5.000000e-01 : f32
    %114 = vector.broadcast %cst_48 : f32 to vector<8x128xf32>
    %115 = arith.addf %113, %114 : vector<8x128xf32>
    %116 = arith.mulf %105, %14 : vector<8x128xf32>
    %117 = arith.mulf %97, %107 : vector<8x128xf32>
    %118 = arith.addf %116, %117 : vector<8x128xf32>
    %119 = math.tanh %118 : vector<8x128xf32>
    %120 = arith.mulf %115, %119 : vector<8x128xf32>
    %c2_i32 = arith.constant 2 : i32
    %121 = arith.index_cast %c2_i32 : i32 to index
    %c0_49 = arith.constant 0 : index
    %c0_50 = arith.constant 0 : index
    %122 = vector.load %arg10[%121, %c0_49, %c0_50] : memref<8x8x512xf32, #tpu.memory_space<vmem>>, vector<1x8x512xf32>
    %123 = vector.shape_cast %122 : vector<1x8x512xf32> to vector<8x512xf32>
    %124 = arith.truncf %89 : vector<8x128xf32> to vector<8x128xbf16>
    %cst_51 = arith.constant dense<0.000000e+00> : vector<8x512xf32>
    %125 = tpu.matmul %124, %11, %cst_51 {dimension_numbers = #tpu.dot_dimension_numbers<[1], [0], [0], [1], [0, 0, 1, 1], [], []>} : vector<8x128xbf16>, vector<128x512xbf16>, vector<8x512xf32> -> vector<8x512xf32>
    %126 = arith.addf %123, %125 : vector<8x512xf32>
    %127 = tpu.concatenate %89, %120 in 1 : vector<8x128xf32>, vector<8x128xf32> -> vector<8x256xf32>
    %128 = arith.truncf %127 : vector<8x256xf32> to vector<8x256xbf16>
    %cst_52 = arith.constant dense<0.000000e+00> : vector<8x512xf32>
    %129 = tpu.matmul %128, %12, %cst_52 {dimension_numbers = #tpu.dot_dimension_numbers<[1], [0], [0], [1], [0, 0, 1, 1], [], []>} : vector<8x256xbf16>, vector<256x512xbf16>, vector<8x512xf32> -> vector<8x512xf32>
    %130 = vector.broadcast %13 : vector<1x512xf32> to vector<8x512xf32>
    %131 = arith.addf %129, %130 : vector<8x512xf32>
    %132 = vector.extract_strided_slice %126 {offsets = [0, 0], sizes = [8, 128], strides = [1, 1]} : vector<8x512xf32> to vector<8x128xf32>
    %cst_53 = arith.constant 5.000000e-01 : f32
    %133 = vector.broadcast %cst_53 : f32 to vector<8x128xf32>
    %134 = arith.mulf %133, %132 : vector<8x128xf32>
    %135 = math.tanh %134 : vector<8x128xf32>
    %cst_54 = arith.constant 5.000000e-01 : f32
    %136 = vector.broadcast %cst_54 : f32 to vector<8x128xf32>
    %137 = arith.mulf %136, %135 : vector<8x128xf32>
    %cst_55 = arith.constant 5.000000e-01 : f32
    %138 = vector.broadcast %cst_55 : f32 to vector<8x128xf32>
    %139 = arith.addf %137, %138 : vector<8x128xf32>
    %140 = vector.extract_strided_slice %126 {offsets = [0, 128], sizes = [8, 128], strides = [1, 1]} : vector<8x512xf32> to vector<8x128xf32>
    %cst_56 = arith.constant 5.000000e-01 : f32
    %141 = vector.broadcast %cst_56 : f32 to vector<8x128xf32>
    %142 = arith.mulf %141, %140 : vector<8x128xf32>
    %143 = math.tanh %142 : vector<8x128xf32>
    %cst_57 = arith.constant 5.000000e-01 : f32
    %144 = vector.broadcast %cst_57 : f32 to vector<8x128xf32>
    %145 = arith.mulf %144, %143 : vector<8x128xf32>
    %cst_58 = arith.constant 5.000000e-01 : f32
    %146 = vector.broadcast %cst_58 : f32 to vector<8x128xf32>
    %147 = arith.addf %145, %146 : vector<8x128xf32>
    %148 = vector.extract_strided_slice %126 {offsets = [0, 256], sizes = [8, 128], strides = [1, 1]} : vector<8x512xf32> to vector<8x128xf32>
    %149 = math.tanh %148 : vector<8x128xf32>
    %150 = vector.extract_strided_slice %126 {offsets = [0, 384], sizes = [8, 128], strides = [1, 1]} : vector<8x512xf32> to vector<8x128xf32>
    %cst_59 = arith.constant 5.000000e-01 : f32
    %151 = vector.broadcast %cst_59 : f32 to vector<8x128xf32>
    %152 = arith.mulf %151, %150 : vector<8x128xf32>
    %153 = math.tanh %152 : vector<8x128xf32>
    %cst_60 = arith.constant 5.000000e-01 : f32
    %154 = vector.broadcast %cst_60 : f32 to vector<8x128xf32>
    %155 = arith.mulf %154, %153 : vector<8x128xf32>
    %cst_61 = arith.constant 5.000000e-01 : f32
    %156 = vector.broadcast %cst_61 : f32 to vector<8x128xf32>
    %157 = arith.addf %155, %156 : vector<8x128xf32>
    %158 = arith.mulf %147, %87 : vector<8x128xf32>
    %159 = arith.mulf %139, %149 : vector<8x128xf32>
    %160 = arith.addf %158, %159 : vector<8x128xf32>
    %161 = math.tanh %160 : vector<8x128xf32>
    %162 = arith.mulf %157, %161 : vector<8x128xf32>
    %163 = vector.extract_strided_slice %131 {offsets = [0, 0], sizes = [8, 128], strides = [1, 1]} : vector<8x512xf32> to vector<8x128xf32>
    %cst_62 = arith.constant 5.000000e-01 : f32
    %164 = vector.broadcast %cst_62 : f32 to vector<8x128xf32>
    %165 = arith.mulf %164, %163 : vector<8x128xf32>
    %166 = math.tanh %165 : vector<8x128xf32>
    %cst_63 = arith.constant 5.000000e-01 : f32
    %167 = vector.broadcast %cst_63 : f32 to vector<8x128xf32>
    %168 = arith.mulf %167, %166 : vector<8x128xf32>
    %cst_64 = arith.constant 5.000000e-01 : f32
    %169 = vector.broadcast %cst_64 : f32 to vector<8x128xf32>
    %170 = arith.addf %168, %169 : vector<8x128xf32>
    %171 = vector.extract_strided_slice %131 {offsets = [0, 128], sizes = [8, 128], strides = [1, 1]} : vector<8x512xf32> to vector<8x128xf32>
    %cst_65 = arith.constant 5.000000e-01 : f32
    %172 = vector.broadcast %cst_65 : f32 to vector<8x128xf32>
    %173 = arith.mulf %172, %171 : vector<8x128xf32>
    %174 = math.tanh %173 : vector<8x128xf32>
    %cst_66 = arith.constant 5.000000e-01 : f32
    %175 = vector.broadcast %cst_66 : f32 to vector<8x128xf32>
    %176 = arith.mulf %175, %174 : vector<8x128xf32>
    %cst_67 = arith.constant 5.000000e-01 : f32
    %177 = vector.broadcast %cst_67 : f32 to vector<8x128xf32>
    %178 = arith.addf %176, %177 : vector<8x128xf32>
    %179 = vector.extract_strided_slice %131 {offsets = [0, 256], sizes = [8, 128], strides = [1, 1]} : vector<8x512xf32> to vector<8x128xf32>
    %180 = math.tanh %179 : vector<8x128xf32>
    %181 = vector.extract_strided_slice %131 {offsets = [0, 384], sizes = [8, 128], strides = [1, 1]} : vector<8x512xf32> to vector<8x128xf32>
    %cst_68 = arith.constant 5.000000e-01 : f32
    %182 = vector.broadcast %cst_68 : f32 to vector<8x128xf32>
    %183 = arith.mulf %182, %181 : vector<8x128xf32>
    %184 = math.tanh %183 : vector<8x128xf32>
    %cst_69 = arith.constant 5.000000e-01 : f32
    %185 = vector.broadcast %cst_69 : f32 to vector<8x128xf32>
    %186 = arith.mulf %185, %184 : vector<8x128xf32>
    %cst_70 = arith.constant 5.000000e-01 : f32
    %187 = vector.broadcast %cst_70 : f32 to vector<8x128xf32>
    %188 = arith.addf %186, %187 : vector<8x128xf32>
    %189 = arith.mulf %178, %118 : vector<8x128xf32>
    %190 = arith.mulf %170, %180 : vector<8x128xf32>
    %191 = arith.addf %189, %190 : vector<8x128xf32>
    %192 = math.tanh %191 : vector<8x128xf32>
    %193 = arith.mulf %188, %192 : vector<8x128xf32>
    %c3_i32 = arith.constant 3 : i32
    %194 = arith.index_cast %c3_i32 : i32 to index
    %c0_71 = arith.constant 0 : index
    %c0_72 = arith.constant 0 : index
    %195 = vector.load %arg10[%194, %c0_71, %c0_72] : memref<8x8x512xf32, #tpu.memory_space<vmem>>, vector<1x8x512xf32>
    %196 = vector.shape_cast %195 : vector<1x8x512xf32> to vector<8x512xf32>
    %197 = arith.truncf %162 : vector<8x128xf32> to vector<8x128xbf16>
    %cst_73 = arith.constant dense<0.000000e+00> : vector<8x512xf32>
    %198 = tpu.matmul %197, %11, %cst_73 {dimension_numbers = #tpu.dot_dimension_numbers<[1], [0], [0], [1], [0, 0, 1, 1], [], []>} : vector<8x128xbf16>, vector<128x512xbf16>, vector<8x512xf32> -> vector<8x512xf32>
    %199 = arith.addf %196, %198 : vector<8x512xf32>
    %200 = tpu.concatenate %162, %193 in 1 : vector<8x128xf32>, vector<8x128xf32> -> vector<8x256xf32>
    %201 = arith.truncf %200 : vector<8x256xf32> to vector<8x256xbf16>
    %cst_74 = arith.constant dense<0.000000e+00> : vector<8x512xf32>
    %202 = tpu.matmul %201, %12, %cst_74 {dimension_numbers = #tpu.dot_dimension_numbers<[1], [0], [0], [1], [0, 0, 1, 1], [], []>} : vector<8x256xbf16>, vector<256x512xbf16>, vector<8x512xf32> -> vector<8x512xf32>
    %203 = vector.broadcast %13 : vector<1x512xf32> to vector<8x512xf32>
    %204 = arith.addf %202, %203 : vector<8x512xf32>
    %205 = vector.extract_strided_slice %199 {offsets = [0, 0], sizes = [8, 128], strides = [1, 1]} : vector<8x512xf32> to vector<8x128xf32>
    %cst_75 = arith.constant 5.000000e-01 : f32
    %206 = vector.broadcast %cst_75 : f32 to vector<8x128xf32>
    %207 = arith.mulf %206, %205 : vector<8x128xf32>
    %208 = math.tanh %207 : vector<8x128xf32>
    %cst_76 = arith.constant 5.000000e-01 : f32
    %209 = vector.broadcast %cst_76 : f32 to vector<8x128xf32>
    %210 = arith.mulf %209, %208 : vector<8x128xf32>
    %cst_77 = arith.constant 5.000000e-01 : f32
    %211 = vector.broadcast %cst_77 : f32 to vector<8x128xf32>
    %212 = arith.addf %210, %211 : vector<8x128xf32>
    %213 = vector.extract_strided_slice %199 {offsets = [0, 128], sizes = [8, 128], strides = [1, 1]} : vector<8x512xf32> to vector<8x128xf32>
    %cst_78 = arith.constant 5.000000e-01 : f32
    %214 = vector.broadcast %cst_78 : f32 to vector<8x128xf32>
    %215 = arith.mulf %214, %213 : vector<8x128xf32>
    %216 = math.tanh %215 : vector<8x128xf32>
    %cst_79 = arith.constant 5.000000e-01 : f32
    %217 = vector.broadcast %cst_79 : f32 to vector<8x128xf32>
    %218 = arith.mulf %217, %216 : vector<8x128xf32>
    %cst_80 = arith.constant 5.000000e-01 : f32
    %219 = vector.broadcast %cst_80 : f32 to vector<8x128xf32>
    %220 = arith.addf %218, %219 : vector<8x128xf32>
    %221 = vector.extract_strided_slice %199 {offsets = [0, 256], sizes = [8, 128], strides = [1, 1]} : vector<8x512xf32> to vector<8x128xf32>
    %222 = math.tanh %221 : vector<8x128xf32>
    %223 = vector.extract_strided_slice %199 {offsets = [0, 384], sizes = [8, 128], strides = [1, 1]} : vector<8x512xf32> to vector<8x128xf32>
    %cst_81 = arith.constant 5.000000e-01 : f32
    %224 = vector.broadcast %cst_81 : f32 to vector<8x128xf32>
    %225 = arith.mulf %224, %223 : vector<8x128xf32>
    %226 = math.tanh %225 : vector<8x128xf32>
    %cst_82 = arith.constant 5.000000e-01 : f32
    %227 = vector.broadcast %cst_82 : f32 to vector<8x128xf32>
    %228 = arith.mulf %227, %226 : vector<8x128xf32>
    %cst_83 = arith.constant 5.000000e-01 : f32
    %229 = vector.broadcast %cst_83 : f32 to vector<8x128xf32>
    %230 = arith.addf %228, %229 : vector<8x128xf32>
    %231 = arith.mulf %220, %160 : vector<8x128xf32>
    %232 = arith.mulf %212, %222 : vector<8x128xf32>
    %233 = arith.addf %231, %232 : vector<8x128xf32>
    %234 = math.tanh %233 : vector<8x128xf32>
    %235 = arith.mulf %230, %234 : vector<8x128xf32>
    %236 = vector.extract_strided_slice %204 {offsets = [0, 0], sizes = [8, 128], strides = [1, 1]} : vector<8x512xf32> to vector<8x128xf32>
    %cst_84 = arith.constant 5.000000e-01 : f32
    %237 = vector.broadcast %cst_84 : f32 to vector<8x128xf32>
    %238 = arith.mulf %237, %236 : vector<8x128xf32>
    %239 = math.tanh %238 : vector<8x128xf32>
    %cst_85 = arith.constant 5.000000e-01 : f32
    %240 = vector.broadcast %cst_85 : f32 to vector<8x128xf32>
    %241 = arith.mulf %240, %239 : vector<8x128xf32>
    %cst_86 = arith.constant 5.000000e-01 : f32
    %242 = vector.broadcast %cst_86 : f32 to vector<8x128xf32>
    %243 = arith.addf %241, %242 : vector<8x128xf32>
    %244 = vector.extract_strided_slice %204 {offsets = [0, 128], sizes = [8, 128], strides = [1, 1]} : vector<8x512xf32> to vector<8x128xf32>
    %cst_87 = arith.constant 5.000000e-01 : f32
    %245 = vector.broadcast %cst_87 : f32 to vector<8x128xf32>
    %246 = arith.mulf %245, %244 : vector<8x128xf32>
    %247 = math.tanh %246 : vector<8x128xf32>
    %cst_88 = arith.constant 5.000000e-01 : f32
    %248 = vector.broadcast %cst_88 : f32 to vector<8x128xf32>
    %249 = arith.mulf %248, %247 : vector<8x128xf32>
    %cst_89 = arith.constant 5.000000e-01 : f32
    %250 = vector.broadcast %cst_89 : f32 to vector<8x128xf32>
    %251 = arith.addf %249, %250 : vector<8x128xf32>
    %252 = vector.extract_strided_slice %204 {offsets = [0, 256], sizes = [8, 128], strides = [1, 1]} : vector<8x512xf32> to vector<8x128xf32>
    %253 = math.tanh %252 : vector<8x128xf32>
    %254 = vector.extract_strided_slice %204 {offsets = [0, 384], sizes = [8, 128], strides = [1, 1]} : vector<8x512xf32> to vector<8x128xf32>
    %cst_90 = arith.constant 5.000000e-01 : f32
    %255 = vector.broadcast %cst_90 : f32 to vector<8x128xf32>
    %256 = arith.mulf %255, %254 : vector<8x128xf32>
    %257 = math.tanh %256 : vector<8x128xf32>
    %cst_91 = arith.constant 5.000000e-01 : f32
    %258 = vector.broadcast %cst_91 : f32 to vector<8x128xf32>
    %259 = arith.mulf %258, %257 : vector<8x128xf32>
    %cst_92 = arith.constant 5.000000e-01 : f32
    %260 = vector.broadcast %cst_92 : f32 to vector<8x128xf32>
    %261 = arith.addf %259, %260 : vector<8x128xf32>
    %262 = arith.mulf %251, %191 : vector<8x128xf32>
    %263 = arith.mulf %243, %253 : vector<8x128xf32>
    %264 = arith.addf %262, %263 : vector<8x128xf32>
    %265 = math.tanh %264 : vector<8x128xf32>
    %266 = arith.mulf %261, %265 : vector<8x128xf32>
    %c4_i32 = arith.constant 4 : i32
    %267 = arith.index_cast %c4_i32 : i32 to index
    %c0_93 = arith.constant 0 : index
    %c0_94 = arith.constant 0 : index
    %268 = vector.load %arg10[%267, %c0_93, %c0_94] : memref<8x8x512xf32, #tpu.memory_space<vmem>>, vector<1x8x512xf32>
    %269 = vector.shape_cast %268 : vector<1x8x512xf32> to vector<8x512xf32>
    %270 = arith.truncf %235 : vector<8x128xf32> to vector<8x128xbf16>
    %cst_95 = arith.constant dense<0.000000e+00> : vector<8x512xf32>
    %271 = tpu.matmul %270, %11, %cst_95 {dimension_numbers = #tpu.dot_dimension_numbers<[1], [0], [0], [1], [0, 0, 1, 1], [], []>} : vector<8x128xbf16>, vector<128x512xbf16>, vector<8x512xf32> -> vector<8x512xf32>
    %272 = arith.addf %269, %271 : vector<8x512xf32>
    %273 = tpu.concatenate %235, %266 in 1 : vector<8x128xf32>, vector<8x128xf32> -> vector<8x256xf32>
    %274 = arith.truncf %273 : vector<8x256xf32> to vector<8x256xbf16>
    %cst_96 = arith.constant dense<0.000000e+00> : vector<8x512xf32>
    %275 = tpu.matmul %274, %12, %cst_96 {dimension_numbers = #tpu.dot_dimension_numbers<[1], [0], [0], [1], [0, 0, 1, 1], [], []>} : vector<8x256xbf16>, vector<256x512xbf16>, vector<8x512xf32> -> vector<8x512xf32>
    %276 = vector.broadcast %13 : vector<1x512xf32> to vector<8x512xf32>
    %277 = arith.addf %275, %276 : vector<8x512xf32>
    %278 = vector.extract_strided_slice %272 {offsets = [0, 0], sizes = [8, 128], strides = [1, 1]} : vector<8x512xf32> to vector<8x128xf32>
    %cst_97 = arith.constant 5.000000e-01 : f32
    %279 = vector.broadcast %cst_97 : f32 to vector<8x128xf32>
    %280 = arith.mulf %279, %278 : vector<8x128xf32>
    %281 = math.tanh %280 : vector<8x128xf32>
    %cst_98 = arith.constant 5.000000e-01 : f32
    %282 = vector.broadcast %cst_98 : f32 to vector<8x128xf32>
    %283 = arith.mulf %282, %281 : vector<8x128xf32>
    %cst_99 = arith.constant 5.000000e-01 : f32
    %284 = vector.broadcast %cst_99 : f32 to vector<8x128xf32>
    %285 = arith.addf %283, %284 : vector<8x128xf32>
    %286 = vector.extract_strided_slice %272 {offsets = [0, 128], sizes = [8, 128], strides = [1, 1]} : vector<8x512xf32> to vector<8x128xf32>
    %cst_100 = arith.constant 5.000000e-01 : f32
    %287 = vector.broadcast %cst_100 : f32 to vector<8x128xf32>
    %288 = arith.mulf %287, %286 : vector<8x128xf32>
    %289 = math.tanh %288 : vector<8x128xf32>
    %cst_101 = arith.constant 5.000000e-01 : f32
    %290 = vector.broadcast %cst_101 : f32 to vector<8x128xf32>
    %291 = arith.mulf %290, %289 : vector<8x128xf32>
    %cst_102 = arith.constant 5.000000e-01 : f32
    %292 = vector.broadcast %cst_102 : f32 to vector<8x128xf32>
    %293 = arith.addf %291, %292 : vector<8x128xf32>
    %294 = vector.extract_strided_slice %272 {offsets = [0, 256], sizes = [8, 128], strides = [1, 1]} : vector<8x512xf32> to vector<8x128xf32>
    %295 = math.tanh %294 : vector<8x128xf32>
    %296 = vector.extract_strided_slice %272 {offsets = [0, 384], sizes = [8, 128], strides = [1, 1]} : vector<8x512xf32> to vector<8x128xf32>
    %cst_103 = arith.constant 5.000000e-01 : f32
    %297 = vector.broadcast %cst_103 : f32 to vector<8x128xf32>
    %298 = arith.mulf %297, %296 : vector<8x128xf32>
    %299 = math.tanh %298 : vector<8x128xf32>
    %cst_104 = arith.constant 5.000000e-01 : f32
    %300 = vector.broadcast %cst_104 : f32 to vector<8x128xf32>
    %301 = arith.mulf %300, %299 : vector<8x128xf32>
    %cst_105 = arith.constant 5.000000e-01 : f32
    %302 = vector.broadcast %cst_105 : f32 to vector<8x128xf32>
    %303 = arith.addf %301, %302 : vector<8x128xf32>
    %304 = arith.mulf %293, %233 : vector<8x128xf32>
    %305 = arith.mulf %285, %295 : vector<8x128xf32>
    %306 = arith.addf %304, %305 : vector<8x128xf32>
    %307 = math.tanh %306 : vector<8x128xf32>
    %308 = arith.mulf %303, %307 : vector<8x128xf32>
    %309 = vector.extract_strided_slice %277 {offsets = [0, 0], sizes = [8, 128], strides = [1, 1]} : vector<8x512xf32> to vector<8x128xf32>
    %cst_106 = arith.constant 5.000000e-01 : f32
    %310 = vector.broadcast %cst_106 : f32 to vector<8x128xf32>
    %311 = arith.mulf %310, %309 : vector<8x128xf32>
    %312 = math.tanh %311 : vector<8x128xf32>
    %cst_107 = arith.constant 5.000000e-01 : f32
    %313 = vector.broadcast %cst_107 : f32 to vector<8x128xf32>
    %314 = arith.mulf %313, %312 : vector<8x128xf32>
    %cst_108 = arith.constant 5.000000e-01 : f32
    %315 = vector.broadcast %cst_108 : f32 to vector<8x128xf32>
    %316 = arith.addf %314, %315 : vector<8x128xf32>
    %317 = vector.extract_strided_slice %277 {offsets = [0, 128], sizes = [8, 128], strides = [1, 1]} : vector<8x512xf32> to vector<8x128xf32>
    %cst_109 = arith.constant 5.000000e-01 : f32
    %318 = vector.broadcast %cst_109 : f32 to vector<8x128xf32>
    %319 = arith.mulf %318, %317 : vector<8x128xf32>
    %320 = math.tanh %319 : vector<8x128xf32>
    %cst_110 = arith.constant 5.000000e-01 : f32
    %321 = vector.broadcast %cst_110 : f32 to vector<8x128xf32>
    %322 = arith.mulf %321, %320 : vector<8x128xf32>
    %cst_111 = arith.constant 5.000000e-01 : f32
    %323 = vector.broadcast %cst_111 : f32 to vector<8x128xf32>
    %324 = arith.addf %322, %323 : vector<8x128xf32>
    %325 = vector.extract_strided_slice %277 {offsets = [0, 256], sizes = [8, 128], strides = [1, 1]} : vector<8x512xf32> to vector<8x128xf32>
    %326 = math.tanh %325 : vector<8x128xf32>
    %327 = vector.extract_strided_slice %277 {offsets = [0, 384], sizes = [8, 128], strides = [1, 1]} : vector<8x512xf32> to vector<8x128xf32>
    %cst_112 = arith.constant 5.000000e-01 : f32
    %328 = vector.broadcast %cst_112 : f32 to vector<8x128xf32>
    %329 = arith.mulf %328, %327 : vector<8x128xf32>
    %330 = math.tanh %329 : vector<8x128xf32>
    %cst_113 = arith.constant 5.000000e-01 : f32
    %331 = vector.broadcast %cst_113 : f32 to vector<8x128xf32>
    %332 = arith.mulf %331, %330 : vector<8x128xf32>
    %cst_114 = arith.constant 5.000000e-01 : f32
    %333 = vector.broadcast %cst_114 : f32 to vector<8x128xf32>
    %334 = arith.addf %332, %333 : vector<8x128xf32>
    %335 = arith.mulf %324, %264 : vector<8x128xf32>
    %336 = arith.mulf %316, %326 : vector<8x128xf32>
    %337 = arith.addf %335, %336 : vector<8x128xf32>
    %338 = math.tanh %337 : vector<8x128xf32>
    %339 = arith.mulf %334, %338 : vector<8x128xf32>
    %c5_i32 = arith.constant 5 : i32
    %340 = arith.index_cast %c5_i32 : i32 to index
    %c0_115 = arith.constant 0 : index
    %c0_116 = arith.constant 0 : index
    %341 = vector.load %arg10[%340, %c0_115, %c0_116] : memref<8x8x512xf32, #tpu.memory_space<vmem>>, vector<1x8x512xf32>
    %342 = vector.shape_cast %341 : vector<1x8x512xf32> to vector<8x512xf32>
    %343 = arith.truncf %308 : vector<8x128xf32> to vector<8x128xbf16>
    %cst_117 = arith.constant dense<0.000000e+00> : vector<8x512xf32>
    %344 = tpu.matmul %343, %11, %cst_117 {dimension_numbers = #tpu.dot_dimension_numbers<[1], [0], [0], [1], [0, 0, 1, 1], [], []>} : vector<8x128xbf16>, vector<128x512xbf16>, vector<8x512xf32> -> vector<8x512xf32>
    %345 = arith.addf %342, %344 : vector<8x512xf32>
    %346 = tpu.concatenate %308, %339 in 1 : vector<8x128xf32>, vector<8x128xf32> -> vector<8x256xf32>
    %347 = arith.truncf %346 : vector<8x256xf32> to vector<8x256xbf16>
    %cst_118 = arith.constant dense<0.000000e+00> : vector<8x512xf32>
    %348 = tpu.matmul %347, %12, %cst_118 {dimension_numbers = #tpu.dot_dimension_numbers<[1], [0], [0], [1], [0, 0, 1, 1], [], []>} : vector<8x256xbf16>, vector<256x512xbf16>, vector<8x512xf32> -> vector<8x512xf32>
    %349 = vector.broadcast %13 : vector<1x512xf32> to vector<8x512xf32>
    %350 = arith.addf %348, %349 : vector<8x512xf32>
    %351 = vector.extract_strided_slice %345 {offsets = [0, 0], sizes = [8, 128], strides = [1, 1]} : vector<8x512xf32> to vector<8x128xf32>
    %cst_119 = arith.constant 5.000000e-01 : f32
    %352 = vector.broadcast %cst_119 : f32 to vector<8x128xf32>
    %353 = arith.mulf %352, %351 : vector<8x128xf32>
    %354 = math.tanh %353 : vector<8x128xf32>
    %cst_120 = arith.constant 5.000000e-01 : f32
    %355 = vector.broadcast %cst_120 : f32 to vector<8x128xf32>
    %356 = arith.mulf %355, %354 : vector<8x128xf32>
    %cst_121 = arith.constant 5.000000e-01 : f32
    %357 = vector.broadcast %cst_121 : f32 to vector<8x128xf32>
    %358 = arith.addf %356, %357 : vector<8x128xf32>
    %359 = vector.extract_strided_slice %345 {offsets = [0, 128], sizes = [8, 128], strides = [1, 1]} : vector<8x512xf32> to vector<8x128xf32>
    %cst_122 = arith.constant 5.000000e-01 : f32
    %360 = vector.broadcast %cst_122 : f32 to vector<8x128xf32>
    %361 = arith.mulf %360, %359 : vector<8x128xf32>
    %362 = math.tanh %361 : vector<8x128xf32>
    %cst_123 = arith.constant 5.000000e-01 : f32
    %363 = vector.broadcast %cst_123 : f32 to vector<8x128xf32>
    %364 = arith.mulf %363, %362 : vector<8x128xf32>
    %cst_124 = arith.constant 5.000000e-01 : f32
    %365 = vector.broadcast %cst_124 : f32 to vector<8x128xf32>
    %366 = arith.addf %364, %365 : vector<8x128xf32>
    %367 = vector.extract_strided_slice %345 {offsets = [0, 256], sizes = [8, 128], strides = [1, 1]} : vector<8x512xf32> to vector<8x128xf32>
    %368 = math.tanh %367 : vector<8x128xf32>
    %369 = vector.extract_strided_slice %345 {offsets = [0, 384], sizes = [8, 128], strides = [1, 1]} : vector<8x512xf32> to vector<8x128xf32>
    %cst_125 = arith.constant 5.000000e-01 : f32
    %370 = vector.broadcast %cst_125 : f32 to vector<8x128xf32>
    %371 = arith.mulf %370, %369 : vector<8x128xf32>
    %372 = math.tanh %371 : vector<8x128xf32>
    %cst_126 = arith.constant 5.000000e-01 : f32
    %373 = vector.broadcast %cst_126 : f32 to vector<8x128xf32>
    %374 = arith.mulf %373, %372 : vector<8x128xf32>
    %cst_127 = arith.constant 5.000000e-01 : f32
    %375 = vector.broadcast %cst_127 : f32 to vector<8x128xf32>
    %376 = arith.addf %374, %375 : vector<8x128xf32>
    %377 = arith.mulf %366, %306 : vector<8x128xf32>
    %378 = arith.mulf %358, %368 : vector<8x128xf32>
    %379 = arith.addf %377, %378 : vector<8x128xf32>
    %380 = math.tanh %379 : vector<8x128xf32>
    %381 = arith.mulf %376, %380 : vector<8x128xf32>
    %382 = vector.extract_strided_slice %350 {offsets = [0, 0], sizes = [8, 128], strides = [1, 1]} : vector<8x512xf32> to vector<8x128xf32>
    %cst_128 = arith.constant 5.000000e-01 : f32
    %383 = vector.broadcast %cst_128 : f32 to vector<8x128xf32>
    %384 = arith.mulf %383, %382 : vector<8x128xf32>
    %385 = math.tanh %384 : vector<8x128xf32>
    %cst_129 = arith.constant 5.000000e-01 : f32
    %386 = vector.broadcast %cst_129 : f32 to vector<8x128xf32>
    %387 = arith.mulf %386, %385 : vector<8x128xf32>
    %cst_130 = arith.constant 5.000000e-01 : f32
    %388 = vector.broadcast %cst_130 : f32 to vector<8x128xf32>
    %389 = arith.addf %387, %388 : vector<8x128xf32>
    %390 = vector.extract_strided_slice %350 {offsets = [0, 128], sizes = [8, 128], strides = [1, 1]} : vector<8x512xf32> to vector<8x128xf32>
    %cst_131 = arith.constant 5.000000e-01 : f32
    %391 = vector.broadcast %cst_131 : f32 to vector<8x128xf32>
    %392 = arith.mulf %391, %390 : vector<8x128xf32>
    %393 = math.tanh %392 : vector<8x128xf32>
    %cst_132 = arith.constant 5.000000e-01 : f32
    %394 = vector.broadcast %cst_132 : f32 to vector<8x128xf32>
    %395 = arith.mulf %394, %393 : vector<8x128xf32>
    %cst_133 = arith.constant 5.000000e-01 : f32
    %396 = vector.broadcast %cst_133 : f32 to vector<8x128xf32>
    %397 = arith.addf %395, %396 : vector<8x128xf32>
    %398 = vector.extract_strided_slice %350 {offsets = [0, 256], sizes = [8, 128], strides = [1, 1]} : vector<8x512xf32> to vector<8x128xf32>
    %399 = math.tanh %398 : vector<8x128xf32>
    %400 = vector.extract_strided_slice %350 {offsets = [0, 384], sizes = [8, 128], strides = [1, 1]} : vector<8x512xf32> to vector<8x128xf32>
    %cst_134 = arith.constant 5.000000e-01 : f32
    %401 = vector.broadcast %cst_134 : f32 to vector<8x128xf32>
    %402 = arith.mulf %401, %400 : vector<8x128xf32>
    %403 = math.tanh %402 : vector<8x128xf32>
    %cst_135 = arith.constant 5.000000e-01 : f32
    %404 = vector.broadcast %cst_135 : f32 to vector<8x128xf32>
    %405 = arith.mulf %404, %403 : vector<8x128xf32>
    %cst_136 = arith.constant 5.000000e-01 : f32
    %406 = vector.broadcast %cst_136 : f32 to vector<8x128xf32>
    %407 = arith.addf %405, %406 : vector<8x128xf32>
    %408 = arith.mulf %397, %337 : vector<8x128xf32>
    %409 = arith.mulf %389, %399 : vector<8x128xf32>
    %410 = arith.addf %408, %409 : vector<8x128xf32>
    %411 = math.tanh %410 : vector<8x128xf32>
    %412 = arith.mulf %407, %411 : vector<8x128xf32>
    %c6_i32 = arith.constant 6 : i32
    %413 = arith.index_cast %c6_i32 : i32 to index
    %c0_137 = arith.constant 0 : index
    %c0_138 = arith.constant 0 : index
    %414 = vector.load %arg10[%413, %c0_137, %c0_138] : memref<8x8x512xf32, #tpu.memory_space<vmem>>, vector<1x8x512xf32>
    %415 = vector.shape_cast %414 : vector<1x8x512xf32> to vector<8x512xf32>
    %416 = arith.truncf %381 : vector<8x128xf32> to vector<8x128xbf16>
    %cst_139 = arith.constant dense<0.000000e+00> : vector<8x512xf32>
    %417 = tpu.matmul %416, %11, %cst_139 {dimension_numbers = #tpu.dot_dimension_numbers<[1], [0], [0], [1], [0, 0, 1, 1], [], []>} : vector<8x128xbf16>, vector<128x512xbf16>, vector<8x512xf32> -> vector<8x512xf32>
    %418 = arith.addf %415, %417 : vector<8x512xf32>
    %419 = tpu.concatenate %381, %412 in 1 : vector<8x128xf32>, vector<8x128xf32> -> vector<8x256xf32>
    %420 = arith.truncf %419 : vector<8x256xf32> to vector<8x256xbf16>
    %cst_140 = arith.constant dense<0.000000e+00> : vector<8x512xf32>
    %421 = tpu.matmul %420, %12, %cst_140 {dimension_numbers = #tpu.dot_dimension_numbers<[1], [0], [0], [1], [0, 0, 1, 1], [], []>} : vector<8x256xbf16>, vector<256x512xbf16>, vector<8x512xf32> -> vector<8x512xf32>
    %422 = vector.broadcast %13 : vector<1x512xf32> to vector<8x512xf32>
    %423 = arith.addf %421, %422 : vector<8x512xf32>
    %424 = vector.extract_strided_slice %418 {offsets = [0, 0], sizes = [8, 128], strides = [1, 1]} : vector<8x512xf32> to vector<8x128xf32>
    %cst_141 = arith.constant 5.000000e-01 : f32
    %425 = vector.broadcast %cst_141 : f32 to vector<8x128xf32>
    %426 = arith.mulf %425, %424 : vector<8x128xf32>
    %427 = math.tanh %426 : vector<8x128xf32>
    %cst_142 = arith.constant 5.000000e-01 : f32
    %428 = vector.broadcast %cst_142 : f32 to vector<8x128xf32>
    %429 = arith.mulf %428, %427 : vector<8x128xf32>
    %cst_143 = arith.constant 5.000000e-01 : f32
    %430 = vector.broadcast %cst_143 : f32 to vector<8x128xf32>
    %431 = arith.addf %429, %430 : vector<8x128xf32>
    %432 = vector.extract_strided_slice %418 {offsets = [0, 128], sizes = [8, 128], strides = [1, 1]} : vector<8x512xf32> to vector<8x128xf32>
    %cst_144 = arith.constant 5.000000e-01 : f32
    %433 = vector.broadcast %cst_144 : f32 to vector<8x128xf32>
    %434 = arith.mulf %433, %432 : vector<8x128xf32>
    %435 = math.tanh %434 : vector<8x128xf32>
    %cst_145 = arith.constant 5.000000e-01 : f32
    %436 = vector.broadcast %cst_145 : f32 to vector<8x128xf32>
    %437 = arith.mulf %436, %435 : vector<8x128xf32>
    %cst_146 = arith.constant 5.000000e-01 : f32
    %438 = vector.broadcast %cst_146 : f32 to vector<8x128xf32>
    %439 = arith.addf %437, %438 : vector<8x128xf32>
    %440 = vector.extract_strided_slice %418 {offsets = [0, 256], sizes = [8, 128], strides = [1, 1]} : vector<8x512xf32> to vector<8x128xf32>
    %441 = math.tanh %440 : vector<8x128xf32>
    %442 = vector.extract_strided_slice %418 {offsets = [0, 384], sizes = [8, 128], strides = [1, 1]} : vector<8x512xf32> to vector<8x128xf32>
    %cst_147 = arith.constant 5.000000e-01 : f32
    %443 = vector.broadcast %cst_147 : f32 to vector<8x128xf32>
    %444 = arith.mulf %443, %442 : vector<8x128xf32>
    %445 = math.tanh %444 : vector<8x128xf32>
    %cst_148 = arith.constant 5.000000e-01 : f32
    %446 = vector.broadcast %cst_148 : f32 to vector<8x128xf32>
    %447 = arith.mulf %446, %445 : vector<8x128xf32>
    %cst_149 = arith.constant 5.000000e-01 : f32
    %448 = vector.broadcast %cst_149 : f32 to vector<8x128xf32>
    %449 = arith.addf %447, %448 : vector<8x128xf32>
    %450 = arith.mulf %439, %379 : vector<8x128xf32>
    %451 = arith.mulf %431, %441 : vector<8x128xf32>
    %452 = arith.addf %450, %451 : vector<8x128xf32>
    %453 = math.tanh %452 : vector<8x128xf32>
    %454 = arith.mulf %449, %453 : vector<8x128xf32>
    %455 = vector.extract_strided_slice %423 {offsets = [0, 0], sizes = [8, 128], strides = [1, 1]} : vector<8x512xf32> to vector<8x128xf32>
    %cst_150 = arith.constant 5.000000e-01 : f32
    %456 = vector.broadcast %cst_150 : f32 to vector<8x128xf32>
    %457 = arith.mulf %456, %455 : vector<8x128xf32>
    %458 = math.tanh %457 : vector<8x128xf32>
    %cst_151 = arith.constant 5.000000e-01 : f32
    %459 = vector.broadcast %cst_151 : f32 to vector<8x128xf32>
    %460 = arith.mulf %459, %458 : vector<8x128xf32>
    %cst_152 = arith.constant 5.000000e-01 : f32
    %461 = vector.broadcast %cst_152 : f32 to vector<8x128xf32>
    %462 = arith.addf %460, %461 : vector<8x128xf32>
    %463 = vector.extract_strided_slice %423 {offsets = [0, 128], sizes = [8, 128], strides = [1, 1]} : vector<8x512xf32> to vector<8x128xf32>
    %cst_153 = arith.constant 5.000000e-01 : f32
    %464 = vector.broadcast %cst_153 : f32 to vector<8x128xf32>
    %465 = arith.mulf %464, %463 : vector<8x128xf32>
    %466 = math.tanh %465 : vector<8x128xf32>
    %cst_154 = arith.constant 5.000000e-01 : f32
    %467 = vector.broadcast %cst_154 : f32 to vector<8x128xf32>
    %468 = arith.mulf %467, %466 : vector<8x128xf32>
    %cst_155 = arith.constant 5.000000e-01 : f32
    %469 = vector.broadcast %cst_155 : f32 to vector<8x128xf32>
    %470 = arith.addf %468, %469 : vector<8x128xf32>
    %471 = vector.extract_strided_slice %423 {offsets = [0, 256], sizes = [8, 128], strides = [1, 1]} : vector<8x512xf32> to vector<8x128xf32>
    %472 = math.tanh %471 : vector<8x128xf32>
    %473 = vector.extract_strided_slice %423 {offsets = [0, 384], sizes = [8, 128], strides = [1, 1]} : vector<8x512xf32> to vector<8x128xf32>
    %cst_156 = arith.constant 5.000000e-01 : f32
    %474 = vector.broadcast %cst_156 : f32 to vector<8x128xf32>
    %475 = arith.mulf %474, %473 : vector<8x128xf32>
    %476 = math.tanh %475 : vector<8x128xf32>
    %cst_157 = arith.constant 5.000000e-01 : f32
    %477 = vector.broadcast %cst_157 : f32 to vector<8x128xf32>
    %478 = arith.mulf %477, %476 : vector<8x128xf32>
    %cst_158 = arith.constant 5.000000e-01 : f32
    %479 = vector.broadcast %cst_158 : f32 to vector<8x128xf32>
    %480 = arith.addf %478, %479 : vector<8x128xf32>
    %481 = arith.mulf %470, %410 : vector<8x128xf32>
    %482 = arith.mulf %462, %472 : vector<8x128xf32>
    %483 = arith.addf %481, %482 : vector<8x128xf32>
    %484 = math.tanh %483 : vector<8x128xf32>
    %485 = arith.mulf %480, %484 : vector<8x128xf32>
    %c7_i32 = arith.constant 7 : i32
    %486 = arith.index_cast %c7_i32 : i32 to index
    %c0_159 = arith.constant 0 : index
    %c0_160 = arith.constant 0 : index
    %487 = vector.load %arg10[%486, %c0_159, %c0_160] : memref<8x8x512xf32, #tpu.memory_space<vmem>>, vector<1x8x512xf32>
    %488 = vector.shape_cast %487 : vector<1x8x512xf32> to vector<8x512xf32>
    %489 = arith.truncf %454 : vector<8x128xf32> to vector<8x128xbf16>
    %cst_161 = arith.constant dense<0.000000e+00> : vector<8x512xf32>
    %490 = tpu.matmul %489, %11, %cst_161 {dimension_numbers = #tpu.dot_dimension_numbers<[1], [0], [0], [1], [0, 0, 1, 1], [], []>} : vector<8x128xbf16>, vector<128x512xbf16>, vector<8x512xf32> -> vector<8x512xf32>
    %491 = arith.addf %488, %490 : vector<8x512xf32>
    %492 = tpu.concatenate %454, %485 in 1 : vector<8x128xf32>, vector<8x128xf32> -> vector<8x256xf32>
    %493 = arith.truncf %492 : vector<8x256xf32> to vector<8x256xbf16>
    %cst_162 = arith.constant dense<0.000000e+00> : vector<8x512xf32>
    %494 = tpu.matmul %493, %12, %cst_162 {dimension_numbers = #tpu.dot_dimension_numbers<[1], [0], [0], [1], [0, 0, 1, 1], [], []>} : vector<8x256xbf16>, vector<256x512xbf16>, vector<8x512xf32> -> vector<8x512xf32>
    %495 = vector.broadcast %13 : vector<1x512xf32> to vector<8x512xf32>
    %496 = arith.addf %494, %495 : vector<8x512xf32>
    %497 = vector.extract_strided_slice %491 {offsets = [0, 0], sizes = [8, 128], strides = [1, 1]} : vector<8x512xf32> to vector<8x128xf32>
    %cst_163 = arith.constant 5.000000e-01 : f32
    %498 = vector.broadcast %cst_163 : f32 to vector<8x128xf32>
    %499 = arith.mulf %498, %497 : vector<8x128xf32>
    %500 = math.tanh %499 : vector<8x128xf32>
    %cst_164 = arith.constant 5.000000e-01 : f32
    %501 = vector.broadcast %cst_164 : f32 to vector<8x128xf32>
    %502 = arith.mulf %501, %500 : vector<8x128xf32>
    %cst_165 = arith.constant 5.000000e-01 : f32
    %503 = vector.broadcast %cst_165 : f32 to vector<8x128xf32>
    %504 = arith.addf %502, %503 : vector<8x128xf32>
    %505 = vector.extract_strided_slice %491 {offsets = [0, 128], sizes = [8, 128], strides = [1, 1]} : vector<8x512xf32> to vector<8x128xf32>
    %cst_166 = arith.constant 5.000000e-01 : f32
    %506 = vector.broadcast %cst_166 : f32 to vector<8x128xf32>
    %507 = arith.mulf %506, %505 : vector<8x128xf32>
    %508 = math.tanh %507 : vector<8x128xf32>
    %cst_167 = arith.constant 5.000000e-01 : f32
    %509 = vector.broadcast %cst_167 : f32 to vector<8x128xf32>
    %510 = arith.mulf %509, %508 : vector<8x128xf32>
    %cst_168 = arith.constant 5.000000e-01 : f32
    %511 = vector.broadcast %cst_168 : f32 to vector<8x128xf32>
    %512 = arith.addf %510, %511 : vector<8x128xf32>
    %513 = vector.extract_strided_slice %491 {offsets = [0, 256], sizes = [8, 128], strides = [1, 1]} : vector<8x512xf32> to vector<8x128xf32>
    %514 = math.tanh %513 : vector<8x128xf32>
    %515 = vector.extract_strided_slice %491 {offsets = [0, 384], sizes = [8, 128], strides = [1, 1]} : vector<8x512xf32> to vector<8x128xf32>
    %cst_169 = arith.constant 5.000000e-01 : f32
    %516 = vector.broadcast %cst_169 : f32 to vector<8x128xf32>
    %517 = arith.mulf %516, %515 : vector<8x128xf32>
    %518 = math.tanh %517 : vector<8x128xf32>
    %cst_170 = arith.constant 5.000000e-01 : f32
    %519 = vector.broadcast %cst_170 : f32 to vector<8x128xf32>
    %520 = arith.mulf %519, %518 : vector<8x128xf32>
    %cst_171 = arith.constant 5.000000e-01 : f32
    %521 = vector.broadcast %cst_171 : f32 to vector<8x128xf32>
    %522 = arith.addf %520, %521 : vector<8x128xf32>
    %523 = arith.mulf %512, %452 : vector<8x128xf32>
    %524 = arith.mulf %504, %514 : vector<8x128xf32>
    %525 = arith.addf %523, %524 : vector<8x128xf32>
    %526 = math.tanh %525 : vector<8x128xf32>
    %527 = arith.mulf %522, %526 : vector<8x128xf32>
    %528 = vector.extract_strided_slice %496 {offsets = [0, 0], sizes = [8, 128], strides = [1, 1]} : vector<8x512xf32> to vector<8x128xf32>
    %cst_172 = arith.constant 5.000000e-01 : f32
    %529 = vector.broadcast %cst_172 : f32 to vector<8x128xf32>
    %530 = arith.mulf %529, %528 : vector<8x128xf32>
    %531 = math.tanh %530 : vector<8x128xf32>
    %cst_173 = arith.constant 5.000000e-01 : f32
    %532 = vector.broadcast %cst_173 : f32 to vector<8x128xf32>
    %533 = arith.mulf %532, %531 : vector<8x128xf32>
    %cst_174 = arith.constant 5.000000e-01 : f32
    %534 = vector.broadcast %cst_174 : f32 to vector<8x128xf32>
    %535 = arith.addf %533, %534 : vector<8x128xf32>
    %536 = vector.extract_strided_slice %496 {offsets = [0, 128], sizes = [8, 128], strides = [1, 1]} : vector<8x512xf32> to vector<8x128xf32>
    %cst_175 = arith.constant 5.000000e-01 : f32
    %537 = vector.broadcast %cst_175 : f32 to vector<8x128xf32>
    %538 = arith.mulf %537, %536 : vector<8x128xf32>
    %539 = math.tanh %538 : vector<8x128xf32>
    %cst_176 = arith.constant 5.000000e-01 : f32
    %540 = vector.broadcast %cst_176 : f32 to vector<8x128xf32>
    %541 = arith.mulf %540, %539 : vector<8x128xf32>
    %cst_177 = arith.constant 5.000000e-01 : f32
    %542 = vector.broadcast %cst_177 : f32 to vector<8x128xf32>
    %543 = arith.addf %541, %542 : vector<8x128xf32>
    %544 = vector.extract_strided_slice %496 {offsets = [0, 256], sizes = [8, 128], strides = [1, 1]} : vector<8x512xf32> to vector<8x128xf32>
    %545 = math.tanh %544 : vector<8x128xf32>
    %546 = vector.extract_strided_slice %496 {offsets = [0, 384], sizes = [8, 128], strides = [1, 1]} : vector<8x512xf32> to vector<8x128xf32>
    %cst_178 = arith.constant 5.000000e-01 : f32
    %547 = vector.broadcast %cst_178 : f32 to vector<8x128xf32>
    %548 = arith.mulf %547, %546 : vector<8x128xf32>
    %549 = math.tanh %548 : vector<8x128xf32>
    %cst_179 = arith.constant 5.000000e-01 : f32
    %550 = vector.broadcast %cst_179 : f32 to vector<8x128xf32>
    %551 = arith.mulf %550, %549 : vector<8x128xf32>
    %cst_180 = arith.constant 5.000000e-01 : f32
    %552 = vector.broadcast %cst_180 : f32 to vector<8x128xf32>
    %553 = arith.addf %551, %552 : vector<8x128xf32>
    %554 = arith.mulf %543, %483 : vector<8x128xf32>
    %555 = arith.mulf %535, %545 : vector<8x128xf32>
    %556 = arith.addf %554, %555 : vector<8x128xf32>
    %557 = math.tanh %556 : vector<8x128xf32>
    %558 = arith.mulf %553, %557 : vector<8x128xf32>
    %c7_i32_181 = arith.constant 7 : i32
    %559 = tpu.concatenate %527, %558 in 1 : vector<8x128xf32>, vector<8x128xf32> -> vector<8x256xf32>
    %560 = arith.truncf %559 : vector<8x256xf32> to vector<8x256xbf16>
    %cst_182 = arith.constant dense<0.000000e+00> : vector<8x512xf32>
    %561 = tpu.matmul %560, %12, %cst_182 {dimension_numbers = #tpu.dot_dimension_numbers<[1], [0], [0], [1], [0, 0, 1, 1], [], []>} : vector<8x256xbf16>, vector<256x512xbf16>, vector<8x512xf32> -> vector<8x512xf32>
    %562 = vector.broadcast %13 : vector<1x512xf32> to vector<8x512xf32>
    %563 = arith.addf %561, %562 : vector<8x512xf32>
    %564 = vector.extract_strided_slice %563 {offsets = [0, 0], sizes = [8, 128], strides = [1, 1]} : vector<8x512xf32> to vector<8x128xf32>
    %cst_183 = arith.constant 5.000000e-01 : f32
    %565 = vector.broadcast %cst_183 : f32 to vector<8x128xf32>
    %566 = arith.mulf %565, %564 : vector<8x128xf32>
    %567 = math.tanh %566 : vector<8x128xf32>
    %cst_184 = arith.constant 5.000000e-01 : f32
    %568 = vector.broadcast %cst_184 : f32 to vector<8x128xf32>
    %569 = arith.mulf %568, %567 : vector<8x128xf32>
    %cst_185 = arith.constant 5.000000e-01 : f32
    %570 = vector.broadcast %cst_185 : f32 to vector<8x128xf32>
    %571 = arith.addf %569, %570 : vector<8x128xf32>
    %572 = vector.extract_strided_slice %563 {offsets = [0, 128], sizes = [8, 128], strides = [1, 1]} : vector<8x512xf32> to vector<8x128xf32>
    %cst_186 = arith.constant 5.000000e-01 : f32
    %573 = vector.broadcast %cst_186 : f32 to vector<8x128xf32>
    %574 = arith.mulf %573, %572 : vector<8x128xf32>
    %575 = math.tanh %574 : vector<8x128xf32>
    %cst_187 = arith.constant 5.000000e-01 : f32
    %576 = vector.broadcast %cst_187 : f32 to vector<8x128xf32>
    %577 = arith.mulf %576, %575 : vector<8x128xf32>
    %cst_188 = arith.constant 5.000000e-01 : f32
    %578 = vector.broadcast %cst_188 : f32 to vector<8x128xf32>
    %579 = arith.addf %577, %578 : vector<8x128xf32>
    %580 = vector.extract_strided_slice %563 {offsets = [0, 256], sizes = [8, 128], strides = [1, 1]} : vector<8x512xf32> to vector<8x128xf32>
    %581 = math.tanh %580 : vector<8x128xf32>
    %582 = vector.extract_strided_slice %563 {offsets = [0, 384], sizes = [8, 128], strides = [1, 1]} : vector<8x512xf32> to vector<8x128xf32>
    %cst_189 = arith.constant 5.000000e-01 : f32
    %583 = vector.broadcast %cst_189 : f32 to vector<8x128xf32>
    %584 = arith.mulf %583, %582 : vector<8x128xf32>
    %585 = math.tanh %584 : vector<8x128xf32>
    %cst_190 = arith.constant 5.000000e-01 : f32
    %586 = vector.broadcast %cst_190 : f32 to vector<8x128xf32>
    %587 = arith.mulf %586, %585 : vector<8x128xf32>
    %cst_191 = arith.constant 5.000000e-01 : f32
    %588 = vector.broadcast %cst_191 : f32 to vector<8x128xf32>
    %589 = arith.addf %587, %588 : vector<8x128xf32>
    %590 = arith.mulf %579, %556 : vector<8x128xf32>
    %591 = arith.mulf %571, %581 : vector<8x128xf32>
    %592 = arith.addf %590, %591 : vector<8x128xf32>
    %593 = math.tanh %592 : vector<8x128xf32>
    %594 = arith.mulf %589, %593 : vector<8x128xf32>
    %595 = arith.truncf %594 : vector<8x128xf32> to vector<8x128xbf16>
    %c0_192 = arith.constant 0 : index
    %c0_193 = arith.constant 0 : index
    %596 = vector.load %arg7[%c0_192, %c0_193] : memref<128x128xbf16, #tpu.memory_space<vmem>>, vector<128x128xbf16>
    %cst_194 = arith.constant dense<0.000000e+00> : vector<8x128xf32>
    %597 = tpu.matmul %595, %596, %cst_194 {dimension_numbers = #tpu.dot_dimension_numbers<[1], [0], [0], [1], [0, 0, 1, 1], [], []>} : vector<8x128xbf16>, vector<128x128xbf16>, vector<8x128xf32> -> vector<8x128xf32>
    %c0_195 = arith.constant 0 : index
    %c0_196 = arith.constant 0 : index
    %598 = vector.load %arg8[%c0_195, %c0_196] : memref<1x128xf32, #tpu.memory_space<vmem>>, vector<1x128xf32>
    %599 = vector.broadcast %598 : vector<1x128xf32> to vector<8x128xf32>
    %600 = arith.addf %597, %599 : vector<8x128xf32>
    %c0_197 = arith.constant 0 : index
    %c0_198 = arith.constant 0 : index
    %601 = vector.load %arg9[%c0_197, %c0_198] : memref<8x128xf32, #tpu.memory_space<vmem>>, vector<8x128xf32>
    tpu.vector_store %arg9[%c0_197, %c0_198], %600 {strides = array<i32>} : memref<8x128xf32, #tpu.memory_space<vmem>>, vector<8x128xf32>,
    return
  }
  func.func @transform_0(%arg0: i32) -> (i32, i32, i32) {
    %c0_i32 = arith.constant 0 : i32
    %c0_i32_0 = arith.constant 0 : i32
    %c0_i32_1 = arith.constant 0 : i32
    return %c0_i32, %arg0, %c0_i32_0 : i32, i32, i32
  }
  func.func @transform_1(%arg0: i32) -> (i32, i32) {
    %c0_i32 = arith.constant 0 : i32
    %c0_i32_0 = arith.constant 0 : i32
    %c0_i32_1 = arith.constant 0 : i32
    return %c0_i32, %c0_i32_0 : i32, i32
  }
  func.func @transform_2(%arg0: i32) -> (i32, i32) {
    %c0_i32 = arith.constant 0 : i32
    %c0_i32_0 = arith.constant 0 : i32
    %c0_i32_1 = arith.constant 0 : i32
    return %c0_i32, %c0_i32_0 : i32, i32
  }
  func.func @transform_3(%arg0: i32) -> (i32, i32) {
    %c0_i32 = arith.constant 0 : i32
    %c0_i32_0 = arith.constant 0 : i32
    %c0_i32_1 = arith.constant 0 : i32
    return %c0_i32, %c0_i32_0 : i32, i32
  }
  func.func @transform_4(%arg0: i32) -> (i32, i32) {
    %c0_i32 = arith.constant 0 : i32
    %c0_i32_0 = arith.constant 0 : i32
    %c0_i32_1 = arith.constant 0 : i32
    return %c0_i32, %c0_i32_0 : i32, i32
  }
  func.func @transform_5(%arg0: i32) -> (i32, i32) {
    %c0_i32 = arith.constant 0 : i32
    %c0_i32_0 = arith.constant 0 : i32
    %c0_i32_1 = arith.constant 0 : i32
    return %c0_i32, %c0_i32_0 : i32, i32
  }
  func.func @transform_6(%arg0: i32) -> (i32, i32) {
    %c0_i32 = arith.constant 0 : i32
    %c0_i32_0 = arith.constant 0 : i32
    %c0_i32_1 = arith.constant 0 : i32
    return %c0_i32, %c0_i32_0 : i32, i32
  }
  func.func @transform_7(%arg0: i32) -> (i32, i32) {
    %c0_i32 = arith.constant 0 : i32
    %c0_i32_0 = arith.constant 0 : i32
    %c0_i32_1 = arith.constant 0 : i32
    return %c0_i32, %c0_i32_0 : i32, i32
  }
  func.func @transform_8(%arg0: i32) -> (i32, i32) {
    %c0_i32 = arith.constant 0 : i32
    %c0_i32_0 = arith.constant 0 : i32
    return %arg0, %c0_i32 : i32, i32
  }
}

</mosaic_0001>

<llo_original>
// kernel: tpu_custom_call.1
$region0: #{tpu_custom_call.1}
  #allocation0 [shape = 'u32[]', space=smem, size = 0x4, offset = 0x4, fixed_abs, tag = 'smem constant byte address 0x4 - core index']
  #allocation1 [shape = 'u32[72,128]{1,0:T(1,128)}', space=vmem, size = 0x9000, scoped, tag = 'internal scratch']
  #allocation2 [shape = 'f32[8,8,512]{2,1,0:T(8,128)}', space=vmem, size = 0x20000, scoped, tag = 'scratch operand']
  %s0 = inlined_call_operand.vmem [shape: f32[8,8,1], index: 0, kind: input, shape index: {}]
  %s1 = inlined_call_operand.vmem [shape: f32[1,512], index: 1, kind: input, shape index: {}]
  %s2 = inlined_call_operand.hbm [shape: bf16[128,512], index: 2, kind: input, shape index: {}]
  %s3 = inlined_call_operand.vmem [shape: f32[1,512], index: 3, kind: input, shape index: {}]
  %s4 = inlined_call_operand.hbm [shape: bf16[256,512], index: 4, kind: input, shape index: {}]
  %s5 = inlined_call_operand.vmem [shape: f32[1,512], index: 5, kind: input, shape index: {}]
  %s6 = inlined_call_operand.vmem [shape: bf16[128,128], index: 6, kind: input, shape index: {}]
  %s7 = inlined_call_operand.vmem [shape: f32[1,128], index: 7, kind: input, shape index: {}]
  %s8 = inlined_call_operand.hbm [shape: f32[8,128], index: 8, kind: output, shape index: {}]
  %s9 = sld [smem:[#allocation0]]
  $region50: #{tpu_custom_call.1} parent=0
    _
  %s11 = ssub.s32 1, %s9
  %s12 = scalar_select 0, %s11, %s9
  $region1: #{tpu_custom_call.1} parent=0
    #allocation3 [shape = 'u8[131072]{0}', space=vmem, size = 0x20000, scoped, tag = 'input window, operand 2, single buffered']
    #allocation4 [shape = 's32[1]{0}', space=sflag, size = 0x4, scoped, tag = 'scoped memory for tpu_custom_call.1']
    #allocation5 [shape = 's32[1]{0}', space=sflag, size = 0x4, scoped, tag = 'scoped memory for tpu_custom_call.1']
    #allocation6 [shape = 'u8[262144]{0}', space=vmem, size = 0x40000, scoped, tag = 'input window, operand 4, single buffered']
    #allocation7 [shape = 's32[1]{0}', space=sflag, size = 0x4, scoped, tag = 'scoped memory for tpu_custom_call.1']
    #allocation8 [shape = 'u8[4096]{0}', space=vmem, size = 0x1000, scoped, tag = 'output window, operand 0, single buffered']
    %13 = vsyncpa [#allocation4], 0
    %14 = vsyncpa [#allocation7], 0
    %15 = vsyncpa [#allocation5], 0
    // Predicated region
    $region2: #{tpu_custom_call.1} parent=1 // pred_check
      _
    $region3: #{tpu_custom_call.1} parent=1 // pred_check_branch
      %17 = sbr.rel (0) target = $region5
    $region4: #{tpu_custom_call.1} parent=1 // pred_region
      _
    $region5: #{tpu_custom_call.1} parent=1 // pred_fallthru
      _
    // Predicated region
    $region6: #{tpu_custom_call.1} parent=1 // pred_check
      _
    $region7: #{tpu_custom_call.1} parent=1 // pred_check_branch
      %19 = sbr.rel (0) target = $region9
    $region8: #{tpu_custom_call.1} parent=1 // pred_region
      _
    $region9: #{tpu_custom_call.1} parent=1 // pred_fallthru
      _
    // Predicated region
    $region10: #{tpu_custom_call.1} parent=1 // pred_check
      _
    $region11: #{tpu_custom_call.1} parent=1 // pred_check_branch
      %21 = sbr.rel (0) target = $region13
    $region12: #{tpu_custom_call.1} parent=1 // pred_region
      %23 = vsyncadd [#allocation4], 0
      %s24 = sshll.u32 %s2, 4
      %s25 = int_to_ptr.hbm [resolvable:$true] %s24
      %s26 = sshll.u32 [#allocation3], 4
      %s27 = int_to_ptr.vmem [resolvable:$true] %s26
      %32 = dma.hbm_to_vmem [thread:$0]  %s25, 4096, %s27, [#allocation4], 256, 256, 16
    $region13: #{tpu_custom_call.1} parent=1 // pred_fallthru
      _
    // Predicated region
    $region14: #{tpu_custom_call.1} parent=1 // pred_check
      _
    $region15: #{tpu_custom_call.1} parent=1 // pred_check_branch
      %34 = sbr.rel (0) target = $region17
    $region16: #{tpu_custom_call.1} parent=1 // pred_region
      _
    $region17: #{tpu_custom_call.1} parent=1 // pred_fallthru
      _
    // Predicated region
    $region18: #{tpu_custom_call.1} parent=1 // pred_check
      _
    $region19: #{tpu_custom_call.1} parent=1 // pred_check_branch
      %36 = sbr.rel (0) target = $region21
    $region20: #{tpu_custom_call.1} parent=1 // pred_region
      %38 = vsyncadd [#allocation7], 0
      %s39 = sshll.u32 %s4, 4
      %s40 = int_to_ptr.hbm [resolvable:$true] %s39
      %s41 = sshll.u32 [#allocation6], 4
      %s42 = int_to_ptr.vmem [resolvable:$true] %s41
      %47 = dma.hbm_to_vmem [thread:$0]  %s40, 8192, %s42, [#allocation7], 256, 256, 16
    $region21: #{tpu_custom_call.1} parent=1 // pred_fallthru
      _
    // Predicated region
    $region22: #{tpu_custom_call.1} parent=1 // pred_check
      _
    $region23: #{tpu_custom_call.1} parent=1 // pred_check_branch
      %49 = sbr.rel (0) target = $region25
    $region24: #{tpu_custom_call.1} parent=1 // pred_region
      _
    $region25: #{tpu_custom_call.1} parent=1 // pred_fallthru
      _
    // Predicated region
    $region26: #{tpu_custom_call.1} parent=1 // pred_check
      _
    $region27: #{tpu_custom_call.1} parent=1 // pred_check_branch
      %51 = sbr.rel (0) target = $region29
    $region28: #{tpu_custom_call.1} parent=1 // pred_region
      _
    $region29: #{tpu_custom_call.1} parent=1 // pred_fallthru
      _
    // Predicated region
    $region30: #{tpu_custom_call.1} parent=1 // pred_check
      _
    $region31: #{tpu_custom_call.1} parent=1 // pred_check_branch
      %53 = sbr.rel (0) target = $region33
    $region32: #{tpu_custom_call.1} parent=1 // pred_region
      _
    $region33: #{tpu_custom_call.1} parent=1 // pred_fallthru
      _
    // Predicated region
    $region34: #{tpu_custom_call.1} parent=1 // pred_check
      _
    $region35: #{tpu_custom_call.1} parent=1 // pred_check_branch
      %55 = sbr.rel (0) target = $region37
    $region36: #{tpu_custom_call.1} parent=1 // pred_region
      %57 = dma.done [#allocation4], 4096
    $region37: #{tpu_custom_call.1} parent=1 // pred_fallthru
      _
    // Predicated region
    $region38: #{tpu_custom_call.1} parent=1 // pred_check
      _
    $region39: #{tpu_custom_call.1} parent=1 // pred_check_branch
      %59 = sbr.rel (0) target = $region41
    $region40: #{tpu_custom_call.1} parent=1 // pred_region
      %61 = dma.done [#allocation7], 8192
    $region41: #{tpu_custom_call.1} parent=1 // pred_fallthru
      _
    %v62 = vld [vmem:[%s3] sm:$0xf]
    %v63 = vld [vmem:[%s0] sm:$0xff]
    %v64 = vld [vmem:[%s0 + $0x8] sm:$0xff]
    %v65 = vld [vmem:[%s0 + $0x10] sm:$0xff]
    %v66 = vld [vmem:[%s0 + $0x18] sm:$0xff]
    %v67 = vld [vmem:[%s0 + $0x20] sm:$0xff]
    %v68 = vld [vmem:[%s0 + $0x28] sm:$0xff]
    %v69 = vld [vmem:[%s0 + $0x30] sm:$0xff]
    %v70 = vld [vmem:[%s0 + $0x38] sm:$0xff]
    %v71 = vld [vmem:[%s1] sm:$0xf]
    %73 = vset.pattern.permute.xlu0 0
    %74 = vperm.xlu0 %73, %v63
    %v75 = vpop.permute.xlu0 %74
    %78 = vset.pattern.permute.xlu0 0
    %79 = vperm.xlu0 %78, %v64
    %v80 = vpop.permute.xlu0 %79
    %83 = vset.pattern.permute.xlu0 0
    %84 = vperm.xlu0 %83, %v65
    %v85 = vpop.permute.xlu0 %84
    %88 = vset.pattern.permute.xlu0 0
    %89 = vperm.xlu0 %88, %v66
    %v90 = vpop.permute.xlu0 %89
    %93 = vset.pattern.permute.xlu0 0
    %94 = vperm.xlu0 %93, %v67
    %v95 = vpop.permute.xlu0 %94
    %98 = vset.pattern.permute.xlu0 0
    %99 = vperm.xlu0 %98, %v68
    %v100 = vpop.permute.xlu0 %99
    %103 = vset.pattern.permute.xlu0 0
    %104 = vperm.xlu0 %103, %v69
    %v105 = vpop.permute.xlu0 %104
    %108 = vset.pattern.permute.xlu0 0
    %109 = vperm.xlu0 %108, %v70
    %v110 = vpop.permute.xlu0 %109
    %v113 = vperm.slane %v71, 0
    %v114 = vperm.slane %v71, 1
    %v115 = vperm.slane %v71, 2
    %v116 = vperm.slane %v71, 3
    %v121 = vmul.f32 %v75, %v113
    %v122 = vmul.f32 %v75, %v114
    %v123 = vmul.f32 %v75, %v115
    %v124 = vmul.f32 %v75, %v116
    %v125 = vmul.f32 %v80, %v113
    %v126 = vmul.f32 %v80, %v114
    %v127 = vmul.f32 %v80, %v115
    %v128 = vmul.f32 %v80, %v116
    %v129 = vmul.f32 %v85, %v113
    %v130 = vmul.f32 %v85, %v114
    %v131 = vmul.f32 %v85, %v115
    %v132 = vmul.f32 %v85, %v116
    %v133 = vmul.f32 %v90, %v113
    %v134 = vmul.f32 %v90, %v114
    %v135 = vmul.f32 %v90, %v115
    %v136 = vmul.f32 %v90, %v116
    %v137 = vmul.f32 %v95, %v113
    %v138 = vmul.f32 %v95, %v114
    %v139 = vmul.f32 %v95, %v115
    %v140 = vmul.f32 %v95, %v116
    %v141 = vmul.f32 %v100, %v113
    %v142 = vmul.f32 %v100, %v114
    %v143 = vmul.f32 %v100, %v115
    %v144 = vmul.f32 %v100, %v116
    %v145 = vmul.f32 %v105, %v113
    %v146 = vmul.f32 %v105, %v114
    %v147 = vmul.f32 %v105, %v115
    %v148 = vmul.f32 %v105, %v116
    %v149 = vmul.f32 %v110, %v113
    %v150 = vmul.f32 %v110, %v114
    %v151 = vmul.f32 %v110, %v115
    %v152 = vmul.f32 %v110, %v116
    %v154 = vperm.slane %v62, 0
    %v155 = vperm.slane %v62, 1
    %v156 = vperm.slane %v62, 2
    %v157 = vperm.slane %v62, 3
    %v162 = vadd.f32 %v121, %v154
    %v163 = vadd.f32 %v122, %v155
    %v164 = vadd.f32 %v123, %v156
    %v165 = vadd.f32 %v124, %v157
    %v166 = vadd.f32 %v125, %v154
    %v167 = vadd.f32 %v126, %v155
    %v168 = vadd.f32 %v127, %v156
    %v169 = vadd.f32 %v128, %v157
    %v170 = vadd.f32 %v129, %v154
    %v171 = vadd.f32 %v130, %v155
    %v172 = vadd.f32 %v131, %v156
    %v173 = vadd.f32 %v132, %v157
    %v174 = vadd.f32 %v133, %v154
    %v175 = vadd.f32 %v134, %v155
    %v176 = vadd.f32 %v135, %v156
    %v177 = vadd.f32 %v136, %v157
    %v178 = vadd.f32 %v137, %v154
    %v179 = vadd.f32 %v138, %v155
    %v180 = vadd.f32 %v139, %v156
    %v181 = vadd.f32 %v140, %v157
    %v182 = vadd.f32 %v141, %v154
    %v183 = vadd.f32 %v142, %v155
    %v184 = vadd.f32 %v143, %v156
    %v185 = vadd.f32 %v144, %v157
    %v186 = vadd.f32 %v145, %v154
    %v187 = vadd.f32 %v146, %v155
    %v188 = vadd.f32 %v147, %v156
    %v189 = vadd.f32 %v148, %v157
    %v190 = vadd.f32 %v149, %v154
    %v191 = vadd.f32 %v150, %v155
    %v192 = vadd.f32 %v151, %v156
    %v193 = vadd.f32 %v152, %v157
    %194 = vst [vmem:[#allocation2] sm:$0xff] %v162
    %195 = vst [vmem:[#allocation2 + $0x8] sm:$0xff] %v163
    %196 = vst [vmem:[#allocation2 + $0x10] sm:$0xff] %v164
    %197 = vst [vmem:[#allocation2 + $0x18] sm:$0xff] %v165
    %198 = vst [vmem:[#allocation2 + $0x20] sm:$0xff] %v166
    %199 = vst [vmem:[#allocation2 + $0x28] sm:$0xff] %v167
    %200 = vst [vmem:[#allocation2 + $0x30] sm:$0xff] %v168
    %201 = vst [vmem:[#allocation2 + $0x38] sm:$0xff] %v169
    %202 = vst [vmem:[#allocation2 + $0x40] sm:$0xff] %v170
    %203 = vst [vmem:[#allocation2 + $0x48] sm:$0xff] %v171
    %204 = vst [vmem:[#allocation2 + $0x50] sm:$0xff] %v172
    %205 = vst [vmem:[#allocation2 + $0x58] sm:$0xff] %v173
    %206 = vst [vmem:[#allocation2 + $0x60] sm:$0xff] %v174
    %207 = vst [vmem:[#allocation2 + $0x68] sm:$0xff] %v175
    %208 = vst [vmem:[#allocation2 + $0x70] sm:$0xff] %v176
    %209 = vst [vmem:[#allocation2 + $0x78] sm:$0xff] %v177
    %210 = vst [vmem:[#allocation2 + $0x80] sm:$0xff] %v178
    %211 = vst [vmem:[#allocation2 + $0x88] sm:$0xff] %v179
    %212 = vst [vmem:[#allocation2 + $0x90] sm:$0xff] %v180
    %213 = vst [vmem:[#allocation2 + $0x98] sm:$0xff] %v181
    %214 = vst [vmem:[#allocation2 + $0xa0] sm:$0xff] %v182
    %215 = vst [vmem:[#allocation2 + $0xa8] sm:$0xff] %v183
    %216 = vst [vmem:[#allocation2 + $0xb0] sm:$0xff] %v184
    %217 = vst [vmem:[#allocation2 + $0xb8] sm:$0xff] %v185
    %218 = vst [vmem:[#allocation2 + $0xc0] sm:$0xff] %v186
    %219 = vst [vmem:[#allocation2 + $0xc8] sm:$0xff] %v187
    %220 = vst [vmem:[#allocation2 + $0xd0] sm:$0xff] %v188
    %221 = vst [vmem:[#allocation2 + $0xd8] sm:$0xff] %v189
    %222 = vst [vmem:[#allocation2 + $0xe0] sm:$0xff] %v190
    %223 = vst [vmem:[#allocation2 + $0xe8] sm:$0xff] %v191
    %224 = vst [vmem:[#allocation2 + $0xf0] sm:$0xff] %v192
    %225 = vst [vmem:[#allocation2 + $0xf8] sm:$0xff] %v193
    %v226 = vld [vmem:[#allocation3] sm:$0xff]
    %v227 = vld [vmem:[#allocation3 + $0x8] sm:$0xff]
    %v228 = vld [vmem:[#allocation3 + $0x10] sm:$0xff]
    %v229 = vld [vmem:[#allocation3 + $0x18] sm:$0xff]
    %v230 = vld [vmem:[#allocation3 + $0x20] sm:$0xff]
    %v231 = vld [vmem:[#allocation3 + $0x28] sm:$0xff]
    %v232 = vld [vmem:[#allocation3 + $0x30] sm:$0xff]
    %v233 = vld [vmem:[#allocation3 + $0x38] sm:$0xff]
    %v234 = vld [vmem:[#allocation3 + $0x40] sm:$0xff]
    %v235 = vld [vmem:[#allocation3 + $0x48] sm:$0xff]
    %v236 = vld [vmem:[#allocation3 + $0x50] sm:$0xff]
    %v237 = vld [vmem:[#allocation3 + $0x58] sm:$0xff]
    %v238 = vld [vmem:[#allocation3 + $0x60] sm:$0xff]
    %v239 = vld [vmem:[#allocation3 + $0x68] sm:$0xff]
    %v240 = vld [vmem:[#allocation3 + $0x70] sm:$0xff]
    %v241 = vld [vmem:[#allocation3 + $0x78] sm:$0xff]
    %v242 = vld [vmem:[#allocation3 + $0x80] sm:$0xff]
    %v243 = vld [vmem:[#allocation3 + $0x88] sm:$0xff]
    %v244 = vld [vmem:[#allocation3 + $0x90] sm:$0xff]
    %v245 = vld [vmem:[#allocation3 + $0x98] sm:$0xff]
    %v246 = vld [vmem:[#allocation3 + $0xa0] sm:$0xff]
    %v247 = vld [vmem:[#allocation3 + $0xa8] sm:$0xff]
    %v248 = vld [vmem:[#allocation3 + $0xb0] sm:$0xff]
    %v249 = vld [vmem:[#allocation3 + $0xb8] sm:$0xff]
    %v250 = vld [vmem:[#allocation3 + $0xc0] sm:$0xff]
    %v251 = vld [vmem:[#allocation3 + $0xc8] sm:$0xff]
    %v252 = vld [vmem:[#allocation3 + $0xd0] sm:$0xff]
    %v253 = vld [vmem:[#allocation3 + $0xd8] sm:$0xff]
    %v254 = vld [vmem:[#allocation3 + $0xe0] sm:$0xff]
    %v255 = vld [vmem:[#allocation3 + $0xe8] sm:$0xff]
    %v256 = vld [vmem:[#allocation3 + $0xf0] sm:$0xff]
    %v257 = vld [vmem:[#allocation3 + $0xf8] sm:$0xff]
    %v258 = vld [vmem:[#allocation6] sm:$0xff]
    %v259 = vld [vmem:[#allocation6 + $0x8] sm:$0xff]
    %v260 = vld [vmem:[#allocation6 + $0x10] sm:$0xff]
    %v261 = vld [vmem:[#allocation6 + $0x18] sm:$0xff]
    %v262 = vld [vmem:[#allocation6 + $0x20] sm:$0xff]
    %v263 = vld [vmem:[#allocation6 + $0x28] sm:$0xff]
    %v264 = vld [vmem:[#allocation6 + $0x30] sm:$0xff]
    %v265 = vld [vmem:[#allocation6 + $0x38] sm:$0xff]
    %v266 = vld [vmem:[#allocation6 + $0x40] sm:$0xff]
    %v267 = vld [vmem:[#allocation6 + $0x48] sm:$0xff]
    %v268 = vld [vmem:[#allocation6 + $0x50] sm:$0xff]
    %v269 = vld [vmem:[#allocation6 + $0x58] sm:$0xff]
    %v270 = vld [vmem:[#allocation6 + $0x60] sm:$0xff]
    %v271 = vld [vmem:[#allocation6 + $0x68] sm:$0xff]
    %v272 = vld [vmem:[#allocation6 + $0x70] sm:$0xff]
    %v273 = vld [vmem:[#allocation6 + $0x78] sm:$0xff]
    %v274 = vld [vmem:[#allocation6 + $0x80] sm:$0xff]
    %v275 = vld [vmem:[#allocation6 + $0x88] sm:$0xff]
    %v276 = vld [vmem:[#allocation6 + $0x90] sm:$0xff]
    %v277 = vld [vmem:[#allocation6 + $0x98] sm:$0xff]
    %v278 = vld [vmem:[#allocation6 + $0xa0] sm:$0xff]
    %v279 = vld [vmem:[#allocation6 + $0xa8] sm:$0xff]
    %v280 = vld [vmem:[#allocation6 + $0xb0] sm:$0xff]
    %v281 = vld [vmem:[#allocation6 + $0xb8] sm:$0xff]
    %v282 = vld [vmem:[#allocation6 + $0xc0] sm:$0xff]
    %v283 = vld [vmem:[#allocation6 + $0xc8] sm:$0xff]
    %v284 = vld [vmem:[#allocation6 + $0xd0] sm:$0xff]
    %v285 = vld [vmem:[#allocation6 + $0xd8] sm:$0xff]
    %v286 = vld [vmem:[#allocation6 + $0xe0] sm:$0xff]
    %v287 = vld [vmem:[#allocation6 + $0xe8] sm:$0xff]
    %v288 = vld [vmem:[#allocation6 + $0xf0] sm:$0xff]
    %v289 = vld [vmem:[#allocation6 + $0xf8] sm:$0xff]
    %v290 = vld [vmem:[#allocation6 + $0x100] sm:$0xff]
    %v291 = vld [vmem:[#allocation6 + $0x108] sm:$0xff]
    %v292 = vld [vmem:[#allocation6 + $0x110] sm:$0xff]
    %v293 = vld [vmem:[#allocation6 + $0x118] sm:$0xff]
    %v294 = vld [vmem:[#allocation6 + $0x120] sm:$0xff]
    %v295 = vld [vmem:[#allocation6 + $0x128] sm:$0xff]
    %v296 = vld [vmem:[#allocation6 + $0x130] sm:$0xff]
    %v297 = vld [vmem:[#allocation6 + $0x138] sm:$0xff]
    %v298 = vld [vmem:[#allocation6 + $0x140] sm:$0xff]
    %v299 = vld [vmem:[#allocation6 + $0x148] sm:$0xff]
    %v300 = vld [vmem:[#allocation6 + $0x150] sm:$0xff]
    %v301 = vld [vmem:[#allocation6 + $0x158] sm:$0xff]
    %v302 = vld [vmem:[#allocation6 + $0x160] sm:$0xff]
    %v303 = vld [vmem:[#allocation6 + $0x168] sm:$0xff]
    %v304 = vld [vmem:[#allocation6 + $0x170] sm:$0xff]
    %v305 = vld [vmem:[#allocation6 + $0x178] sm:$0xff]
    %v306 = vld [vmem:[#allocation6 + $0x180] sm:$0xff]
    %v307 = vld [vmem:[#allocation6 + $0x188] sm:$0xff]
    %v308 = vld [vmem:[#allocation6 + $0x190] sm:$0xff]
    %v309 = vld [vmem:[#allocation6 + $0x198] sm:$0xff]
    %v310 = vld [vmem:[#allocation6 + $0x1a0] sm:$0xff]
    %v311 = vld [vmem:[#allocation6 + $0x1a8] sm:$0xff]
    %v312 = vld [vmem:[#allocation6 + $0x1b0] sm:$0xff]
    %v313 = vld [vmem:[#allocation6 + $0x1b8] sm:$0xff]
    %v314 = vld [vmem:[#allocation6 + $0x1c0] sm:$0xff]
    %v315 = vld [vmem:[#allocation6 + $0x1c8] sm:$0xff]
    %v316 = vld [vmem:[#allocation6 + $0x1d0] sm:$0xff]
    %v317 = vld [vmem:[#allocation6 + $0x1d8] sm:$0xff]
    %v318 = vld [vmem:[#allocation6 + $0x1e0] sm:$0xff]
    %v319 = vld [vmem:[#allocation6 + $0x1e8] sm:$0xff]
    %v320 = vld [vmem:[#allocation6 + $0x1f0] sm:$0xff]
    %v321 = vld [vmem:[#allocation6 + $0x1f8] sm:$0xff]
    %v322 = vld [vmem:[%s5] sm:$0xf]
    %v323 = vld [vmem:[#allocation2] sm:$0xff]
    %v324 = vld [vmem:[#allocation2 + $0x8] sm:$0xff]
    %v325 = vld [vmem:[#allocation2 + $0x10] sm:$0xff]
    %v326 = vld [vmem:[#allocation2 + $0x18] sm:$0xff]
    %v327 = vmul.f32 %v323, 0.5
    %v328 = vtanh.pop %v327
    %v329 = vmul.f32 %v328, 0.5
    %v330 = vadd.f32 %v329, 0.5
    %v331 = vmul.f32 %v324, 0.5
    %v332 = vtanh.pop %v331
    %v333 = vmul.f32 %v332, 0.5
    %v334 = vadd.f32 %v333, 0.5
    %v335 = vtanh.pop %v325
    %v336 = vmul.f32 %v326, 0.5
    %v337 = vtanh.pop %v336
    %v338 = vmul.f32 %v337, 0.5
    %v339 = vadd.f32 %v338, 0.5
    %v340 = vmul.f32 %v334, 0.0
    %v341 = vmul.f32 %v330, %v335
    %v342 = vadd.f32 %v340, %v341
    %v343 = vtanh.pop %v342
    %v344 = vmul.f32 %v339, %v343
    %s345 = scalar_lea.vmem [#allocation2], 32
    %v346 = vld [vmem:[%s345] sm:$0xff]
    %v347 = vld [vmem:[%s345 + $0x8] sm:$0xff]
    %v348 = vld [vmem:[%s345 + $0x10] sm:$0xff]
    %v349 = vld [vmem:[%s345 + $0x18] sm:$0xff]
    %v350 = vpack.c.bf16 %v344, %v344
    %v383 = vunpack.c.l.b16 %v226
    %v384 = vunpack.c.h.b16 %v226
    %v385 = vunpack.c.l.b16 %v227
    %v386 = vunpack.c.h.b16 %v227
    %v387 = vunpack.c.l.b16 %v228
    %v388 = vunpack.c.h.b16 %v228
    %v389 = vunpack.c.l.b16 %v229
    %v390 = vunpack.c.h.b16 %v229
    %v391 = vunpack.c.l.b16 %v230
    %v392 = vunpack.c.h.b16 %v230
    %v393 = vunpack.c.l.b16 %v231
    %v394 = vunpack.c.h.b16 %v231
    %v395 = vunpack.c.l.b16 %v232
    %v396 = vunpack.c.h.b16 %v232
    %v397 = vunpack.c.l.b16 %v233
    %v398 = vunpack.c.h.b16 %v233
    %v399 = vunpack.c.l.b16 %v234
    %v400 = vunpack.c.h.b16 %v234
    %v401 = vunpack.c.l.b16 %v235
    %v402 = vunpack.c.h.b16 %v235
    %v403 = vunpack.c.l.b16 %v236
    %v404 = vunpack.c.h.b16 %v236
    %v405 = vunpack.c.l.b16 %v237
    %v406 = vunpack.c.h.b16 %v237
    %v407 = vunpack.c.l.b16 %v238
    %v408 = vunpack.c.h.b16 %v238
    %v409 = vunpack.c.l.b16 %v239
    %v410 = vunpack.c.h.b16 %v239
    %v411 = vunpack.c.l.b16 %v240
    %v412 = vunpack.c.h.b16 %v240
    %v413 = vunpack.c.l.b16 %v241
    %v414 = vunpack.c.h.b16 %v241
    %v415 = vunpack.c.l.b16 %v242
    %v416 = vunpack.c.h.b16 %v242
    %v417 = vunpack.c.l.b16 %v243
    %v418 = vunpack.c.h.b16 %v243
    %v419 = vunpack.c.l.b16 %v244
    %v420 = vunpack.c.h.b16 %v244
    %v421 = vunpack.c.l.b16 %v245
    %v422 = vunpack.c.h.b16 %v245
    %v423 = vunpack.c.l.b16 %v246
    %v424 = vunpack.c.h.b16 %v246
    %v425 = vunpack.c.l.b16 %v247
    %v426 = vunpack.c.h.b16 %v247
    %v427 = vunpack.c.l.b16 %v248
    %v428 = vunpack.c.h.b16 %v248
    %v429 = vunpack.c.l.b16 %v249
    %v430 = vunpack.c.h.b16 %v249
    %v431 = vunpack.c.l.b16 %v250
    %v432 = vunpack.c.h.b16 %v250
    %v433 = vunpack.c.l.b16 %v251
    %v434 = vunpack.c.h.b16 %v251
    %v435 = vunpack.c.l.b16 %v252
    %v436 = vunpack.c.h.b16 %v252
    %v437 = vunpack.c.l.b16 %v253
    %v438 = vunpack.c.h.b16 %v253
    %v439 = vunpack.c.l.b16 %v254
    %v440 = vunpack.c.h.b16 %v254
    %v441 = vunpack.c.l.b16 %v255
    %v442 = vunpack.c.h.b16 %v255
    %v443 = vunpack.c.l.b16 %v256
    %v444 = vunpack.c.h.b16 %v256
    %v445 = vunpack.c.l.b16 %v257
    %v446 = vunpack.c.h.b16 %v257
    %v447 = vpack.c.b16 %v387, %v383
    %v448 = vpack.c.b16 %v388, %v384
    %v449 = vpack.c.b16 %v389, %v385
    %v450 = vpack.c.b16 %v390, %v386
    %v451 = vpack.c.b16 %v395, %v391
    %v452 = vpack.c.b16 %v396, %v392
    %v453 = vpack.c.b16 %v397, %v393
    %v454 = vpack.c.b16 %v398, %v394
    %v455 = vpack.c.b16 %v403, %v399
    %v456 = vpack.c.b16 %v404, %v400
    %v457 = vpack.c.b16 %v405, %v401
    %v458 = vpack.c.b16 %v406, %v402
    %v459 = vpack.c.b16 %v411, %v407
    %v460 = vpack.c.b16 %v412, %v408
    %v461 = vpack.c.b16 %v413, %v409
    %v462 = vpack.c.b16 %v414, %v410
    %v463 = vpack.c.b16 %v419, %v415
    %v464 = vpack.c.b16 %v420, %v416
    %v465 = vpack.c.b16 %v421, %v417
    %v466 = vpack.c.b16 %v422, %v418
    %v467 = vpack.c.b16 %v427, %v423
    %v468 = vpack.c.b16 %v428, %v424
    %v469 = vpack.c.b16 %v429, %v425
    %v470 = vpack.c.b16 %v430, %v426
    %v471 = vpack.c.b16 %v435, %v431
    %v472 = vpack.c.b16 %v436, %v432
    %v473 = vpack.c.b16 %v437, %v433
    %v474 = vpack.c.b16 %v438, %v434
    %v475 = vpack.c.b16 %v443, %v439
    %v476 = vpack.c.b16 %v444, %v440
    %v477 = vpack.c.b16 %v445, %v441
    %v478 = vpack.c.b16 %v446, %v442
    %511 = vmatpush.bf16.msra.mxu0 %v475
    %512 = vmatpush.bf16.msra.mxu0 %v471
    %513 = vmatpush.bf16.msra.mxu0 %v467
    %514 = vmatpush.bf16.msra.mxu0 %v463
    %515 = vmatpush.bf16.msra.mxu0 %v459
    %516 = vmatpush.bf16.msra.mxu0 %v455
    %517 = vmatpush.bf16.msra.mxu0 %v451
    %518 = vmatpush.bf16.msra.mxu0 %v447
    %519 = vmatmul.bf16.gmra.mxu0 %v350
    %v520 = vpop.f32.mrf.mxu0
    %v521 = vadd.f32 0.0, %v520
    %v522 = vpop.f32.mrf.mxu0
    %523 = vdwg.mxu0
    %524 = vmatpush.bf16.msra.mxu0 %v476
    %525 = vmatpush.bf16.msra.mxu0 %v472
    %526 = vmatpush.bf16.msra.mxu0 %v468
    %527 = vmatpush.bf16.msra.mxu0 %v464
    %528 = vmatpush.bf16.msra.mxu0 %v460
    %529 = vmatpush.bf16.msra.mxu0 %v456
    %530 = vmatpush.bf16.msra.mxu0 %v452
    %531 = vmatpush.bf16.msra.mxu0 %v448
    %532 = vmatmul.bf16.gmra.mxu0 %v350
    %v533 = vpop.f32.mrf.mxu0
    %v534 = vadd.f32 0.0, %v533
    %v535 = vpop.f32.mrf.mxu0
    %536 = vdwg.mxu0
    %537 = vmatpush.bf16.msra.mxu0 %v477
    %538 = vmatpush.bf16.msra.mxu0 %v473
    %539 = vmatpush.bf16.msra.mxu0 %v469
    %540 = vmatpush.bf16.msra.mxu0 %v465
    %541 = vmatpush.bf16.msra.mxu0 %v461
    %542 = vmatpush.bf16.msra.mxu0 %v457
    %543 = vmatpush.bf16.msra.mxu0 %v453
    %544 = vmatpush.bf16.msra.mxu0 %v449
    %545 = vmatmul.bf16.gmra.mxu0 %v350
    %v546 = vpop.f32.mrf.mxu0
    %v547 = vadd.f32 0.0, %v546
    %v548 = vpop.f32.mrf.mxu0
    %549 = vdwg.mxu0
    %550 = vmatpush.bf16.msra.mxu0 %v478
    %551 = vmatpush.bf16.msra.mxu0 %v474
    %552 = vmatpush.bf16.msra.mxu0 %v470
    %553 = vmatpush.bf16.msra.mxu0 %v466
    %554 = vmatpush.bf16.msra.mxu0 %v462
    %555 = vmatpush.bf16.msra.mxu0 %v458
    %556 = vmatpush.bf16.msra.mxu0 %v454
    %557 = vmatpush.bf16.msra.mxu0 %v450
    %558 = vmatmul.bf16.gmra.mxu0 %v350
    %v559 = vpop.f32.mrf.mxu0
    %v560 = vadd.f32 0.0, %v559
    %v561 = vpop.f32.mrf.mxu0
    %562 = vdwg.mxu0
    %v563 = vadd.f32 %v346, %v521
    %v564 = vadd.f32 %v347, %v534
    %v565 = vadd.f32 %v348, %v547
    %v566 = vadd.f32 %v349, %v560
    %v567 = vpack.c.bf16 0.0, 0.0
    %v569 = vperm.slane %v322, 0
    %v570 = vperm.slane %v322, 1
    %v571 = vperm.slane %v322, 2
    %v572 = vperm.slane %v322, 3
    %v641 = vunpack.c.l.b16 %v258
    %v642 = vunpack.c.h.b16 %v258
    %v643 = vunpack.c.l.b16 %v259
    %v644 = vunpack.c.h.b16 %v259
    %v645 = vunpack.c.l.b16 %v260
    %v646 = vunpack.c.h.b16 %v260
    %v647 = vunpack.c.l.b16 %v261
    %v648 = vunpack.c.h.b16 %v261
    %v649 = vunpack.c.l.b16 %v262
    %v650 = vunpack.c.h.b16 %v262
    %v651 = vunpack.c.l.b16 %v263
    %v652 = vunpack.c.h.b16 %v263
    %v653 = vunpack.c.l.b16 %v264
    %v654 = vunpack.c.h.b16 %v264
    %v655 = vunpack.c.l.b16 %v265
    %v656 = vunpack.c.h.b16 %v265
    %v657 = vunpack.c.l.b16 %v266
    %v658 = vunpack.c.h.b16 %v266
    %v659 = vunpack.c.l.b16 %v267
    %v660 = vunpack.c.h.b16 %v267
    %v661 = vunpack.c.l.b16 %v268
    %v662 = vunpack.c.h.b16 %v268
    %v663 = vunpack.c.l.b16 %v269
    %v664 = vunpack.c.h.b16 %v269
    %v665 = vunpack.c.l.b16 %v270
    %v666 = vunpack.c.h.b16 %v270
    %v667 = vunpack.c.l.b16 %v271
    %v668 = vunpack.c.h.b16 %v271
    %v669 = vunpack.c.l.b16 %v272
    %v670 = vunpack.c.h.b16 %v272
    %v671 = vunpack.c.l.b16 %v273
    %v672 = vunpack.c.h.b16 %v273
    %v673 = vunpack.c.l.b16 %v274
    %v674 = vunpack.c.h.b16 %v274
    %v675 = vunpack.c.l.b16 %v275
    %v676 = vunpack.c.h.b16 %v275
    %v677 = vunpack.c.l.b16 %v276
    %v678 = vunpack.c.h.b16 %v276
    %v679 = vunpack.c.l.b16 %v277
    %v680 = vunpack.c.h.b16 %v277
    %v681 = vunpack.c.l.b16 %v278
    %v682 = vunpack.c.h.b16 %v278
    %v683 = vunpack.c.l.b16 %v279
    %v684 = vunpack.c.h.b16 %v279
    %v685 = vunpack.c.l.b16 %v280
    %v686 = vunpack.c.h.b16 %v280
    %v687 = vunpack.c.l.b16 %v281
    %v688 = vunpack.c.h.b16 %v281
    %v689 = vunpack.c.l.b16 %v282
    %v690 = vunpack.c.h.b16 %v282
    %v691 = vunpack.c.l.b16 %v283
    %v692 = vunpack.c.h.b16 %v283
    %v693 = vunpack.c.l.b16 %v284
    %v694 = vunpack.c.h.b16 %v284
    %v695 = vunpack.c.l.b16 %v285
    %v696 = vunpack.c.h.b16 %v285
    %v697 = vunpack.c.l.b16 %v286
    %v698 = vunpack.c.h.b16 %v286
    %v699 = vunpack.c.l.b16 %v287
    %v700 = vunpack.c.h.b16 %v287
    %v701 = vunpack.c.l.b16 %v288
    %v702 = vunpack.c.h.b16 %v288
    %v703 = vunpack.c.l.b16 %v289
    %v704 = vunpack.c.h.b16 %v289
    %v705 = vunpack.c.l.b16 %v290
    %v706 = vunpack.c.h.b16 %v290
    %v707 = vunpack.c.l.b16 %v291
    %v708 = vunpack.c.h.b16 %v291
    %v709 = vunpack.c.l.b16 %v292
    %v710 = vunpack.c.h.b16 %v292
    %v711 = vunpack.c.l.b16 %v293
    %v712 = vunpack.c.h.b16 %v293
    %v713 = vunpack.c.l.b16 %v294
    %v714 = vunpack.c.h.b16 %v294
    %v715 = vunpack.c.l.b16 %v295
    %v716 = vunpack.c.h.b16 %v295
    %v717 = vunpack.c.l.b16 %v296
    %v718 = vunpack.c.h.b16 %v296
    %v719 = vunpack.c.l.b16 %v297
    %v720 = vunpack.c.h.b16 %v297
    %v721 = vunpack.c.l.b16 %v298
    %v722 = vunpack.c.h.b16 %v298
    %v723 = vunpack.c.l.b16 %v299
    %v724 = vunpack.c.h.b16 %v299
    %v725 = vunpack.c.l.b16 %v300
    %v726 = vunpack.c.h.b16 %v300
    %v727 = vunpack.c.l.b16 %v301
    %v728 = vunpack.c.h.b16 %v301
    %v729 = vunpack.c.l.b16 %v302
    %v730 = vunpack.c.h.b16 %v302
    %v731 = vunpack.c.l.b16 %v303
    %v732 = vunpack.c.h.b16 %v303
    %v733 = vunpack.c.l.b16 %v304
    %v734 = vunpack.c.h.b16 %v304
    %v735 = vunpack.c.l.b16 %v305
    %v736 = vunpack.c.h.b16 %v305
    %v737 = vunpack.c.l.b16 %v306
    %v738 = vunpack.c.h.b16 %v306
    %v739 = vunpack.c.l.b16 %v307
    %v740 = vunpack.c.h.b16 %v307
    %v741 = vunpack.c.l.b16 %v308
    %v742 = vunpack.c.h.b16 %v308
    %v743 = vunpack.c.l.b16 %v309
    %v744 = vunpack.c.h.b16 %v309
    %v745 = vunpack.c.l.b16 %v310
    %v746 = vunpack.c.h.b16 %v310
    %v747 = vunpack.c.l.b16 %v311
    %v748 = vunpack.c.h.b16 %v311
    %v749 = vunpack.c.l.b16 %v312
    %v750 = vunpack.c.h.b16 %v312
    %v751 = vunpack.c.l.b16 %v313
    %v752 = vunpack.c.h.b16 %v313
    %v753 = vunpack.c.l.b16 %v314
    %v754 = vunpack.c.h.b16 %v314
    %v755 = vunpack.c.l.b16 %v315
    %v756 = vunpack.c.h.b16 %v315
    %v757 = vunpack.c.l.b16 %v316
    %v758 = vunpack.c.h.b16 %v316
    %v759 = vunpack.c.l.b16 %v317
    %v760 = vunpack.c.h.b16 %v317
    %v761 = vunpack.c.l.b16 %v318
    %v762 = vunpack.c.h.b16 %v318
    %v763 = vunpack.c.l.b16 %v319
    %v764 = vunpack.c.h.b16 %v319
    %v765 = vunpack.c.l.b16 %v320
    %v766 = vunpack.c.h.b16 %v320
    %v767 = vunpack.c.l.b16 %v321
    %v768 = vunpack.c.h.b16 %v321
    %v769 = vpack.c.b16 %v645, %v641
    %v770 = vpack.c.b16 %v646, %v642
    %v771 = vpack.c.b16 %v647, %v643
    %v772 = vpack.c.b16 %v648, %v644
    %v773 = vpack.c.b16 %v653, %v649
    %v774 = vpack.c.b16 %v654, %v650
    %v775 = vpack.c.b16 %v655, %v651
    %v776 = vpack.c.b16 %v656, %v652
    %v777 = vpack.c.b16 %v661, %v657
    %v778 = vpack.c.b16 %v662, %v658
    %v779 = vpack.c.b16 %v663, %v659
    %v780 = vpack.c.b16 %v664, %v660
    %v781 = vpack.c.b16 %v669, %v665
    %v782 = vpack.c.b16 %v670, %v666
    %v783 = vpack.c.b16 %v671, %v667
    %v784 = vpack.c.b16 %v672, %v668
    %v785 = vpack.c.b16 %v677, %v673
    %v786 = vpack.c.b16 %v678, %v674
    %v787 = vpack.c.b16 %v679, %v675
    %v788 = vpack.c.b16 %v680, %v676
    %v789 = vpack.c.b16 %v685, %v681
    %v790 = vpack.c.b16 %v686, %v682
    %v791 = vpack.c.b16 %v687, %v683
    %v792 = vpack.c.b16 %v688, %v684
    %v793 = vpack.c.b16 %v693, %v689
    %v794 = vpack.c.b16 %v694, %v690
    %v795 = vpack.c.b16 %v695, %v691
    %v796 = vpack.c.b16 %v696, %v692
    %v797 = vpack.c.b16 %v701, %v697
    %v798 = vpack.c.b16 %v702, %v698
    %v799 = vpack.c.b16 %v703, %v699
    %v800 = vpack.c.b16 %v704, %v700
    %v801 = vpack.c.b16 %v709, %v705
    %v802 = vpack.c.b16 %v710, %v706
    %v803 = vpack.c.b16 %v711, %v707
    %v804 = vpack.c.b16 %v712, %v708
    %v805 = vpack.c.b16 %v717, %v713
    %v806 = vpack.c.b16 %v718, %v714
    %v807 = vpack.c.b16 %v719, %v715
    %v808 = vpack.c.b16 %v720, %v716
    %v809 = vpack.c.b16 %v725, %v721
    %v810 = vpack.c.b16 %v726, %v722
    %v811 = vpack.c.b16 %v727, %v723
    %v812 = vpack.c.b16 %v728, %v724
    %v813 = vpack.c.b16 %v733, %v729
    %v814 = vpack.c.b16 %v734, %v730
    %v815 = vpack.c.b16 %v735, %v731
    %v816 = vpack.c.b16 %v736, %v732
    %v817 = vpack.c.b16 %v741, %v737
    %v818 = vpack.c.b16 %v742, %v738
    %v819 = vpack.c.b16 %v743, %v739
    %v820 = vpack.c.b16 %v744, %v740
    %v821 = vpack.c.b16 %v749, %v745
    %v822 = vpack.c.b16 %v750, %v746
    %v823 = vpack.c.b16 %v751, %v747
    %v824 = vpack.c.b16 %v752, %v748
    %v825 = vpack.c.b16 %v757, %v753
    %v826 = vpack.c.b16 %v758, %v754
    %v827 = vpack.c.b16 %v759, %v755
    %v828 = vpack.c.b16 %v760, %v756
    %v829 = vpack.c.b16 %v765, %v761
    %v830 = vpack.c.b16 %v766, %v762
    %v831 = vpack.c.b16 %v767, %v763
    %v832 = vpack.c.b16 %v768, %v764
    %897 = vmatpush.bf16.msra.mxu0 %v797
    %898 = vmatpush.bf16.msra.mxu0 %v793
    %899 = vmatpush.bf16.msra.mxu0 %v789
    %900 = vmatpush.bf16.msra.mxu0 %v785
    %901 = vmatpush.bf16.msra.mxu0 %v781
    %902 = vmatpush.bf16.msra.mxu0 %v777
    %903 = vmatpush.bf16.msra.mxu0 %v773
    %904 = vmatpush.bf16.msra.mxu0 %v769
    %905 = vmatmul.bf16.gmra.mxu0 %v350
    %v906 = vpop.f32.mrf.mxu0
    %v907 = vadd.f32 %v569, %v906
    %v908 = vpop.f32.mrf.mxu0
    %909 = vdwg.mxu0
    %910 = vmatpush.bf16.msra.mxu0 %v829
    %911 = vmatpush.bf16.msra.mxu0 %v825
    %912 = vmatpush.bf16.msra.mxu0 %v821
    %913 = vmatpush.bf16.msra.mxu0 %v817
    %914 = vmatpush.bf16.msra.mxu0 %v813
    %915 = vmatpush.bf16.msra.mxu0 %v809
    %916 = vmatpush.bf16.msra.mxu0 %v805
    %917 = vmatpush.bf16.msra.mxu0 %v801
    %918 = vmatmul.bf16.gmra.mxu0 %v567
    %v919 = vpop.f32.mrf.mxu0
    %v920 = vadd.f32 %v907, %v919
    %v921 = vpop.f32.mrf.mxu0
    %922 = vdwg.mxu0
    %923 = vmatpush.bf16.msra.mxu0 %v798
    %924 = vmatpush.bf16.msra.mxu0 %v794
    %925 = vmatpush.bf16.msra.mxu0 %v790
    %926 = vmatpush.bf16.msra.mxu0 %v786
    %927 = vmatpush.bf16.msra.mxu0 %v782
    %928 = vmatpush.bf16.msra.mxu0 %v778
    %929 = vmatpush.bf16.msra.mxu0 %v774
    %930 = vmatpush.bf16.msra.mxu0 %v770
    %931 = vmatmul.bf16.gmra.mxu0 %v350
    %v932 = vpop.f32.mrf.mxu0
    %v933 = vadd.f32 %v570, %v932
    %v934 = vpop.f32.mrf.mxu0
    %935 = vdwg.mxu0
    %936 = vmatpush.bf16.msra.mxu0 %v830
    %937 = vmatpush.bf16.msra.mxu0 %v826
    %938 = vmatpush.bf16.msra.mxu0 %v822
    %939 = vmatpush.bf16.msra.mxu0 %v818
    %940 = vmatpush.bf16.msra.mxu0 %v814
    %941 = vmatpush.bf16.msra.mxu0 %v810
    %942 = vmatpush.bf16.msra.mxu0 %v806
    %943 = vmatpush.bf16.msra.mxu0 %v802
    %944 = vmatmul.bf16.gmra.mxu0 %v567
    %v945 = vpop.f32.mrf.mxu0
    %v946 = vadd.f32 %v933, %v945
    %v947 = vpop.f32.mrf.mxu0
    %948 = vdwg.mxu0
    %949 = vmatpush.bf16.msra.mxu0 %v799
    %950 = vmatpush.bf16.msra.mxu0 %v795
    %951 = vmatpush.bf16.msra.mxu0 %v791
    %952 = vmatpush.bf16.msra.mxu0 %v787
    %953 = vmatpush.bf16.msra.mxu0 %v783
    %954 = vmatpush.bf16.msra.mxu0 %v779
    %955 = vmatpush.bf16.msra.mxu0 %v775
    %956 = vmatpush.bf16.msra.mxu0 %v771
    %957 = vmatmul.bf16.gmra.mxu0 %v350
    %v958 = vpop.f32.mrf.mxu0
    %v959 = vadd.f32 %v571, %v958
    %v960 = vpop.f32.mrf.mxu0
    %961 = vdwg.mxu0
    %962 = vmatpush.bf16.msra.mxu0 %v831
    %963 = vmatpush.bf16.msra.mxu0 %v827
    %964 = vmatpush.bf16.msra.mxu0 %v823
    %965 = vmatpush.bf16.msra.mxu0 %v819
    %966 = vmatpush.bf16.msra.mxu0 %v815
    %967 = vmatpush.bf16.msra.mxu0 %v811
    %968 = vmatpush.bf16.msra.mxu0 %v807
    %969 = vmatpush.bf16.msra.mxu0 %v803
    %970 = vmatmul.bf16.gmra.mxu0 %v567
    %v971 = vpop.f32.mrf.mxu0
    %v972 = vadd.f32 %v959, %v971
    %v973 = vpop.f32.mrf.mxu0
    %974 = vdwg.mxu0
    %975 = vmatpush.bf16.msra.mxu0 %v800
    %976 = vmatpush.bf16.msra.mxu0 %v796
    %977 = vmatpush.bf16.msra.mxu0 %v792
    %978 = vmatpush.bf16.msra.mxu0 %v788
    %979 = vmatpush.bf16.msra.mxu0 %v784
    %980 = vmatpush.bf16.msra.mxu0 %v780
    %981 = vmatpush.bf16.msra.mxu0 %v776
    %982 = vmatpush.bf16.msra.mxu0 %v772
    %983 = vmatmul.bf16.gmra.mxu0 %v350
    %v984 = vpop.f32.mrf.mxu0
    %v985 = vadd.f32 %v572, %v984
    %v986 = vpop.f32.mrf.mxu0
    %987 = vdwg.mxu0
    %988 = vmatpush.bf16.msra.mxu0 %v832
    %989 = vmatpush.bf16.msra.mxu0 %v828
    %990 = vmatpush.bf16.msra.mxu0 %v824
    %991 = vmatpush.bf16.msra.mxu0 %v820
    %992 = vmatpush.bf16.msra.mxu0 %v816
    %993 = vmatpush.bf16.msra.mxu0 %v812
    %994 = vmatpush.bf16.msra.mxu0 %v808
    %995 = vmatpush.bf16.msra.mxu0 %v804
    %996 = vmatmul.bf16.gmra.mxu0 %v567
    %v997 = vpop.f32.mrf.mxu0
    %v998 = vadd.f32 %v985, %v997
    %v999 = vpop.f32.mrf.mxu0
    %1000 = vdwg.mxu0
    %v1001 = vmul.f32 %v563, 0.5
    %v1002 = vtanh.pop %v1001
    %v1003 = vmul.f32 %v1002, 0.5
    %v1004 = vadd.f32 %v1003, 0.5
    %v1005 = vmul.f32 %v564, 0.5
    %v1006 = vtanh.pop %v1005
    %v1007 = vmul.f32 %v1006, 0.5
    %v1008 = vadd.f32 %v1007, 0.5
    %v1009 = vtanh.pop %v565
    %v1010 = vmul.f32 %v566, 0.5
    %v1011 = vtanh.pop %v1010
    %v1012 = vmul.f32 %v1011, 0.5
    %v1013 = vadd.f32 %v1012, 0.5
    %v1014 = vmul.f32 %v1008, %v342
    %v1015 = vmul.f32 %v1004, %v1009
    %v1016 = vadd.f32 %v1014, %v1015
    %v1017 = vtanh.pop %v1016
    %v1018 = vmul.f32 %v1013, %v1017
    %v1019 = vmul.f32 %v920, 0.5
    %v1020 = vtanh.pop %v1019
    %v1021 = vmul.f32 %v1020, 0.5
    %v1022 = vadd.f32 %v1021, 0.5
    %v1023 = vmul.f32 %v946, 0.5
    %v1024 = vtanh.pop %v1023
    %v1025 = vmul.f32 %v1024, 0.5
    %v1026 = vadd.f32 %v1025, 0.5
    %v1027 = vtanh.pop %v972
    %v1028 = vmul.f32 %v998, 0.5
    %v1029 = vtanh.pop %v1028
    %v1030 = vmul.f32 %v1029, 0.5
    %v1031 = vadd.f32 %v1030, 0.5
    %v1032 = vmul.f32 %v1026, 0.0
    %v1033 = vmul.f32 %v1022, %v1027
    %v1034 = vadd.f32 %v1032, %v1033
    %v1035 = vtanh.pop %v1034
    %v1036 = vmul.f32 %v1031, %v1035
    %s1037 = scalar_lea.vmem [#allocation2], 64
    %v1038 = vld [vmem:[%s1037] sm:$0xff]
    %v1039 = vld [vmem:[%s1037 + $0x8] sm:$0xff]
    %v1040 = vld [vmem:[%s1037 + $0x10] sm:$0xff]
    %v1041 = vld [vmem:[%s1037 + $0x18] sm:$0xff]
    %v1042 = vpack.c.bf16 %v1018, %v1018
    %1043 = vmatpush.bf16.msra.mxu0 %v475
    %1044 = vmatpush.bf16.msra.mxu0 %v471
    %1045 = vmatpush.bf16.msra.mxu0 %v467
    %1046 = vmatpush.bf16.msra.mxu0 %v463
    %1047 = vmatpush.bf16.msra.mxu0 %v459
    %1048 = vmatpush.bf16.msra.mxu0 %v455
    %1049 = vmatpush.bf16.msra.mxu0 %v451
    %1050 = vmatpush.bf16.msra.mxu0 %v447
    %1051 = vmatmul.bf16.gmra.mxu0 %v1042
    %v1052 = vpop.f32.mrf.mxu0
    %v1053 = vadd.f32 0.0, %v1052
    %v1054 = vpop.f32.mrf.mxu0
    %1055 = vdwg.mxu0
    %1056 = vmatpush.bf16.msra.mxu0 %v476
    %1057 = vmatpush.bf16.msra.mxu0 %v472
    %1058 = vmatpush.bf16.msra.mxu0 %v468
    %1059 = vmatpush.bf16.msra.mxu0 %v464
    %1060 = vmatpush.bf16.msra.mxu0 %v460
    %1061 = vmatpush.bf16.msra.mxu0 %v456
    %1062 = vmatpush.bf16.msra.mxu0 %v452
    %1063 = vmatpush.bf16.msra.mxu0 %v448
    %1064 = vmatmul.bf16.gmra.mxu0 %v1042
    %v1065 = vpop.f32.mrf.mxu0
    %v1066 = vadd.f32 0.0, %v1065
    %v1067 = vpop.f32.mrf.mxu0
    %1068 = vdwg.mxu0
    %1069 = vmatpush.bf16.msra.mxu0 %v477
    %1070 = vmatpush.bf16.msra.mxu0 %v473
    %1071 = vmatpush.bf16.msra.mxu0 %v469
    %1072 = vmatpush.bf16.msra.mxu0 %v465
    %1073 = vmatpush.bf16.msra.mxu0 %v461
    %1074 = vmatpush.bf16.msra.mxu0 %v457
    %1075 = vmatpush.bf16.msra.mxu0 %v453
    %1076 = vmatpush.bf16.msra.mxu0 %v449
    %1077 = vmatmul.bf16.gmra.mxu0 %v1042
    %v1078 = vpop.f32.mrf.mxu0
    %v1079 = vadd.f32 0.0, %v1078
    %v1080 = vpop.f32.mrf.mxu0
    %1081 = vdwg.mxu0
    %1082 = vmatpush.bf16.msra.mxu0 %v478
    %1083 = vmatpush.bf16.msra.mxu0 %v474
    %1084 = vmatpush.bf16.msra.mxu0 %v470
    %1085 = vmatpush.bf16.msra.mxu0 %v466
    %1086 = vmatpush.bf16.msra.mxu0 %v462
    %1087 = vmatpush.bf16.msra.mxu0 %v458
    %1088 = vmatpush.bf16.msra.mxu0 %v454
    %1089 = vmatpush.bf16.msra.mxu0 %v450
    %1090 = vmatmul.bf16.gmra.mxu0 %v1042
    %v1091 = vpop.f32.mrf.mxu0
    %v1092 = vadd.f32 0.0, %v1091
    %v1093 = vpop.f32.mrf.mxu0
    %1094 = vdwg.mxu0
    %v1095 = vadd.f32 %v1038, %v1053
    %v1096 = vadd.f32 %v1039, %v1066
    %v1097 = vadd.f32 %v1040, %v1079
    %v1098 = vadd.f32 %v1041, %v1092
    %v1099 = vpack.c.bf16 %v1036, %v1036
    %1100 = vmatpush.bf16.msra.mxu0 %v797
    %1101 = vmatpush.bf16.msra.mxu0 %v793
    %1102 = vmatpush.bf16.msra.mxu0 %v789
    %1103 = vmatpush.bf16.msra.mxu0 %v785
    %1104 = vmatpush.bf16.msra.mxu0 %v781
    %1105 = vmatpush.bf16.msra.mxu0 %v777
    %1106 = vmatpush.bf16.msra.mxu0 %v773
    %1107 = vmatpush.bf16.msra.mxu0 %v769
    %1108 = vmatmul.bf16.gmra.mxu0 %v1042
    %v1109 = vpop.f32.mrf.mxu0
    %v1110 = vadd.f32 %v569, %v1109
    %v1111 = vpop.f32.mrf.mxu0
    %1112 = vdwg.mxu0
    %1113 = vmatpush.bf16.msra.mxu0 %v829
    %1114 = vmatpush.bf16.msra.mxu0 %v825
    %1115 = vmatpush.bf16.msra.mxu0 %v821
    %1116 = vmatpush.bf16.msra.mxu0 %v817
    %1117 = vmatpush.bf16.msra.mxu0 %v813
    %1118 = vmatpush.bf16.msra.mxu0 %v809
    %1119 = vmatpush.bf16.msra.mxu0 %v805
    %1120 = vmatpush.bf16.msra.mxu0 %v801
    %1121 = vmatmul.bf16.gmra.mxu0 %v1099
    %v1122 = vpop.f32.mrf.mxu0
    %v1123 = vadd.f32 %v1110, %v1122
    %v1124 = vpop.f32.mrf.mxu0
    %1125 = vdwg.mxu0
    %1126 = vmatpush.bf16.msra.mxu0 %v798
    %1127 = vmatpush.bf16.msra.mxu0 %v794
    %1128 = vmatpush.bf16.msra.mxu0 %v790
    %1129 = vmatpush.bf16.msra.mxu0 %v786
    %1130 = vmatpush.bf16.msra.mxu0 %v782
    %1131 = vmatpush.bf16.msra.mxu0 %v778
    %1132 = vmatpush.bf16.msra.mxu0 %v774
    %1133 = vmatpush.bf16.msra.mxu0 %v770
    %1134 = vmatmul.bf16.gmra.mxu0 %v1042
    %v1135 = vpop.f32.mrf.mxu0
    %v1136 = vadd.f32 %v570, %v1135
    %v1137 = vpop.f32.mrf.mxu0
    %1138 = vdwg.mxu0
    %1139 = vmatpush.bf16.msra.mxu0 %v830
    %1140 = vmatpush.bf16.msra.mxu0 %v826
    %1141 = vmatpush.bf16.msra.mxu0 %v822
    %1142 = vmatpush.bf16.msra.mxu0 %v818
    %1143 = vmatpush.bf16.msra.mxu0 %v814
    %1144 = vmatpush.bf16.msra.mxu0 %v810
    %1145 = vmatpush.bf16.msra.mxu0 %v806
    %1146 = vmatpush.bf16.msra.mxu0 %v802
    %1147 = vmatmul.bf16.gmra.mxu0 %v1099
    %v1148 = vpop.f32.mrf.mxu0
    %v1149 = vadd.f32 %v1136, %v1148
    %v1150 = vpop.f32.mrf.mxu0
    %1151 = vdwg.mxu0
    %1152 = vmatpush.bf16.msra.mxu0 %v799
    %1153 = vmatpush.bf16.msra.mxu0 %v795
    %1154 = vmatpush.bf16.msra.mxu0 %v791
    %1155 = vmatpush.bf16.msra.mxu0 %v787
    %1156 = vmatpush.bf16.msra.mxu0 %v783
    %1157 = vmatpush.bf16.msra.mxu0 %v779
    %1158 = vmatpush.bf16.msra.mxu0 %v775
    %1159 = vmatpush.bf16.msra.mxu0 %v771
    %1160 = vmatmul.bf16.gmra.mxu0 %v1042
    %v1161 = vpop.f32.mrf.mxu0
    %v1162 = vadd.f32 %v571, %v1161
    %v1163 = vpop.f32.mrf.mxu0
    %1164 = vdwg.mxu0
    %1165 = vmatpush.bf16.msra.mxu0 %v831
    %1166 = vmatpush.bf16.msra.mxu0 %v827
    %1167 = vmatpush.bf16.msra.mxu0 %v823
    %1168 = vmatpush.bf16.msra.mxu0 %v819
    %1169 = vmatpush.bf16.msra.mxu0 %v815
    %1170 = vmatpush.bf16.msra.mxu0 %v811
    %1171 = vmatpush.bf16.msra.mxu0 %v807
    %1172 = vmatpush.bf16.msra.mxu0 %v803
    %1173 = vmatmul.bf16.gmra.mxu0 %v1099
    %v1174 = vpop.f32.mrf.mxu0
    %v1175 = vadd.f32 %v1162, %v1174
    %v1176 = vpop.f32.mrf.mxu0
    %1177 = vdwg.mxu0
    %1178 = vmatpush.bf16.msra.mxu0 %v800
    %1179 = vmatpush.bf16.msra.mxu0 %v796
    %1180 = vmatpush.bf16.msra.mxu0 %v792
    %1181 = vmatpush.bf16.msra.mxu0 %v788
    %1182 = vmatpush.bf16.msra.mxu0 %v784
    %1183 = vmatpush.bf16.msra.mxu0 %v780
    %1184 = vmatpush.bf16.msra.mxu0 %v776
    %1185 = vmatpush.bf16.msra.mxu0 %v772
    %1186 = vmatmul.bf16.gmra.mxu0 %v1042
    %v1187 = vpop.f32.mrf.mxu0
    %v1188 = vadd.f32 %v572, %v1187
    %v1189 = vpop.f32.mrf.mxu0
    %1190 = vdwg.mxu0
    %1191 = vmatpush.bf16.msra.mxu0 %v832
    %1192 = vmatpush.bf16.msra.mxu0 %v828
    %1193 = vmatpush.bf16.msra.mxu0 %v824
    %1194 = vmatpush.bf16.msra.mxu0 %v820
    %1195 = vmatpush.bf16.msra.mxu0 %v816
    %1196 = vmatpush.bf16.msra.mxu0 %v812
    %1197 = vmatpush.bf16.msra.mxu0 %v808
    %1198 = vmatpush.bf16.msra.mxu0 %v804
    %1199 = vmatmul.bf16.gmra.mxu0 %v1099
    %v1200 = vpop.f32.mrf.mxu0
    %v1201 = vadd.f32 %v1188, %v1200
    %v1202 = vpop.f32.mrf.mxu0
    %1203 = vdwg.mxu0
    %v1204 = vmul.f32 %v1095, 0.5
    %v1205 = vtanh.pop %v1204
    %v1206 = vmul.f32 %v1205, 0.5
    %v1207 = vadd.f32 %v1206, 0.5
    %v1208 = vmul.f32 %v1096, 0.5
    %v1209 = vtanh.pop %v1208
    %v1210 = vmul.f32 %v1209, 0.5
    %v1211 = vadd.f32 %v1210, 0.5
    %v1212 = vtanh.pop %v1097
    %v1213 = vmul.f32 %v1098, 0.5
    %v1214 = vtanh.pop %v1213
    %v1215 = vmul.f32 %v1214, 0.5
    %v1216 = vadd.f32 %v1215, 0.5
    %v1217 = vmul.f32 %v1211, %v1016
    %v1218 = vmul.f32 %v1207, %v1212
    %v1219 = vadd.f32 %v1217, %v1218
    %v1220 = vtanh.pop %v1219
    %v1221 = vmul.f32 %v1216, %v1220
    %v1222 = vmul.f32 %v1123, 0.5
    %v1223 = vtanh.pop %v1222
    %v1224 = vmul.f32 %v1223, 0.5
    %v1225 = vadd.f32 %v1224, 0.5
    %v1226 = vmul.f32 %v1149, 0.5
    %v1227 = vtanh.pop %v1226
    %v1228 = vmul.f32 %v1227, 0.5
    %v1229 = vadd.f32 %v1228, 0.5
    %v1230 = vtanh.pop %v1175
    %v1231 = vmul.f32 %v1201, 0.5
    %v1232 = vtanh.pop %v1231
    %v1233 = vmul.f32 %v1232, 0.5
    %v1234 = vadd.f32 %v1233, 0.5
    %v1235 = vmul.f32 %v1229, %v1034
    %v1236 = vmul.f32 %v1225, %v1230
    %v1237 = vadd.f32 %v1235, %v1236
    %v1238 = vtanh.pop %v1237
    %v1239 = vmul.f32 %v1234, %v1238
    %s1240 = scalar_lea.vmem [#allocation2], 96
    %v1241 = vld [vmem:[%s1240] sm:$0xff]
    %v1242 = vld [vmem:[%s1240 + $0x8] sm:$0xff]
    %v1243 = vld [vmem:[%s1240 + $0x10] sm:$0xff]
    %v1244 = vld [vmem:[%s1240 + $0x18] sm:$0xff]
    %v1245 = vpack.c.bf16 %v1221, %v1221
    %1246 = vmatpush.bf16.msra.mxu0 %v475
    %1247 = vmatpush.bf16.msra.mxu0 %v471
    %1248 = vmatpush.bf16.msra.mxu0 %v467
    %1249 = vmatpush.bf16.msra.mxu0 %v463
    %1250 = vmatpush.bf16.msra.mxu0 %v459
    %1251 = vmatpush.bf16.msra.mxu0 %v455
    %1252 = vmatpush.bf16.msra.mxu0 %v451
    %1253 = vmatpush.bf16.msra.mxu0 %v447
    %1254 = vmatmul.bf16.gmra.mxu0 %v1245
    %v1255 = vpop.f32.mrf.mxu0
    %v1256 = vadd.f32 0.0, %v1255
    %v1257 = vpop.f32.mrf.mxu0
    %1258 = vdwg.mxu0
    %1259 = vmatpush.bf16.msra.mxu0 %v476
    %1260 = vmatpush.bf16.msra.mxu0 %v472
    %1261 = vmatpush.bf16.msra.mxu0 %v468
    %1262 = vmatpush.bf16.msra.mxu0 %v464
    %1263 = vmatpush.bf16.msra.mxu0 %v460
    %1264 = vmatpush.bf16.msra.mxu0 %v456
    %1265 = vmatpush.bf16.msra.mxu0 %v452
    %1266 = vmatpush.bf16.msra.mxu0 %v448
    %1267 = vmatmul.bf16.gmra.mxu0 %v1245
    %v1268 = vpop.f32.mrf.mxu0
    %v1269 = vadd.f32 0.0, %v1268
    %v1270 = vpop.f32.mrf.mxu0
    %1271 = vdwg.mxu0
    %1272 = vmatpush.bf16.msra.mxu0 %v477
    %1273 = vmatpush.bf16.msra.mxu0 %v473
    %1274 = vmatpush.bf16.msra.mxu0 %v469
    %1275 = vmatpush.bf16.msra.mxu0 %v465
    %1276 = vmatpush.bf16.msra.mxu0 %v461
    %1277 = vmatpush.bf16.msra.mxu0 %v457
    %1278 = vmatpush.bf16.msra.mxu0 %v453
    %1279 = vmatpush.bf16.msra.mxu0 %v449
    %1280 = vmatmul.bf16.gmra.mxu0 %v1245
    %v1281 = vpop.f32.mrf.mxu0
    %v1282 = vadd.f32 0.0, %v1281
    %v1283 = vpop.f32.mrf.mxu0
    %1284 = vdwg.mxu0
    %1285 = vmatpush.bf16.msra.mxu0 %v478
    %1286 = vmatpush.bf16.msra.mxu0 %v474
    %1287 = vmatpush.bf16.msra.mxu0 %v470
    %1288 = vmatpush.bf16.msra.mxu0 %v466
    %1289 = vmatpush.bf16.msra.mxu0 %v462
    %1290 = vmatpush.bf16.msra.mxu0 %v458
    %1291 = vmatpush.bf16.msra.mxu0 %v454
    %1292 = vmatpush.bf16.msra.mxu0 %v450
    %1293 = vmatmul.bf16.gmra.mxu0 %v1245
    %v1294 = vpop.f32.mrf.mxu0
    %v1295 = vadd.f32 0.0, %v1294
    %v1296 = vpop.f32.mrf.mxu0
    %1297 = vdwg.mxu0
    %v1298 = vadd.f32 %v1241, %v1256
    %v1299 = vadd.f32 %v1242, %v1269
    %v1300 = vadd.f32 %v1243, %v1282
    %v1301 = vadd.f32 %v1244, %v1295
    %v1302 = vpack.c.bf16 %v1239, %v1239
    %1303 = vmatpush.bf16.msra.mxu0 %v797
    %1304 = vmatpush.bf16.msra.mxu0 %v793
    %1305 = vmatpush.bf16.msra.mxu0 %v789
    %1306 = vmatpush.bf16.msra.mxu0 %v785
    %1307 = vmatpush.bf16.msra.mxu0 %v781
    %1308 = vmatpush.bf16.msra.mxu0 %v777
    %1309 = vmatpush.bf16.msra.mxu0 %v773
    %1310 = vmatpush.bf16.msra.mxu0 %v769
    %1311 = vmatmul.bf16.gmra.mxu0 %v1245
    %v1312 = vpop.f32.mrf.mxu0
    %v1313 = vadd.f32 %v569, %v1312
    %v1314 = vpop.f32.mrf.mxu0
    %1315 = vdwg.mxu0
    %1316 = vmatpush.bf16.msra.mxu0 %v829
    %1317 = vmatpush.bf16.msra.mxu0 %v825
    %1318 = vmatpush.bf16.msra.mxu0 %v821
    %1319 = vmatpush.bf16.msra.mxu0 %v817
    %1320 = vmatpush.bf16.msra.mxu0 %v813
    %1321 = vmatpush.bf16.msra.mxu0 %v809
    %1322 = vmatpush.bf16.msra.mxu0 %v805
    %1323 = vmatpush.bf16.msra.mxu0 %v801
    %1324 = vmatmul.bf16.gmra.mxu0 %v1302
    %v1325 = vpop.f32.mrf.mxu0
    %v1326 = vadd.f32 %v1313, %v1325
    %v1327 = vpop.f32.mrf.mxu0
    %1328 = vdwg.mxu0
    %1329 = vmatpush.bf16.msra.mxu0 %v798
    %1330 = vmatpush.bf16.msra.mxu0 %v794
    %1331 = vmatpush.bf16.msra.mxu0 %v790
    %1332 = vmatpush.bf16.msra.mxu0 %v786
    %1333 = vmatpush.bf16.msra.mxu0 %v782
    %1334 = vmatpush.bf16.msra.mxu0 %v778
    %1335 = vmatpush.bf16.msra.mxu0 %v774
    %1336 = vmatpush.bf16.msra.mxu0 %v770
    %1337 = vmatmul.bf16.gmra.mxu0 %v1245
    %v1338 = vpop.f32.mrf.mxu0
    %v1339 = vadd.f32 %v570, %v1338
    %v1340 = vpop.f32.mrf.mxu0
    %1341 = vdwg.mxu0
    %1342 = vmatpush.bf16.msra.mxu0 %v830
    %1343 = vmatpush.bf16.msra.mxu0 %v826
    %1344 = vmatpush.bf16.msra.mxu0 %v822
    %1345 = vmatpush.bf16.msra.mxu0 %v818
    %1346 = vmatpush.bf16.msra.mxu0 %v814
    %1347 = vmatpush.bf16.msra.mxu0 %v810
    %1348 = vmatpush.bf16.msra.mxu0 %v806
    %1349 = vmatpush.bf16.msra.mxu0 %v802
    %1350 = vmatmul.bf16.gmra.mxu0 %v1302
    %v1351 = vpop.f32.mrf.mxu0
    %v1352 = vadd.f32 %v1339, %v1351
    %v1353 = vpop.f32.mrf.mxu0
    %1354 = vdwg.mxu0
    %1355 = vmatpush.bf16.msra.mxu0 %v799
    %1356 = vmatpush.bf16.msra.mxu0 %v795
    %1357 = vmatpush.bf16.msra.mxu0 %v791
    %1358 = vmatpush.bf16.msra.mxu0 %v787
    %1359 = vmatpush.bf16.msra.mxu0 %v783
    %1360 = vmatpush.bf16.msra.mxu0 %v779
    %1361 = vmatpush.bf16.msra.mxu0 %v775
    %1362 = vmatpush.bf16.msra.mxu0 %v771
    %1363 = vmatmul.bf16.gmra.mxu0 %v1245
    %v1364 = vpop.f32.mrf.mxu0
    %v1365 = vadd.f32 %v571, %v1364
    %v1366 = vpop.f32.mrf.mxu0
    %1367 = vdwg.mxu0
    %1368 = vmatpush.bf16.msra.mxu0 %v831
    %1369 = vmatpush.bf16.msra.mxu0 %v827
    %1370 = vmatpush.bf16.msra.mxu0 %v823
    %1371 = vmatpush.bf16.msra.mxu0 %v819
    %1372 = vmatpush.bf16.msra.mxu0 %v815
    %1373 = vmatpush.bf16.msra.mxu0 %v811
    %1374 = vmatpush.bf16.msra.mxu0 %v807
    %1375 = vmatpush.bf16.msra.mxu0 %v803
    %1376 = vmatmul.bf16.gmra.mxu0 %v1302
    %v1377 = vpop.f32.mrf.mxu0
    %v1378 = vadd.f32 %v1365, %v1377
    %v1379 = vpop.f32.mrf.mxu0
    %1380 = vdwg.mxu0
    %1381 = vmatpush.bf16.msra.mxu0 %v800
    %1382 = vmatpush.bf16.msra.mxu0 %v796
    %1383 = vmatpush.bf16.msra.mxu0 %v792
    %1384 = vmatpush.bf16.msra.mxu0 %v788
    %1385 = vmatpush.bf16.msra.mxu0 %v784
    %1386 = vmatpush.bf16.msra.mxu0 %v780
    %1387 = vmatpush.bf16.msra.mxu0 %v776
    %1388 = vmatpush.bf16.msra.mxu0 %v772
    %1389 = vmatmul.bf16.gmra.mxu0 %v1245
    %v1390 = vpop.f32.mrf.mxu0
    %v1391 = vadd.f32 %v572, %v1390
    %v1392 = vpop.f32.mrf.mxu0
    %1393 = vdwg.mxu0
    %1394 = vmatpush.bf16.msra.mxu0 %v832
    %1395 = vmatpush.bf16.msra.mxu0 %v828
    %1396 = vmatpush.bf16.msra.mxu0 %v824
    %1397 = vmatpush.bf16.msra.mxu0 %v820
    %1398 = vmatpush.bf16.msra.mxu0 %v816
    %1399 = vmatpush.bf16.msra.mxu0 %v812
    %1400 = vmatpush.bf16.msra.mxu0 %v808
    %1401 = vmatpush.bf16.msra.mxu0 %v804
    %1402 = vmatmul.bf16.gmra.mxu0 %v1302
    %v1403 = vpop.f32.mrf.mxu0
    %v1404 = vadd.f32 %v1391, %v1403
    %v1405 = vpop.f32.mrf.mxu0
    %1406 = vdwg.mxu0
    %v1407 = vmul.f32 %v1298, 0.5
    %v1408 = vtanh.pop %v1407
    %v1409 = vmul.f32 %v1408, 0.5
    %v1410 = vadd.f32 %v1409, 0.5
    %v1411 = vmul.f32 %v1299, 0.5
    %v1412 = vtanh.pop %v1411
    %v1413 = vmul.f32 %v1412, 0.5
    %v1414 = vadd.f32 %v1413, 0.5
    %v1415 = vtanh.pop %v1300
    %v1416 = vmul.f32 %v1301, 0.5
    %v1417 = vtanh.pop %v1416
    %v1418 = vmul.f32 %v1417, 0.5
    %v1419 = vadd.f32 %v1418, 0.5
    %v1420 = vmul.f32 %v1414, %v1219
    %v1421 = vmul.f32 %v1410, %v1415
    %v1422 = vadd.f32 %v1420, %v1421
    %v1423 = vtanh.pop %v1422
    %v1424 = vmul.f32 %v1419, %v1423
    %v1425 = vmul.f32 %v1326, 0.5
    %v1426 = vtanh.pop %v1425
    %v1427 = vmul.f32 %v1426, 0.5
    %v1428 = vadd.f32 %v1427, 0.5
    %v1429 = vmul.f32 %v1352, 0.5
    %v1430 = vtanh.pop %v1429
    %v1431 = vmul.f32 %v1430, 0.5
    %v1432 = vadd.f32 %v1431, 0.5
    %v1433 = vtanh.pop %v1378
    %v1434 = vmul.f32 %v1404, 0.5
    %v1435 = vtanh.pop %v1434
    %v1436 = vmul.f32 %v1435, 0.5
    %v1437 = vadd.f32 %v1436, 0.5
    %v1438 = vmul.f32 %v1432, %v1237
    %v1439 = vmul.f32 %v1428, %v1433
    %v1440 = vadd.f32 %v1438, %v1439
    %v1441 = vtanh.pop %v1440
    %v1442 = vmul.f32 %v1437, %v1441
    %s1443 = scalar_lea.vmem [#allocation2], 128
    %v1444 = vld [vmem:[%s1443] sm:$0xff]
    %v1445 = vld [vmem:[%s1443 + $0x8] sm:$0xff]
    %v1446 = vld [vmem:[%s1443 + $0x10] sm:$0xff]
    %v1447 = vld [vmem:[%s1443 + $0x18] sm:$0xff]
    %v1448 = vpack.c.bf16 %v1424, %v1424
    %1449 = vmatpush.bf16.msra.mxu0 %v475
    %1450 = vmatpush.bf16.msra.mxu0 %v471
    %1451 = vmatpush.bf16.msra.mxu0 %v467
    %1452 = vmatpush.bf16.msra.mxu0 %v463
    %1453 = vmatpush.bf16.msra.mxu0 %v459
    %1454 = vmatpush.bf16.msra.mxu0 %v455
    %1455 = vmatpush.bf16.msra.mxu0 %v451
    %1456 = vmatpush.bf16.msra.mxu0 %v447
    %1457 = vmatmul.bf16.gmra.mxu0 %v1448
    %v1458 = vpop.f32.mrf.mxu0
    %v1459 = vadd.f32 0.0, %v1458
    %v1460 = vpop.f32.mrf.mxu0
    %1461 = vdwg.mxu0
    %1462 = vmatpush.bf16.msra.mxu0 %v476
    %1463 = vmatpush.bf16.msra.mxu0 %v472
    %1464 = vmatpush.bf16.msra.mxu0 %v468
    %1465 = vmatpush.bf16.msra.mxu0 %v464
    %1466 = vmatpush.bf16.msra.mxu0 %v460
    %1467 = vmatpush.bf16.msra.mxu0 %v456
    %1468 = vmatpush.bf16.msra.mxu0 %v452
    %1469 = vmatpush.bf16.msra.mxu0 %v448
    %1470 = vmatmul.bf16.gmra.mxu0 %v1448
    %v1471 = vpop.f32.mrf.mxu0
    %v1472 = vadd.f32 0.0, %v1471
    %v1473 = vpop.f32.mrf.mxu0
    %1474 = vdwg.mxu0
    %1475 = vmatpush.bf16.msra.mxu0 %v477
    %1476 = vmatpush.bf16.msra.mxu0 %v473
    %1477 = vmatpush.bf16.msra.mxu0 %v469
    %1478 = vmatpush.bf16.msra.mxu0 %v465
    %1479 = vmatpush.bf16.msra.mxu0 %v461
    %1480 = vmatpush.bf16.msra.mxu0 %v457
    %1481 = vmatpush.bf16.msra.mxu0 %v453
    %1482 = vmatpush.bf16.msra.mxu0 %v449
    %1483 = vmatmul.bf16.gmra.mxu0 %v1448
    %v1484 = vpop.f32.mrf.mxu0
    %v1485 = vadd.f32 0.0, %v1484
    %v1486 = vpop.f32.mrf.mxu0
    %1487 = vdwg.mxu0
    %1488 = vmatpush.bf16.msra.mxu0 %v478
    %1489 = vmatpush.bf16.msra.mxu0 %v474
    %1490 = vmatpush.bf16.msra.mxu0 %v470
    %1491 = vmatpush.bf16.msra.mxu0 %v466
    %1492 = vmatpush.bf16.msra.mxu0 %v462
    %1493 = vmatpush.bf16.msra.mxu0 %v458
    %1494 = vmatpush.bf16.msra.mxu0 %v454
    %1495 = vmatpush.bf16.msra.mxu0 %v450
    %1496 = vmatmul.bf16.gmra.mxu0 %v1448
    %v1497 = vpop.f32.mrf.mxu0
    %v1498 = vadd.f32 0.0, %v1497
    %v1499 = vpop.f32.mrf.mxu0
    %1500 = vdwg.mxu0
    %v1501 = vadd.f32 %v1444, %v1459
    %v1502 = vadd.f32 %v1445, %v1472
    %v1503 = vadd.f32 %v1446, %v1485
    %v1504 = vadd.f32 %v1447, %v1498
    %v1505 = vpack.c.bf16 %v1442, %v1442
    %1506 = vmatpush.bf16.msra.mxu0 %v797
    %1507 = vmatpush.bf16.msra.mxu0 %v793
    %1508 = vmatpush.bf16.msra.mxu0 %v789
    %1509 = vmatpush.bf16.msra.mxu0 %v785
    %1510 = vmatpush.bf16.msra.mxu0 %v781
    %1511 = vmatpush.bf16.msra.mxu0 %v777
    %1512 = vmatpush.bf16.msra.mxu0 %v773
    %1513 = vmatpush.bf16.msra.mxu0 %v769
    %1514 = vmatmul.bf16.gmra.mxu0 %v1448
    %v1515 = vpop.f32.mrf.mxu0
    %v1516 = vadd.f32 %v569, %v1515
    %v1517 = vpop.f32.mrf.mxu0
    %1518 = vdwg.mxu0
    %1519 = vmatpush.bf16.msra.mxu0 %v829
    %1520 = vmatpush.bf16.msra.mxu0 %v825
    %1521 = vmatpush.bf16.msra.mxu0 %v821
    %1522 = vmatpush.bf16.msra.mxu0 %v817
    %1523 = vmatpush.bf16.msra.mxu0 %v813
    %1524 = vmatpush.bf16.msra.mxu0 %v809
    %1525 = vmatpush.bf16.msra.mxu0 %v805
    %1526 = vmatpush.bf16.msra.mxu0 %v801
    %1527 = vmatmul.bf16.gmra.mxu0 %v1505
    %v1528 = vpop.f32.mrf.mxu0
    %v1529 = vadd.f32 %v1516, %v1528
    %v1530 = vpop.f32.mrf.mxu0
    %1531 = vdwg.mxu0
    %1532 = vmatpush.bf16.msra.mxu0 %v798
    %1533 = vmatpush.bf16.msra.mxu0 %v794
    %1534 = vmatpush.bf16.msra.mxu0 %v790
    %1535 = vmatpush.bf16.msra.mxu0 %v786
    %1536 = vmatpush.bf16.msra.mxu0 %v782
    %1537 = vmatpush.bf16.msra.mxu0 %v778
    %1538 = vmatpush.bf16.msra.mxu0 %v774
    %1539 = vmatpush.bf16.msra.mxu0 %v770
    %1540 = vmatmul.bf16.gmra.mxu0 %v1448
    %v1541 = vpop.f32.mrf.mxu0
    %v1542 = vadd.f32 %v570, %v1541
    %v1543 = vpop.f32.mrf.mxu0
    %1544 = vdwg.mxu0
    %1545 = vmatpush.bf16.msra.mxu0 %v830
    %1546 = vmatpush.bf16.msra.mxu0 %v826
    %1547 = vmatpush.bf16.msra.mxu0 %v822
    %1548 = vmatpush.bf16.msra.mxu0 %v818
    %1549 = vmatpush.bf16.msra.mxu0 %v814
    %1550 = vmatpush.bf16.msra.mxu0 %v810
    %1551 = vmatpush.bf16.msra.mxu0 %v806
    %1552 = vmatpush.bf16.msra.mxu0 %v802
    %1553 = vmatmul.bf16.gmra.mxu0 %v1505
    %v1554 = vpop.f32.mrf.mxu0
    %v1555 = vadd.f32 %v1542, %v1554
    %v1556 = vpop.f32.mrf.mxu0
    %1557 = vdwg.mxu0
    %1558 = vmatpush.bf16.msra.mxu0 %v799
    %1559 = vmatpush.bf16.msra.mxu0 %v795
    %1560 = vmatpush.bf16.msra.mxu0 %v791
    %1561 = vmatpush.bf16.msra.mxu0 %v787
    %1562 = vmatpush.bf16.msra.mxu0 %v783
    %1563 = vmatpush.bf16.msra.mxu0 %v779
    %1564 = vmatpush.bf16.msra.mxu0 %v775
    %1565 = vmatpush.bf16.msra.mxu0 %v771
    %1566 = vmatmul.bf16.gmra.mxu0 %v1448
    %v1567 = vpop.f32.mrf.mxu0
    %v1568 = vadd.f32 %v571, %v1567
    %v1569 = vpop.f32.mrf.mxu0
    %1570 = vdwg.mxu0
    %1571 = vmatpush.bf16.msra.mxu0 %v831
    %1572 = vmatpush.bf16.msra.mxu0 %v827
    %1573 = vmatpush.bf16.msra.mxu0 %v823
    %1574 = vmatpush.bf16.msra.mxu0 %v819
    %1575 = vmatpush.bf16.msra.mxu0 %v815
    %1576 = vmatpush.bf16.msra.mxu0 %v811
    %1577 = vmatpush.bf16.msra.mxu0 %v807
    %1578 = vmatpush.bf16.msra.mxu0 %v803
    %1579 = vmatmul.bf16.gmra.mxu0 %v1505
    %v1580 = vpop.f32.mrf.mxu0
    %v1581 = vadd.f32 %v1568, %v1580
    %v1582 = vpop.f32.mrf.mxu0
    %1583 = vdwg.mxu0
    %1584 = vmatpush.bf16.msra.mxu0 %v800
    %1585 = vmatpush.bf16.msra.mxu0 %v796
    %1586 = vmatpush.bf16.msra.mxu0 %v792
    %1587 = vmatpush.bf16.msra.mxu0 %v788
    %1588 = vmatpush.bf16.msra.mxu0 %v784
    %1589 = vmatpush.bf16.msra.mxu0 %v780
    %1590 = vmatpush.bf16.msra.mxu0 %v776
    %1591 = vmatpush.bf16.msra.mxu0 %v772
    %1592 = vmatmul.bf16.gmra.mxu0 %v1448
    %v1593 = vpop.f32.mrf.mxu0
    %v1594 = vadd.f32 %v572, %v1593
    %v1595 = vpop.f32.mrf.mxu0
    %1596 = vdwg.mxu0
    %1597 = vmatpush.bf16.msra.mxu0 %v832
    %1598 = vmatpush.bf16.msra.mxu0 %v828
    %1599 = vmatpush.bf16.msra.mxu0 %v824
    %1600 = vmatpush.bf16.msra.mxu0 %v820
    %1601 = vmatpush.bf16.msra.mxu0 %v816
    %1602 = vmatpush.bf16.msra.mxu0 %v812
    %1603 = vmatpush.bf16.msra.mxu0 %v808
    %1604 = vmatpush.bf16.msra.mxu0 %v804
    %1605 = vmatmul.bf16.gmra.mxu0 %v1505
    %v1606 = vpop.f32.mrf.mxu0
    %v1607 = vadd.f32 %v1594, %v1606
    %v1608 = vpop.f32.mrf.mxu0
    %1609 = vdwg.mxu0
    %v1610 = vmul.f32 %v1501, 0.5
    %v1611 = vtanh.pop %v1610
    %v1612 = vmul.f32 %v1611, 0.5
    %v1613 = vadd.f32 %v1612, 0.5
    %v1614 = vmul.f32 %v1502, 0.5
    %v1615 = vtanh.pop %v1614
    %v1616 = vmul.f32 %v1615, 0.5
    %v1617 = vadd.f32 %v1616, 0.5
    %v1618 = vtanh.pop %v1503
    %v1619 = vmul.f32 %v1504, 0.5
    %v1620 = vtanh.pop %v1619
    %v1621 = vmul.f32 %v1620, 0.5
    %v1622 = vadd.f32 %v1621, 0.5
    %v1623 = vmul.f32 %v1617, %v1422
    %v1624 = vmul.f32 %v1613, %v1618
    %v1625 = vadd.f32 %v1623, %v1624
    %v1626 = vtanh.pop %v1625
    %v1627 = vmul.f32 %v1622, %v1626
    %v1628 = vmul.f32 %v1529, 0.5
    %v1629 = vtanh.pop %v1628
    %v1630 = vmul.f32 %v1629, 0.5
    %v1631 = vadd.f32 %v1630, 0.5
    %v1632 = vmul.f32 %v1555, 0.5
    %v1633 = vtanh.pop %v1632
    %v1634 = vmul.f32 %v1633, 0.5
    %v1635 = vadd.f32 %v1634, 0.5
    %v1636 = vtanh.pop %v1581
    %v1637 = vmul.f32 %v1607, 0.5
    %v1638 = vtanh.pop %v1637
    %v1639 = vmul.f32 %v1638, 0.5
    %v1640 = vadd.f32 %v1639, 0.5
    %v1641 = vmul.f32 %v1635, %v1440
    %v1642 = vmul.f32 %v1631, %v1636
    %v1643 = vadd.f32 %v1641, %v1642
    %v1644 = vtanh.pop %v1643
    %v1645 = vmul.f32 %v1640, %v1644
    %s1646 = scalar_lea.vmem [#allocation2], 160
    %v1647 = vld [vmem:[%s1646] sm:$0xff]
    %v1648 = vld [vmem:[%s1646 + $0x8] sm:$0xff]
    %v1649 = vld [vmem:[%s1646 + $0x10] sm:$0xff]
    %v1650 = vld [vmem:[%s1646 + $0x18] sm:$0xff]
    %v1651 = vpack.c.bf16 %v1627, %v1627
    %1652 = vmatpush.bf16.msra.mxu0 %v475
    %1653 = vmatpush.bf16.msra.mxu0 %v471
    %1654 = vmatpush.bf16.msra.mxu0 %v467
    %1655 = vmatpush.bf16.msra.mxu0 %v463
    %1656 = vmatpush.bf16.msra.mxu0 %v459
    %1657 = vmatpush.bf16.msra.mxu0 %v455
    %1658 = vmatpush.bf16.msra.mxu0 %v451
    %1659 = vmatpush.bf16.msra.mxu0 %v447
    %1660 = vmatmul.bf16.gmra.mxu0 %v1651
    %v1661 = vpop.f32.mrf.mxu0
    %v1662 = vadd.f32 0.0, %v1661
    %v1663 = vpop.f32.mrf.mxu0
    %1664 = vdwg.mxu0
    %1665 = vmatpush.bf16.msra.mxu0 %v476
    %1666 = vmatpush.bf16.msra.mxu0 %v472
    %1667 = vmatpush.bf16.msra.mxu0 %v468
    %1668 = vmatpush.bf16.msra.mxu0 %v464
    %1669 = vmatpush.bf16.msra.mxu0 %v460
    %1670 = vmatpush.bf16.msra.mxu0 %v456
    %1671 = vmatpush.bf16.msra.mxu0 %v452
    %1672 = vmatpush.bf16.msra.mxu0 %v448
    %1673 = vmatmul.bf16.gmra.mxu0 %v1651
    %v1674 = vpop.f32.mrf.mxu0
    %v1675 = vadd.f32 0.0, %v1674
    %v1676 = vpop.f32.mrf.mxu0
    %1677 = vdwg.mxu0
    %1678 = vmatpush.bf16.msra.mxu0 %v477
    %1679 = vmatpush.bf16.msra.mxu0 %v473
    %1680 = vmatpush.bf16.msra.mxu0 %v469
    %1681 = vmatpush.bf16.msra.mxu0 %v465
    %1682 = vmatpush.bf16.msra.mxu0 %v461
    %1683 = vmatpush.bf16.msra.mxu0 %v457
    %1684 = vmatpush.bf16.msra.mxu0 %v453
    %1685 = vmatpush.bf16.msra.mxu0 %v449
    %1686 = vmatmul.bf16.gmra.mxu0 %v1651
    %v1687 = vpop.f32.mrf.mxu0
    %v1688 = vadd.f32 0.0, %v1687
    %v1689 = vpop.f32.mrf.mxu0
    %1690 = vdwg.mxu0
    %1691 = vmatpush.bf16.msra.mxu0 %v478
    %1692 = vmatpush.bf16.msra.mxu0 %v474
    %1693 = vmatpush.bf16.msra.mxu0 %v470
    %1694 = vmatpush.bf16.msra.mxu0 %v466
    %1695 = vmatpush.bf16.msra.mxu0 %v462
    %1696 = vmatpush.bf16.msra.mxu0 %v458
    %1697 = vmatpush.bf16.msra.mxu0 %v454
    %1698 = vmatpush.bf16.msra.mxu0 %v450
    %1699 = vmatmul.bf16.gmra.mxu0 %v1651
    %v1700 = vpop.f32.mrf.mxu0
    %v1701 = vadd.f32 0.0, %v1700
    %v1702 = vpop.f32.mrf.mxu0
    %1703 = vdwg.mxu0
    %v1704 = vadd.f32 %v1647, %v1662
    %v1705 = vadd.f32 %v1648, %v1675
    %v1706 = vadd.f32 %v1649, %v1688
    %v1707 = vadd.f32 %v1650, %v1701
    %v1708 = vpack.c.bf16 %v1645, %v1645
    %1709 = vmatpush.bf16.msra.mxu0 %v797
    %1710 = vmatpush.bf16.msra.mxu0 %v793
    %1711 = vmatpush.bf16.msra.mxu0 %v789
    %1712 = vmatpush.bf16.msra.mxu0 %v785
    %1713 = vmatpush.bf16.msra.mxu0 %v781
    %1714 = vmatpush.bf16.msra.mxu0 %v777
    %1715 = vmatpush.bf16.msra.mxu0 %v773
    %1716 = vmatpush.bf16.msra.mxu0 %v769
    %1717 = vmatmul.bf16.gmra.mxu0 %v1651
    %v1718 = vpop.f32.mrf.mxu0
    %v1719 = vadd.f32 %v569, %v1718
    %v1720 = vpop.f32.mrf.mxu0
    %1721 = vdwg.mxu0
    %1722 = vmatpush.bf16.msra.mxu0 %v829
    %1723 = vmatpush.bf16.msra.mxu0 %v825
    %1724 = vmatpush.bf16.msra.mxu0 %v821
    %1725 = vmatpush.bf16.msra.mxu0 %v817
    %1726 = vmatpush.bf16.msra.mxu0 %v813
    %1727 = vmatpush.bf16.msra.mxu0 %v809
    %1728 = vmatpush.bf16.msra.mxu0 %v805
    %1729 = vmatpush.bf16.msra.mxu0 %v801
    %1730 = vmatmul.bf16.gmra.mxu0 %v1708
    %v1731 = vpop.f32.mrf.mxu0
    %v1732 = vadd.f32 %v1719, %v1731
    %v1733 = vpop.f32.mrf.mxu0
    %1734 = vdwg.mxu0
    %1735 = vmatpush.bf16.msra.mxu0 %v798
    %1736 = vmatpush.bf16.msra.mxu0 %v794
    %1737 = vmatpush.bf16.msra.mxu0 %v790
    %1738 = vmatpush.bf16.msra.mxu0 %v786
    %1739 = vmatpush.bf16.msra.mxu0 %v782
    %1740 = vmatpush.bf16.msra.mxu0 %v778
    %1741 = vmatpush.bf16.msra.mxu0 %v774
    %1742 = vmatpush.bf16.msra.mxu0 %v770
    %1743 = vmatmul.bf16.gmra.mxu0 %v1651
    %v1744 = vpop.f32.mrf.mxu0
    %v1745 = vadd.f32 %v570, %v1744
    %v1746 = vpop.f32.mrf.mxu0
    %1747 = vdwg.mxu0
    %1748 = vmatpush.bf16.msra.mxu0 %v830
    %1749 = vmatpush.bf16.msra.mxu0 %v826
    %1750 = vmatpush.bf16.msra.mxu0 %v822
    %1751 = vmatpush.bf16.msra.mxu0 %v818
    %1752 = vmatpush.bf16.msra.mxu0 %v814
    %1753 = vmatpush.bf16.msra.mxu0 %v810
    %1754 = vmatpush.bf16.msra.mxu0 %v806
    %1755 = vmatpush.bf16.msra.mxu0 %v802
    %1756 = vmatmul.bf16.gmra.mxu0 %v1708
    %v1757 = vpop.f32.mrf.mxu0
    %v1758 = vadd.f32 %v1745, %v1757
    %v1759 = vpop.f32.mrf.mxu0
    %1760 = vdwg.mxu0
    %1761 = vmatpush.bf16.msra.mxu0 %v799
    %1762 = vmatpush.bf16.msra.mxu0 %v795
    %1763 = vmatpush.bf16.msra.mxu0 %v791
    %1764 = vmatpush.bf16.msra.mxu0 %v787
    %1765 = vmatpush.bf16.msra.mxu0 %v783
    %1766 = vmatpush.bf16.msra.mxu0 %v779
    %1767 = vmatpush.bf16.msra.mxu0 %v775
    %1768 = vmatpush.bf16.msra.mxu0 %v771
    %1769 = vmatmul.bf16.gmra.mxu0 %v1651
    %v1770 = vpop.f32.mrf.mxu0
    %v1771 = vadd.f32 %v571, %v1770
    %v1772 = vpop.f32.mrf.mxu0
    %1773 = vdwg.mxu0
    %1774 = vmatpush.bf16.msra.mxu0 %v831
    %1775 = vmatpush.bf16.msra.mxu0 %v827
    %1776 = vmatpush.bf16.msra.mxu0 %v823
    %1777 = vmatpush.bf16.msra.mxu0 %v819
    %1778 = vmatpush.bf16.msra.mxu0 %v815
    %1779 = vmatpush.bf16.msra.mxu0 %v811
    %1780 = vmatpush.bf16.msra.mxu0 %v807
    %1781 = vmatpush.bf16.msra.mxu0 %v803
    %1782 = vmatmul.bf16.gmra.mxu0 %v1708
    %v1783 = vpop.f32.mrf.mxu0
    %v1784 = vadd.f32 %v1771, %v1783
    %v1785 = vpop.f32.mrf.mxu0
    %1786 = vdwg.mxu0
    %1787 = vmatpush.bf16.msra.mxu0 %v800
    %1788 = vmatpush.bf16.msra.mxu0 %v796
    %1789 = vmatpush.bf16.msra.mxu0 %v792
    %1790 = vmatpush.bf16.msra.mxu0 %v788
    %1791 = vmatpush.bf16.msra.mxu0 %v784
    %1792 = vmatpush.bf16.msra.mxu0 %v780
    %1793 = vmatpush.bf16.msra.mxu0 %v776
    %1794 = vmatpush.bf16.msra.mxu0 %v772
    %1795 = vmatmul.bf16.gmra.mxu0 %v1651
    %v1796 = vpop.f32.mrf.mxu0
    %v1797 = vadd.f32 %v572, %v1796
    %v1798 = vpop.f32.mrf.mxu0
    %1799 = vdwg.mxu0
    %1800 = vmatpush.bf16.msra.mxu0 %v832
    %1801 = vmatpush.bf16.msra.mxu0 %v828
    %1802 = vmatpush.bf16.msra.mxu0 %v824
    %1803 = vmatpush.bf16.msra.mxu0 %v820
    %1804 = vmatpush.bf16.msra.mxu0 %v816
    %1805 = vmatpush.bf16.msra.mxu0 %v812
    %1806 = vmatpush.bf16.msra.mxu0 %v808
    %1807 = vmatpush.bf16.msra.mxu0 %v804
    %1808 = vmatmul.bf16.gmra.mxu0 %v1708
    %v1809 = vpop.f32.mrf.mxu0
    %v1810 = vadd.f32 %v1797, %v1809
    %v1811 = vpop.f32.mrf.mxu0
    %1812 = vdwg.mxu0
    %v1813 = vmul.f32 %v1704, 0.5
    %v1814 = vtanh.pop %v1813
    %v1815 = vmul.f32 %v1814, 0.5
    %v1816 = vadd.f32 %v1815, 0.5
    %v1817 = vmul.f32 %v1705, 0.5
    %v1818 = vtanh.pop %v1817
    %v1819 = vmul.f32 %v1818, 0.5
    %v1820 = vadd.f32 %v1819, 0.5
    %v1821 = vtanh.pop %v1706
    %v1822 = vmul.f32 %v1707, 0.5
    %v1823 = vtanh.pop %v1822
    %v1824 = vmul.f32 %v1823, 0.5
    %v1825 = vadd.f32 %v1824, 0.5
    %v1826 = vmul.f32 %v1820, %v1625
    %v1827 = vmul.f32 %v1816, %v1821
    %v1828 = vadd.f32 %v1826, %v1827
    %v1829 = vtanh.pop %v1828
    %v1830 = vmul.f32 %v1825, %v1829
    %v1831 = vmul.f32 %v1732, 0.5
    %v1832 = vtanh.pop %v1831
    %v1833 = vmul.f32 %v1832, 0.5
    %v1834 = vadd.f32 %v1833, 0.5
    %v1835 = vmul.f32 %v1758, 0.5
    %v1836 = vtanh.pop %v1835
    %v1837 = vmul.f32 %v1836, 0.5
    %v1838 = vadd.f32 %v1837, 0.5
    %v1839 = vtanh.pop %v1784
    %v1840 = vmul.f32 %v1810, 0.5
    %v1841 = vtanh.pop %v1840
    %v1842 = vmul.f32 %v1841, 0.5
    %v1843 = vadd.f32 %v1842, 0.5
    %v1844 = vmul.f32 %v1838, %v1643
    %v1845 = vmul.f32 %v1834, %v1839
    %v1846 = vadd.f32 %v1844, %v1845
    %v1847 = vtanh.pop %v1846
    %v1848 = vmul.f32 %v1843, %v1847
    %s1849 = scalar_lea.vmem [#allocation2], 192
    %v1850 = vld [vmem:[%s1849] sm:$0xff]
    %v1851 = vld [vmem:[%s1849 + $0x8] sm:$0xff]
    %v1852 = vld [vmem:[%s1849 + $0x10] sm:$0xff]
    %v1853 = vld [vmem:[%s1849 + $0x18] sm:$0xff]
    %v1854 = vpack.c.bf16 %v1830, %v1830
    %1855 = vmatpush.bf16.msra.mxu0 %v475
    %1856 = vmatpush.bf16.msra.mxu0 %v471
    %1857 = vmatpush.bf16.msra.mxu0 %v467
    %1858 = vmatpush.bf16.msra.mxu0 %v463
    %1859 = vmatpush.bf16.msra.mxu0 %v459
    %1860 = vmatpush.bf16.msra.mxu0 %v455
    %1861 = vmatpush.bf16.msra.mxu0 %v451
    %1862 = vmatpush.bf16.msra.mxu0 %v447
    %1863 = vmatmul.bf16.gmra.mxu0 %v1854
    %v1864 = vpop.f32.mrf.mxu0
    %v1865 = vadd.f32 0.0, %v1864
    %v1866 = vpop.f32.mrf.mxu0
    %1867 = vdwg.mxu0
    %1868 = vmatpush.bf16.msra.mxu0 %v476
    %1869 = vmatpush.bf16.msra.mxu0 %v472
    %1870 = vmatpush.bf16.msra.mxu0 %v468
    %1871 = vmatpush.bf16.msra.mxu0 %v464
    %1872 = vmatpush.bf16.msra.mxu0 %v460
    %1873 = vmatpush.bf16.msra.mxu0 %v456
    %1874 = vmatpush.bf16.msra.mxu0 %v452
    %1875 = vmatpush.bf16.msra.mxu0 %v448
    %1876 = vmatmul.bf16.gmra.mxu0 %v1854
    %v1877 = vpop.f32.mrf.mxu0
    %v1878 = vadd.f32 0.0, %v1877
    %v1879 = vpop.f32.mrf.mxu0
    %1880 = vdwg.mxu0
    %1881 = vmatpush.bf16.msra.mxu0 %v477
    %1882 = vmatpush.bf16.msra.mxu0 %v473
    %1883 = vmatpush.bf16.msra.mxu0 %v469
    %1884 = vmatpush.bf16.msra.mxu0 %v465
    %1885 = vmatpush.bf16.msra.mxu0 %v461
    %1886 = vmatpush.bf16.msra.mxu0 %v457
    %1887 = vmatpush.bf16.msra.mxu0 %v453
    %1888 = vmatpush.bf16.msra.mxu0 %v449
    %1889 = vmatmul.bf16.gmra.mxu0 %v1854
    %v1890 = vpop.f32.mrf.mxu0
    %v1891 = vadd.f32 0.0, %v1890
    %v1892 = vpop.f32.mrf.mxu0
    %1893 = vdwg.mxu0
    %1894 = vmatpush.bf16.msra.mxu0 %v478
    %1895 = vmatpush.bf16.msra.mxu0 %v474
    %1896 = vmatpush.bf16.msra.mxu0 %v470
    %1897 = vmatpush.bf16.msra.mxu0 %v466
    %1898 = vmatpush.bf16.msra.mxu0 %v462
    %1899 = vmatpush.bf16.msra.mxu0 %v458
    %1900 = vmatpush.bf16.msra.mxu0 %v454
    %1901 = vmatpush.bf16.msra.mxu0 %v450
    %1902 = vmatmul.bf16.gmra.mxu0 %v1854
    %v1903 = vpop.f32.mrf.mxu0
    %v1904 = vadd.f32 0.0, %v1903
    %v1905 = vpop.f32.mrf.mxu0
    %1906 = vdwg.mxu0
    %v1907 = vadd.f32 %v1850, %v1865
    %v1908 = vadd.f32 %v1851, %v1878
    %v1909 = vadd.f32 %v1852, %v1891
    %v1910 = vadd.f32 %v1853, %v1904
    %v1911 = vpack.c.bf16 %v1848, %v1848
    %1912 = vmatpush.bf16.msra.mxu0 %v797
    %1913 = vmatpush.bf16.msra.mxu0 %v793
    %1914 = vmatpush.bf16.msra.mxu0 %v789
    %1915 = vmatpush.bf16.msra.mxu0 %v785
    %1916 = vmatpush.bf16.msra.mxu0 %v781
    %1917 = vmatpush.bf16.msra.mxu0 %v777
    %1918 = vmatpush.bf16.msra.mxu0 %v773
    %1919 = vmatpush.bf16.msra.mxu0 %v769
    %1920 = vmatmul.bf16.gmra.mxu0 %v1854
    %v1921 = vpop.f32.mrf.mxu0
    %v1922 = vadd.f32 %v569, %v1921
    %v1923 = vpop.f32.mrf.mxu0
    %1924 = vdwg.mxu0
    %1925 = vmatpush.bf16.msra.mxu0 %v829
    %1926 = vmatpush.bf16.msra.mxu0 %v825
    %1927 = vmatpush.bf16.msra.mxu0 %v821
    %1928 = vmatpush.bf16.msra.mxu0 %v817
    %1929 = vmatpush.bf16.msra.mxu0 %v813
    %1930 = vmatpush.bf16.msra.mxu0 %v809
    %1931 = vmatpush.bf16.msra.mxu0 %v805
    %1932 = vmatpush.bf16.msra.mxu0 %v801
    %1933 = vmatmul.bf16.gmra.mxu0 %v1911
    %v1934 = vpop.f32.mrf.mxu0
    %v1935 = vadd.f32 %v1922, %v1934
    %v1936 = vpop.f32.mrf.mxu0
    %1937 = vdwg.mxu0
    %1938 = vmatpush.bf16.msra.mxu0 %v798
    %1939 = vmatpush.bf16.msra.mxu0 %v794
    %1940 = vmatpush.bf16.msra.mxu0 %v790
    %1941 = vmatpush.bf16.msra.mxu0 %v786
    %1942 = vmatpush.bf16.msra.mxu0 %v782
    %1943 = vmatpush.bf16.msra.mxu0 %v778
    %1944 = vmatpush.bf16.msra.mxu0 %v774
    %1945 = vmatpush.bf16.msra.mxu0 %v770
    %1946 = vmatmul.bf16.gmra.mxu0 %v1854
    %v1947 = vpop.f32.mrf.mxu0
    %v1948 = vadd.f32 %v570, %v1947
    %v1949 = vpop.f32.mrf.mxu0
    %1950 = vdwg.mxu0
    %1951 = vmatpush.bf16.msra.mxu0 %v830
    %1952 = vmatpush.bf16.msra.mxu0 %v826
    %1953 = vmatpush.bf16.msra.mxu0 %v822
    %1954 = vmatpush.bf16.msra.mxu0 %v818
    %1955 = vmatpush.bf16.msra.mxu0 %v814
    %1956 = vmatpush.bf16.msra.mxu0 %v810
    %1957 = vmatpush.bf16.msra.mxu0 %v806
    %1958 = vmatpush.bf16.msra.mxu0 %v802
    %1959 = vmatmul.bf16.gmra.mxu0 %v1911
    %v1960 = vpop.f32.mrf.mxu0
    %v1961 = vadd.f32 %v1948, %v1960
    %v1962 = vpop.f32.mrf.mxu0
    %1963 = vdwg.mxu0
    %1964 = vmatpush.bf16.msra.mxu0 %v799
    %1965 = vmatpush.bf16.msra.mxu0 %v795
    %1966 = vmatpush.bf16.msra.mxu0 %v791
    %1967 = vmatpush.bf16.msra.mxu0 %v787
    %1968 = vmatpush.bf16.msra.mxu0 %v783
    %1969 = vmatpush.bf16.msra.mxu0 %v779
    %1970 = vmatpush.bf16.msra.mxu0 %v775
    %1971 = vmatpush.bf16.msra.mxu0 %v771
    %1972 = vmatmul.bf16.gmra.mxu0 %v1854
    %v1973 = vpop.f32.mrf.mxu0
    %v1974 = vadd.f32 %v571, %v1973
    %v1975 = vpop.f32.mrf.mxu0
    %1976 = vdwg.mxu0
    %1977 = vmatpush.bf16.msra.mxu0 %v831
    %1978 = vmatpush.bf16.msra.mxu0 %v827
    %1979 = vmatpush.bf16.msra.mxu0 %v823
    %1980 = vmatpush.bf16.msra.mxu0 %v819
    %1981 = vmatpush.bf16.msra.mxu0 %v815
    %1982 = vmatpush.bf16.msra.mxu0 %v811
    %1983 = vmatpush.bf16.msra.mxu0 %v807
    %1984 = vmatpush.bf16.msra.mxu0 %v803
    %1985 = vmatmul.bf16.gmra.mxu0 %v1911
    %v1986 = vpop.f32.mrf.mxu0
    %v1987 = vadd.f32 %v1974, %v1986
    %v1988 = vpop.f32.mrf.mxu0
    %1989 = vdwg.mxu0
    %1990 = vmatpush.bf16.msra.mxu0 %v800
    %1991 = vmatpush.bf16.msra.mxu0 %v796
    %1992 = vmatpush.bf16.msra.mxu0 %v792
    %1993 = vmatpush.bf16.msra.mxu0 %v788
    %1994 = vmatpush.bf16.msra.mxu0 %v784
    %1995 = vmatpush.bf16.msra.mxu0 %v780
    %1996 = vmatpush.bf16.msra.mxu0 %v776
    %1997 = vmatpush.bf16.msra.mxu0 %v772
    %1998 = vmatmul.bf16.gmra.mxu0 %v1854
    %v1999 = vpop.f32.mrf.mxu0
    %v2000 = vadd.f32 %v572, %v1999
    %v2001 = vpop.f32.mrf.mxu0
    %2002 = vdwg.mxu0
    %2003 = vmatpush.bf16.msra.mxu0 %v832
    %2004 = vmatpush.bf16.msra.mxu0 %v828
    %2005 = vmatpush.bf16.msra.mxu0 %v824
    %2006 = vmatpush.bf16.msra.mxu0 %v820
    %2007 = vmatpush.bf16.msra.mxu0 %v816
    %2008 = vmatpush.bf16.msra.mxu0 %v812
    %2009 = vmatpush.bf16.msra.mxu0 %v808
    %2010 = vmatpush.bf16.msra.mxu0 %v804
    %2011 = vmatmul.bf16.gmra.mxu0 %v1911
    %v2012 = vpop.f32.mrf.mxu0
    %v2013 = vadd.f32 %v2000, %v2012
    %v2014 = vpop.f32.mrf.mxu0
    %2015 = vdwg.mxu0
    %v2016 = vmul.f32 %v1907, 0.5
    %v2017 = vtanh.pop %v2016
    %v2018 = vmul.f32 %v2017, 0.5
    %v2019 = vadd.f32 %v2018, 0.5
    %v2020 = vmul.f32 %v1908, 0.5
    %v2021 = vtanh.pop %v2020
    %v2022 = vmul.f32 %v2021, 0.5
    %v2023 = vadd.f32 %v2022, 0.5
    %v2024 = vtanh.pop %v1909
    %v2025 = vmul.f32 %v1910, 0.5
    %v2026 = vtanh.pop %v2025
    %v2027 = vmul.f32 %v2026, 0.5
    %v2028 = vadd.f32 %v2027, 0.5
    %v2029 = vmul.f32 %v2023, %v1828
    %v2030 = vmul.f32 %v2019, %v2024
    %v2031 = vadd.f32 %v2029, %v2030
    %v2032 = vtanh.pop %v2031
    %v2033 = vmul.f32 %v2028, %v2032
    %v2034 = vmul.f32 %v1935, 0.5
    %v2035 = vtanh.pop %v2034
    %v2036 = vmul.f32 %v2035, 0.5
    %v2037 = vadd.f32 %v2036, 0.5
    %v2038 = vmul.f32 %v1961, 0.5
    %v2039 = vtanh.pop %v2038
    %v2040 = vmul.f32 %v2039, 0.5
    %v2041 = vadd.f32 %v2040, 0.5
    %v2042 = vtanh.pop %v1987
    %v2043 = vmul.f32 %v2013, 0.5
    %v2044 = vtanh.pop %v2043
    %v2045 = vmul.f32 %v2044, 0.5
    %v2046 = vadd.f32 %v2045, 0.5
    %v2047 = vmul.f32 %v2041, %v1846
    %v2048 = vmul.f32 %v2037, %v2042
    %v2049 = vadd.f32 %v2047, %v2048
    %v2050 = vtanh.pop %v2049
    %v2051 = vmul.f32 %v2046, %v2050
    %s2052 = scalar_lea.vmem [#allocation2], 224
    %v2053 = vld [vmem:[%s2052] sm:$0xff]
    %v2054 = vld [vmem:[%s2052 + $0x8] sm:$0xff]
    %v2055 = vld [vmem:[%s2052 + $0x10] sm:$0xff]
    %v2056 = vld [vmem:[%s2052 + $0x18] sm:$0xff]
    %v2057 = vpack.c.bf16 %v2033, %v2033
    %2058 = vmatpush.bf16.msra.mxu0 %v475
    %2059 = vmatpush.bf16.msra.mxu0 %v471
    %2060 = vmatpush.bf16.msra.mxu0 %v467
    %2061 = vmatpush.bf16.msra.mxu0 %v463
    %2062 = vmatpush.bf16.msra.mxu0 %v459
    %2063 = vmatpush.bf16.msra.mxu0 %v455
    %2064 = vmatpush.bf16.msra.mxu0 %v451
    %2065 = vmatpush.bf16.msra.mxu0 %v447
    %2066 = vmatmul.bf16.gmra.mxu0 %v2057
    %v2067 = vpop.f32.mrf.mxu0
    %v2068 = vadd.f32 0.0, %v2067
    %v2069 = vpop.f32.mrf.mxu0
    %2070 = vdwg.mxu0
    %2071 = vmatpush.bf16.msra.mxu0 %v476
    %2072 = vmatpush.bf16.msra.mxu0 %v472
    %2073 = vmatpush.bf16.msra.mxu0 %v468
    %2074 = vmatpush.bf16.msra.mxu0 %v464
    %2075 = vmatpush.bf16.msra.mxu0 %v460
    %2076 = vmatpush.bf16.msra.mxu0 %v456
    %2077 = vmatpush.bf16.msra.mxu0 %v452
    %2078 = vmatpush.bf16.msra.mxu0 %v448
    %2079 = vmatmul.bf16.gmra.mxu0 %v2057
    %v2080 = vpop.f32.mrf.mxu0
    %v2081 = vadd.f32 0.0, %v2080
    %v2082 = vpop.f32.mrf.mxu0
    %2083 = vdwg.mxu0
    %2084 = vmatpush.bf16.msra.mxu0 %v477
    %2085 = vmatpush.bf16.msra.mxu0 %v473
    %2086 = vmatpush.bf16.msra.mxu0 %v469
    %2087 = vmatpush.bf16.msra.mxu0 %v465
    %2088 = vmatpush.bf16.msra.mxu0 %v461
    %2089 = vmatpush.bf16.msra.mxu0 %v457
    %2090 = vmatpush.bf16.msra.mxu0 %v453
    %2091 = vmatpush.bf16.msra.mxu0 %v449
    %2092 = vmatmul.bf16.gmra.mxu0 %v2057
    %v2093 = vpop.f32.mrf.mxu0
    %v2094 = vadd.f32 0.0, %v2093
    %v2095 = vpop.f32.mrf.mxu0
    %2096 = vdwg.mxu0
    %2097 = vmatpush.bf16.msra.mxu0 %v478
    %2098 = vmatpush.bf16.msra.mxu0 %v474
    %2099 = vmatpush.bf16.msra.mxu0 %v470
    %2100 = vmatpush.bf16.msra.mxu0 %v466
    %2101 = vmatpush.bf16.msra.mxu0 %v462
    %2102 = vmatpush.bf16.msra.mxu0 %v458
    %2103 = vmatpush.bf16.msra.mxu0 %v454
    %2104 = vmatpush.bf16.msra.mxu0 %v450
    %2105 = vmatmul.bf16.gmra.mxu0 %v2057
    %v2106 = vpop.f32.mrf.mxu0
    %v2107 = vadd.f32 0.0, %v2106
    %v2108 = vpop.f32.mrf.mxu0
    %2109 = vdwg.mxu0
    %v2110 = vadd.f32 %v2053, %v2068
    %v2111 = vadd.f32 %v2054, %v2081
    %v2112 = vadd.f32 %v2055, %v2094
    %v2113 = vadd.f32 %v2056, %v2107
    %v2114 = vpack.c.bf16 %v2051, %v2051
    %2115 = vmatpush.bf16.msra.mxu0 %v797
    %2116 = vmatpush.bf16.msra.mxu0 %v793
    %2117 = vmatpush.bf16.msra.mxu0 %v789
    %2118 = vmatpush.bf16.msra.mxu0 %v785
    %2119 = vmatpush.bf16.msra.mxu0 %v781
    %2120 = vmatpush.bf16.msra.mxu0 %v777
    %2121 = vmatpush.bf16.msra.mxu0 %v773
    %2122 = vmatpush.bf16.msra.mxu0 %v769
    %2123 = vmatmul.bf16.gmra.mxu0 %v2057
    %v2124 = vpop.f32.mrf.mxu0
    %v2125 = vadd.f32 %v569, %v2124
    %v2126 = vpop.f32.mrf.mxu0
    %2127 = vdwg.mxu0
    %2128 = vmatpush.bf16.msra.mxu0 %v829
    %2129 = vmatpush.bf16.msra.mxu0 %v825
    %2130 = vmatpush.bf16.msra.mxu0 %v821
    %2131 = vmatpush.bf16.msra.mxu0 %v817
    %2132 = vmatpush.bf16.msra.mxu0 %v813
    %2133 = vmatpush.bf16.msra.mxu0 %v809
    %2134 = vmatpush.bf16.msra.mxu0 %v805
    %2135 = vmatpush.bf16.msra.mxu0 %v801
    %2136 = vmatmul.bf16.gmra.mxu0 %v2114
    %v2137 = vpop.f32.mrf.mxu0
    %v2138 = vadd.f32 %v2125, %v2137
    %v2139 = vpop.f32.mrf.mxu0
    %2140 = vdwg.mxu0
    %2141 = vmatpush.bf16.msra.mxu0 %v798
    %2142 = vmatpush.bf16.msra.mxu0 %v794
    %2143 = vmatpush.bf16.msra.mxu0 %v790
    %2144 = vmatpush.bf16.msra.mxu0 %v786
    %2145 = vmatpush.bf16.msra.mxu0 %v782
    %2146 = vmatpush.bf16.msra.mxu0 %v778
    %2147 = vmatpush.bf16.msra.mxu0 %v774
    %2148 = vmatpush.bf16.msra.mxu0 %v770
    %2149 = vmatmul.bf16.gmra.mxu0 %v2057
    %v2150 = vpop.f32.mrf.mxu0
    %v2151 = vadd.f32 %v570, %v2150
    %v2152 = vpop.f32.mrf.mxu0
    %2153 = vdwg.mxu0
    %2154 = vmatpush.bf16.msra.mxu0 %v830
    %2155 = vmatpush.bf16.msra.mxu0 %v826
    %2156 = vmatpush.bf16.msra.mxu0 %v822
    %2157 = vmatpush.bf16.msra.mxu0 %v818
    %2158 = vmatpush.bf16.msra.mxu0 %v814
    %2159 = vmatpush.bf16.msra.mxu0 %v810
    %2160 = vmatpush.bf16.msra.mxu0 %v806
    %2161 = vmatpush.bf16.msra.mxu0 %v802
    %2162 = vmatmul.bf16.gmra.mxu0 %v2114
    %v2163 = vpop.f32.mrf.mxu0
    %v2164 = vadd.f32 %v2151, %v2163
    %v2165 = vpop.f32.mrf.mxu0
    %2166 = vdwg.mxu0
    %2167 = vmatpush.bf16.msra.mxu0 %v799
    %2168 = vmatpush.bf16.msra.mxu0 %v795
    %2169 = vmatpush.bf16.msra.mxu0 %v791
    %2170 = vmatpush.bf16.msra.mxu0 %v787
    %2171 = vmatpush.bf16.msra.mxu0 %v783
    %2172 = vmatpush.bf16.msra.mxu0 %v779
    %2173 = vmatpush.bf16.msra.mxu0 %v775
    %2174 = vmatpush.bf16.msra.mxu0 %v771
    %2175 = vmatmul.bf16.gmra.mxu0 %v2057
    %v2176 = vpop.f32.mrf.mxu0
    %v2177 = vadd.f32 %v571, %v2176
    %v2178 = vpop.f32.mrf.mxu0
    %2179 = vdwg.mxu0
    %2180 = vmatpush.bf16.msra.mxu0 %v831
    %2181 = vmatpush.bf16.msra.mxu0 %v827
    %2182 = vmatpush.bf16.msra.mxu0 %v823
    %2183 = vmatpush.bf16.msra.mxu0 %v819
    %2184 = vmatpush.bf16.msra.mxu0 %v815
    %2185 = vmatpush.bf16.msra.mxu0 %v811
    %2186 = vmatpush.bf16.msra.mxu0 %v807
    %2187 = vmatpush.bf16.msra.mxu0 %v803
    %2188 = vmatmul.bf16.gmra.mxu0 %v2114
    %v2189 = vpop.f32.mrf.mxu0
    %v2190 = vadd.f32 %v2177, %v2189
    %v2191 = vpop.f32.mrf.mxu0
    %2192 = vdwg.mxu0
    %2193 = vmatpush.bf16.msra.mxu0 %v800
    %2194 = vmatpush.bf16.msra.mxu0 %v796
    %2195 = vmatpush.bf16.msra.mxu0 %v792
    %2196 = vmatpush.bf16.msra.mxu0 %v788
    %2197 = vmatpush.bf16.msra.mxu0 %v784
    %2198 = vmatpush.bf16.msra.mxu0 %v780
    %2199 = vmatpush.bf16.msra.mxu0 %v776
    %2200 = vmatpush.bf16.msra.mxu0 %v772
    %2201 = vmatmul.bf16.gmra.mxu0 %v2057
    %v2202 = vpop.f32.mrf.mxu0
    %v2203 = vadd.f32 %v572, %v2202
    %v2204 = vpop.f32.mrf.mxu0
    %2205 = vdwg.mxu0
    %2206 = vmatpush.bf16.msra.mxu0 %v832
    %2207 = vmatpush.bf16.msra.mxu0 %v828
    %2208 = vmatpush.bf16.msra.mxu0 %v824
    %2209 = vmatpush.bf16.msra.mxu0 %v820
    %2210 = vmatpush.bf16.msra.mxu0 %v816
    %2211 = vmatpush.bf16.msra.mxu0 %v812
    %2212 = vmatpush.bf16.msra.mxu0 %v808
    %2213 = vmatpush.bf16.msra.mxu0 %v804
    %2214 = vmatmul.bf16.gmra.mxu0 %v2114
    %v2215 = vpop.f32.mrf.mxu0
    %v2216 = vadd.f32 %v2203, %v2215
    %v2217 = vpop.f32.mrf.mxu0
    %2218 = vdwg.mxu0
    %v2219 = vmul.f32 %v2110, 0.5
    %v2220 = vtanh.pop %v2219
    %v2221 = vmul.f32 %v2220, 0.5
    %v2222 = vadd.f32 %v2221, 0.5
    %v2223 = vmul.f32 %v2111, 0.5
    %v2224 = vtanh.pop %v2223
    %v2225 = vmul.f32 %v2224, 0.5
    %v2226 = vadd.f32 %v2225, 0.5
    %v2227 = vtanh.pop %v2112
    %v2228 = vmul.f32 %v2113, 0.5
    %v2229 = vtanh.pop %v2228
    %v2230 = vmul.f32 %v2229, 0.5
    %v2231 = vadd.f32 %v2230, 0.5
    %v2232 = vmul.f32 %v2226, %v2031
    %v2233 = vmul.f32 %v2222, %v2227
    %v2234 = vadd.f32 %v2232, %v2233
    %v2235 = vtanh.pop %v2234
    %v2236 = vmul.f32 %v2231, %v2235
    %v2237 = vmul.f32 %v2138, 0.5
    %v2238 = vtanh.pop %v2237
    %v2239 = vmul.f32 %v2238, 0.5
    %v2240 = vadd.f32 %v2239, 0.5
    %v2241 = vmul.f32 %v2164, 0.5
    %v2242 = vtanh.pop %v2241
    %v2243 = vmul.f32 %v2242, 0.5
    %v2244 = vadd.f32 %v2243, 0.5
    %v2245 = vtanh.pop %v2190
    %v2246 = vmul.f32 %v2216, 0.5
    %v2247 = vtanh.pop %v2246
    %v2248 = vmul.f32 %v2247, 0.5
    %v2249 = vadd.f32 %v2248, 0.5
    %v2250 = vmul.f32 %v2244, %v2049
    %v2251 = vmul.f32 %v2240, %v2245
    %v2252 = vadd.f32 %v2250, %v2251
    %v2253 = vtanh.pop %v2252
    %v2254 = vmul.f32 %v2249, %v2253
    %v2255 = vpack.c.bf16 %v2236, %v2236
    %v2256 = vpack.c.bf16 %v2254, %v2254
    %2257 = vmatpush.bf16.msra.mxu0 %v797
    %2258 = vmatpush.bf16.msra.mxu0 %v793
    %2259 = vmatpush.bf16.msra.mxu0 %v789
    %2260 = vmatpush.bf16.msra.mxu0 %v785
    %2261 = vmatpush.bf16.msra.mxu0 %v781
    %2262 = vmatpush.bf16.msra.mxu0 %v777
    %2263 = vmatpush.bf16.msra.mxu0 %v773
    %2264 = vmatpush.bf16.msra.mxu0 %v769
    %2265 = vmatmul.bf16.gmra.mxu0 %v2255
    %v2266 = vpop.f32.mrf.mxu0
    %v2267 = vadd.f32 %v569, %v2266
    %v2268 = vpop.f32.mrf.mxu0
    %2269 = vdwg.mxu0
    %2270 = vmatpush.bf16.msra.mxu0 %v829
    %2271 = vmatpush.bf16.msra.mxu0 %v825
    %2272 = vmatpush.bf16.msra.mxu0 %v821
    %2273 = vmatpush.bf16.msra.mxu0 %v817
    %2274 = vmatpush.bf16.msra.mxu0 %v813
    %2275 = vmatpush.bf16.msra.mxu0 %v809
    %2276 = vmatpush.bf16.msra.mxu0 %v805
    %2277 = vmatpush.bf16.msra.mxu0 %v801
    %2278 = vmatmul.bf16.gmra.mxu0 %v2256
    %v2279 = vpop.f32.mrf.mxu0
    %v2280 = vadd.f32 %v2267, %v2279
    %v2281 = vpop.f32.mrf.mxu0
    %2282 = vdwg.mxu0
    %2283 = vmatpush.bf16.msra.mxu0 %v798
    %2284 = vmatpush.bf16.msra.mxu0 %v794
    %2285 = vmatpush.bf16.msra.mxu0 %v790
    %2286 = vmatpush.bf16.msra.mxu0 %v786
    %2287 = vmatpush.bf16.msra.mxu0 %v782
    %2288 = vmatpush.bf16.msra.mxu0 %v778
    %2289 = vmatpush.bf16.msra.mxu0 %v774
    %2290 = vmatpush.bf16.msra.mxu0 %v770
    %2291 = vmatmul.bf16.gmra.mxu0 %v2255
    %v2292 = vpop.f32.mrf.mxu0
    %v2293 = vadd.f32 %v570, %v2292
    %v2294 = vpop.f32.mrf.mxu0
    %2295 = vdwg.mxu0
    %2296 = vmatpush.bf16.msra.mxu0 %v830
    %2297 = vmatpush.bf16.msra.mxu0 %v826
    %2298 = vmatpush.bf16.msra.mxu0 %v822
    %2299 = vmatpush.bf16.msra.mxu0 %v818
    %2300 = vmatpush.bf16.msra.mxu0 %v814
    %2301 = vmatpush.bf16.msra.mxu0 %v810
    %2302 = vmatpush.bf16.msra.mxu0 %v806
    %2303 = vmatpush.bf16.msra.mxu0 %v802
    %2304 = vmatmul.bf16.gmra.mxu0 %v2256
    %v2305 = vpop.f32.mrf.mxu0
    %v2306 = vadd.f32 %v2293, %v2305
    %v2307 = vpop.f32.mrf.mxu0
    %2308 = vdwg.mxu0
    %2309 = vmatpush.bf16.msra.mxu0 %v799
    %2310 = vmatpush.bf16.msra.mxu0 %v795
    %2311 = vmatpush.bf16.msra.mxu0 %v791
    %2312 = vmatpush.bf16.msra.mxu0 %v787
    %2313 = vmatpush.bf16.msra.mxu0 %v783
    %2314 = vmatpush.bf16.msra.mxu0 %v779
    %2315 = vmatpush.bf16.msra.mxu0 %v775
    %2316 = vmatpush.bf16.msra.mxu0 %v771
    %2317 = vmatmul.bf16.gmra.mxu0 %v2255
    %v2318 = vpop.f32.mrf.mxu0
    %v2319 = vadd.f32 %v571, %v2318
    %v2320 = vpop.f32.mrf.mxu0
    %2321 = vdwg.mxu0
    %2322 = vmatpush.bf16.msra.mxu0 %v831
    %2323 = vmatpush.bf16.msra.mxu0 %v827
    %2324 = vmatpush.bf16.msra.mxu0 %v823
    %2325 = vmatpush.bf16.msra.mxu0 %v819
    %2326 = vmatpush.bf16.msra.mxu0 %v815
    %2327 = vmatpush.bf16.msra.mxu0 %v811
    %2328 = vmatpush.bf16.msra.mxu0 %v807
    %2329 = vmatpush.bf16.msra.mxu0 %v803
    %2330 = vmatmul.bf16.gmra.mxu0 %v2256
    %v2331 = vpop.f32.mrf.mxu0
    %v2332 = vadd.f32 %v2319, %v2331
    %v2333 = vpop.f32.mrf.mxu0
    %2334 = vdwg.mxu0
    %2335 = vmatpush.bf16.msra.mxu0 %v800
    %2336 = vmatpush.bf16.msra.mxu0 %v796
    %2337 = vmatpush.bf16.msra.mxu0 %v792
    %2338 = vmatpush.bf16.msra.mxu0 %v788
    %2339 = vmatpush.bf16.msra.mxu0 %v784
    %2340 = vmatpush.bf16.msra.mxu0 %v780
    %2341 = vmatpush.bf16.msra.mxu0 %v776
    %2342 = vmatpush.bf16.msra.mxu0 %v772
    %2343 = vmatmul.bf16.gmra.mxu0 %v2255
    %v2344 = vpop.f32.mrf.mxu0
    %v2345 = vadd.f32 %v572, %v2344
    %v2346 = vpop.f32.mrf.mxu0
    %2347 = vdwg.mxu0
    %2348 = vmatpush.bf16.msra.mxu0 %v832
    %2349 = vmatpush.bf16.msra.mxu0 %v828
    %2350 = vmatpush.bf16.msra.mxu0 %v824
    %2351 = vmatpush.bf16.msra.mxu0 %v820
    %2352 = vmatpush.bf16.msra.mxu0 %v816
    %2353 = vmatpush.bf16.msra.mxu0 %v812
    %2354 = vmatpush.bf16.msra.mxu0 %v808
    %2355 = vmatpush.bf16.msra.mxu0 %v804
    %2356 = vmatmul.bf16.gmra.mxu0 %v2256
    %v2357 = vpop.f32.mrf.mxu0
    %v2358 = vadd.f32 %v2345, %v2357
    %v2359 = vpop.f32.mrf.mxu0
    %2360 = vdwg.mxu0
    %v2361 = vmul.f32 %v2280, 0.5
    %v2362 = vtanh.pop %v2361
    %v2363 = vmul.f32 %v2362, 0.5
    %v2364 = vadd.f32 %v2363, 0.5
    %v2365 = vmul.f32 %v2306, 0.5
    %v2366 = vtanh.pop %v2365
    %v2367 = vmul.f32 %v2366, 0.5
    %v2368 = vadd.f32 %v2367, 0.5
    %v2369 = vtanh.pop %v2332
    %v2370 = vmul.f32 %v2358, 0.5
    %v2371 = vtanh.pop %v2370
    %v2372 = vmul.f32 %v2371, 0.5
    %v2373 = vadd.f32 %v2372, 0.5
    %v2374 = vmul.f32 %v2368, %v2252
    %v2375 = vmul.f32 %v2364, %v2369
    %v2376 = vadd.f32 %v2374, %v2375
    %v2377 = vtanh.pop %v2376
    %v2378 = vmul.f32 %v2373, %v2377
    %v2379 = vpack.c.bf16 %v2378, %v2378
    %v2380 = vld [vmem:[%s6] sm:$0xf]
    %v2381 = vld [vmem:[%s6 + $0x4] sm:$0xf]
    %v2382 = vld [vmem:[%s6 + $0x8] sm:$0xf]
    %v2383 = vld [vmem:[%s6 + $0xc] sm:$0xf]
    %v2384 = vld [vmem:[%s6 + $0x10] sm:$0xf]
    %v2385 = vld [vmem:[%s6 + $0x14] sm:$0xf]
    %v2386 = vld [vmem:[%s6 + $0x18] sm:$0xf]
    %v2387 = vld [vmem:[%s6 + $0x1c] sm:$0xf]
    %v2388 = vld [vmem:[%s6 + $0x20] sm:$0xf]
    %v2389 = vld [vmem:[%s6 + $0x24] sm:$0xf]
    %v2390 = vld [vmem:[%s6 + $0x28] sm:$0xf]
    %v2391 = vld [vmem:[%s6 + $0x2c] sm:$0xf]
    %v2392 = vld [vmem:[%s6 + $0x30] sm:$0xf]
    %v2393 = vld [vmem:[%s6 + $0x34] sm:$0xf]
    %v2394 = vld [vmem:[%s6 + $0x38] sm:$0xf]
    %v2395 = vld [vmem:[%s6 + $0x3c] sm:$0xf]
    %v2396 = vld [vmem:[%s7] sm:$0x1]
    %v2398 = vperm.slane %v2396, 0
    %v2416 = vunpack.c.l.b16 %v2380
    %v2417 = vunpack.c.l.b16 %v2381
    %v2418 = vunpack.c.l.b16 %v2382
    %v2419 = vunpack.c.l.b16 %v2383
    %v2420 = vunpack.c.l.b16 %v2384
    %v2421 = vunpack.c.l.b16 %v2385
    %v2422 = vunpack.c.l.b16 %v2386
    %v2423 = vunpack.c.l.b16 %v2387
    %v2424 = vunpack.c.l.b16 %v2388
    %v2425 = vunpack.c.l.b16 %v2389
    %v2426 = vunpack.c.l.b16 %v2390
    %v2427 = vunpack.c.l.b16 %v2391
    %v2428 = vunpack.c.l.b16 %v2392
    %v2429 = vunpack.c.l.b16 %v2393
    %v2430 = vunpack.c.l.b16 %v2394
    %v2431 = vunpack.c.l.b16 %v2395
    %v2432 = vpack.c.b16 %v2417, %v2416
    %v2433 = vpack.c.b16 %v2419, %v2418
    %v2434 = vpack.c.b16 %v2421, %v2420
    %v2435 = vpack.c.b16 %v2423, %v2422
    %v2436 = vpack.c.b16 %v2425, %v2424
    %v2437 = vpack.c.b16 %v2427, %v2426
    %v2438 = vpack.c.b16 %v2429, %v2428
    %v2439 = vpack.c.b16 %v2431, %v2430
    %2448 = vmatpush.bf16.msra.mxu0 %v2439
    %2449 = vmatpush.bf16.msra.mxu0 %v2438
    %2450 = vmatpush.bf16.msra.mxu0 %v2437
    %2451 = vmatpush.bf16.msra.mxu0 %v2436
    %2452 = vmatpush.bf16.msra.mxu0 %v2435
    %2453 = vmatpush.bf16.msra.mxu0 %v2434
    %2454 = vmatpush.bf16.msra.mxu0 %v2433
    %2455 = vmatpush.bf16.msra.mxu0 %v2432
    %2456 = vmatmul.bf16.gmra.mxu0 %v2379
    %v2457 = vpop.f32.mrf.mxu0
    %v2458 = vadd.f32 %v2398, %v2457
    %v2459 = vpop.f32.mrf.mxu0
    %2460 = vdwg.mxu0
    %2461 = vst [vmem:[#allocation8] sm:$0xff] %v2458
    // Predicated region
    $region42: #{tpu_custom_call.1} parent=1 // pred_check
      _
    $region43: #{tpu_custom_call.1} parent=1 // pred_check_branch
      %2463 = sbr.rel (0) target = $region45
    $region44: #{tpu_custom_call.1} parent=1 // pred_region
      %2465 = vsyncadd [#allocation5], 0
      %s2467 = sshll.u32 [#allocation8], 4
      %s2468 = int_to_ptr.vmem [resolvable:$true] %s2467
      %s2469 = sshll.u32 %s8, 4
      %s2470 = int_to_ptr.hbm [resolvable:$true] %s2469
      %2472 = dma.vmem_to_hbm [thread:$0]  %s2468, 128, %s2470, [#allocation5]
    $region45: #{tpu_custom_call.1} parent=1 // pred_fallthru
      _
    // Predicated region
    $region46: #{tpu_custom_call.1} parent=1 // pred_check
      _
    $region47: #{tpu_custom_call.1} parent=1 // pred_check_branch
      %2474 = sbr.rel (0) target = $region49
    $region48: #{tpu_custom_call.1} parent=1 // pred_region
      %2476 = dma.done [#allocation5], 128
    $region49: #{tpu_custom_call.1} parent=1 // pred_fallthru
      _
    %2477 = vsyncpa [#allocation4], 1
    %2478 = vsyncpa [#allocation7], 1
    %2479 = vsyncpa [#allocation5], 1

</llo_original>
